<compile_context>
chip_gen: v7x
topology: tpu7x:2x2x1
jax: 0.10.0
libtpu: 0.0.40
codegen_flags: <defaults>
</compile_context>

<pallas_src>
import functools

import jax
import jax.numpy as jnp
import numpy as np
from jax import lax
from jax.experimental import pallas as pl
from jax.experimental.pallas import tpu as pltpu

LANE = 128
SUBLANE = 8


def _round_up(x, m):
    return (x + m - 1) // m * m


def _pick_tile(n, max_tile, align=1):
    """Largest t <= max_tile with n % t == 0 and t % align == 0 (or t == n)."""
    if n <= max_tile:
        return n
    t = (max_tile // align) * align
    while t >= align:
        if n % t == 0:
            return t
        t -= align
    return n


# ----------------------------------------------------------------------------
# Tiled matmul + bias kernel (MXU):  out = x @ w + b
# Used for (a) the hoisted LSTM input projection over all timesteps and
# (b) the decoder.  Grid = (M tiles, N tiles, K tiles), K innermost.
# ----------------------------------------------------------------------------
def _matmul_bias_kernel(x_ref, w_ref, b_ref, o_ref, acc_ref):
    k = pl.program_id(2)

    @pl.when(k == 0)
    def _():
        acc_ref[...] = jnp.zeros_like(acc_ref)

    acc_ref[...] += jnp.dot(x_ref[...], w_ref[...],
                            preferred_element_type=jnp.float32)

    @pl.when(k == pl.num_programs(2) - 1)
    def _():
        o_ref[...] = (acc_ref[...] + b_ref[...]).astype(o_ref.dtype)


def matmul_bias(x, w, b, *, tm=256, tn=512, tk=512, out_dtype=jnp.float32):
    """x: (M, K), w: (K, N), b: (1, N) -> (M, N). Pads to tile multiples (zeros)."""
    M, K = x.shape
    K2, N = w.shape
    assert K2 == K and b.shape == (1, N)
    tm = min(tm, _round_up(M, SUBLANE))
    tn = min(tn, _round_up(N, LANE))
    tk = min(tk, _round_up(K, LANE))
    Mp, Kp, Np = _round_up(M, tm), _round_up(K, tk), _round_up(N, tn)
    if (Mp, Kp) != (M, K):
        x = jnp.pad(x, ((0, Mp - M), (0, Kp - K)))
    if (Kp, Np) != (K, N):
        w = jnp.pad(w, ((0, Kp - K), (0, Np - N)))
    if Np != N:
        b = jnp.pad(b, ((0, 0), (0, Np - N)))

    out = pl.pallas_call(
        _matmul_bias_kernel,
        out_shape=jax.ShapeDtypeStruct((Mp, Np), out_dtype),
        grid_spec=pltpu.PrefetchScalarGridSpec(
            num_scalar_prefetch=0,
            grid=(Mp // tm, Np // tn, Kp // tk),
            in_specs=[
                pl.BlockSpec((tm, tk), lambda i, j, k: (i, k)),
                pl.BlockSpec((tk, tn), lambda i, j, k: (k, j)),
                pl.BlockSpec((1, tn), lambda i, j, k: (0, j)),
            ],
            out_specs=pl.BlockSpec((tm, tn), lambda i, j, k: (i, j)),
            scratch_shapes=[pltpu.VMEM((tm, tn), jnp.float32)]),
        compiler_params=pltpu.CompilerParams(
            dimension_semantics=("parallel", "parallel", "arbitrary")),
    )(x, w, b)
    if (Mp, Np) != (M, N):
        out = out[:M, :N]
    return out


# ----------------------------------------------------------------------------
# LSTM recurrence kernel.  The input projection gx = x @ W_ih^T + b is
# precomputed; the kernel only does the sequential part: h @ W_hh^T + gates.
# Grid = (batch tiles [parallel], time blocks [arbitrary]); TS steps per block.
# h/c live in VMEM scratch; h_T/c_T are stored only on the last time block.
# ----------------------------------------------------------------------------
def _lstm_rec_kernel(gx_ref, whh_ref, h0_ref, c0_ref,
                     y_ref, hT_ref, cT_ref, h_scr, c_scr):
    t_blk = pl.program_id(1)

    @pl.when(t_blk == 0)
    def _():
        h_scr[...] = h0_ref[...]
        c_scr[...] = c0_ref[...]

    H = h_scr.shape[-1]
    TS = y_ref.shape[0]
    whh = whh_ref[...]            # resident weights, loaded once per time block

    def step(s, carry):
        h, c = carry
        gates = gx_ref[s] + jnp.dot(h, whh, preferred_element_type=jnp.float32)
        i_g = jax.nn.sigmoid(gates[:, 0 * H:1 * H])
        f_g = jax.nn.sigmoid(gates[:, 1 * H:2 * H])
        g_g = jnp.tanh(gates[:, 2 * H:3 * H])
        o_g = jax.nn.sigmoid(gates[:, 3 * H:4 * H])
        c_new = f_g * c + i_g * g_g
        h_new = o_g * jnp.tanh(c_new)
        y_ref[s] = h_new.astype(y_ref.dtype)
        return h_new, c_new

    h_fin, c_fin = lax.fori_loop(0, TS, step, (h_scr[...], c_scr[...]),
                                 unroll=True)
    h_scr[...] = h_fin
    c_scr[...] = c_fin

    @pl.when(t_blk == pl.num_programs(1) - 1)
    def _():
        hT_ref[...] = h_fin.astype(hT_ref.dtype)
        cT_ref[...] = c_fin.astype(cT_ref.dtype)


def lstm_recurrence(gx, w_hh_t, h0, c0, *, ts_max=8, tb_max=256):
    """gx: (T, B, 4H) f32 precomputed gate inputs (incl. bias); w_hh_t: (H, 4H);
       h0/c0: (B, H).  Expects B % 8 == 0 and H % 128 == 0.
       Returns (y (T,B,H), h_T (B,H), c_T (B,H))."""
    T, B, G = gx.shape
    H = w_hh_t.shape[0]
    assert G == 4 * H and h0.shape == (B, H) and c0.shape == (B, H)
    TB = _pick_tile(B, tb_max, align=SUBLANE)
    # keep the per-grid-step gx block comfortably inside VMEM
    step_bytes = TB * G * 4
    ts_cap = max(1, min(ts_max, (4 * 1024 * 1024) // max(step_bytes, 1)))
    TS = _pick_tile(T, ts_cap)

    return pl.pallas_call(
        _lstm_rec_kernel,
        out_shape=(jax.ShapeDtypeStruct((T, B, H), jnp.float32),
                   jax.ShapeDtypeStruct((B, H), jnp.float32),
                   jax.ShapeDtypeStruct((B, H), jnp.float32)),
        grid_spec=pltpu.PrefetchScalarGridSpec(
            num_scalar_prefetch=0,
            grid=(B // TB, T // TS),
            in_specs=[
                pl.BlockSpec((TS, TB, G), lambda b, t: (t, b, 0)),   # gx block
                pl.BlockSpec((H, G), lambda b, t: (0, 0)),           # W_hh^T (resident)
                pl.BlockSpec((TB, H), lambda b, t: (b, 0)),          # h0
                pl.BlockSpec((TB, H), lambda b, t: (b, 0)),          # c0
            ],
            out_specs=(
                pl.BlockSpec((TS, TB, H), lambda b, t: (t, b, 0)),   # y block
                pl.BlockSpec((TB, H), lambda b, t: (b, 0)),          # h_T
                pl.BlockSpec((TB, H), lambda b, t: (b, 0)),          # c_T
            ),
            scratch_shapes=[pltpu.VMEM((TB, H), jnp.float32),
                            pltpu.VMEM((TB, H), jnp.float32)]),
        compiler_params=pltpu.CompilerParams(
            dimension_semantics=("parallel", "arbitrary")),
    )(gx, w_hh_t, h0, c0)


# ----------------------------------------------------------------------------
# Parameters (PyTorch-equivalent init), lane/sublane padding, forward glue.
# ----------------------------------------------------------------------------
def init_params(key, ntoken, ninp, nhid, nlayers):
    """Logical (PyTorch-shaped, transposed-for-matmul) parameters."""
    initrange = 0.1
    keys = jax.random.split(key, 2 + 4 * nlayers)
    params = {
        "encoder": jax.random.uniform(keys[0], (ntoken, ninp), jnp.float32,
                                      -initrange, initrange),
        "decoder_w_t": jax.random.uniform(keys[1], (ninp, ntoken), jnp.float32,
                                          -initrange, initrange),
        "decoder_b": jnp.zeros((1, ntoken), jnp.float32),
        "lstms": [],
    }
    for layer in range(nlayers):
        in_sz = ninp if layer == 0 else nhid
        out_sz = nhid if layer != nlayers - 1 else ninp
        bound = 1.0 / float(out_sz) ** 0.5
        k = keys[2 + 4 * layer: 2 + 4 * (layer + 1)]
        w_ih_t = jax.random.uniform(k[0], (in_sz, 4 * out_sz), jnp.float32, -bound, bound)
        w_hh_t = jax.random.uniform(k[1], (out_sz, 4 * out_sz), jnp.float32, -bound, bound)
        b_ih = jax.random.uniform(k[2], (1, 4 * out_sz), jnp.float32, -bound, bound)
        b_hh = jax.random.uniform(k[3], (1, 4 * out_sz), jnp.float32, -bound, bound)
        params["lstms"].append(
            {"w_ih_t": w_ih_t, "w_hh_t": w_hh_t, "b": b_ih + b_hh})
    return params


def _pad_gate_cols(a, h, hp):
    """Zero-pad the last (4*h) axis gate-wise to 4*hp (gate order i,f,g,o kept)."""
    if hp == h:
        return a
    lead = a.shape[:-1]
    a = a.reshape(lead + (4, h))
    a = jnp.pad(a, [(0, 0)] * len(lead) + [(0, 0), (0, hp - h)])
    return a.reshape(lead + (4 * hp,))


def pad_params(params, ntoken, ninp, nhid, nlayers):
    """Zero-pad params to lane-aligned feature sizes (preserves the math exactly:
       padded hidden units stay identically zero through the recurrence)."""
    ep = _round_up(ninp, LANE)
    hp = _round_up(nhid, LANE)
    vp = _round_up(ntoken, LANE)
    padded = {
        "encoder": jnp.pad(params["encoder"], ((0, 0), (0, ep - ninp))),
        "decoder_w_t": jnp.pad(params["decoder_w_t"],
                               ((0, ep - ninp), (0, vp - ntoken))),
        "decoder_b": jnp.pad(params["decoder_b"], ((0, 0), (0, vp - ntoken))),
        "lstms": [],
    }
    for layer in range(nlayers):
        p = params["lstms"][layer]
        in_sz = ninp if layer == 0 else nhid
        out_sz = nhid if layer != nlayers - 1 else ninp
        in_p = ep if layer == 0 else hp
        out_p = hp if layer != nlayers - 1 else ep
        w_ih_t = jnp.pad(_pad_gate_cols(p["w_ih_t"], out_sz, out_p),
                         ((0, in_p - in_sz), (0, 0)))
        w_hh_t = jnp.pad(_pad_gate_cols(p["w_hh_t"], out_sz, out_p),
                         ((0, out_p - out_sz), (0, 0)))
        b = _pad_gate_cols(p["b"], out_sz, out_p)
        padded["lstms"].append({"w_ih_t": w_ih_t, "w_hh_t": w_hh_t, "b": b})
    return padded


def layer_hidden_sizes(ninp, nhid, nlayers):
    """Logical (unpadded) per-layer hidden sizes, passed statically for jit."""
    return tuple(nhid if layer != nlayers - 1 else ninp
                 for layer in range(nlayers))


def init_hidden(bsz, ninp, nhid, nlayers):
    return [(jnp.zeros((1, bsz, nhid if layer != nlayers - 1 else ninp), jnp.float32),
             jnp.zeros((1, bsz, nhid if layer != nlayers - 1 else ninp), jnp.float32))
            for layer in range(nlayers)]


def rnn_model_forward(padded_params, tokens, hidden, *, nlayers, ntoken,
                      layer_sizes):
    """Eval-mode forward: returns (logits (T, B, ntoken), new_hidden list)."""
    pp = padded_params
    T, B = tokens.shape
    Bp = _round_up(B, SUBLANE)

    # pad batch on the (cheap) int token ids, then gather (stays in plain JAX);
    # padded batch rows are independent and discarded at the end.
    tok = jnp.pad(tokens, ((0, 0), (0, Bp - B))) if Bp != B else tokens
    x = jnp.take(pp["encoder"], tok, axis=0)                      # (T, Bp, Ep)

    new_hidden = []
    for layer in range(nlayers):
        p = pp["lstms"][layer]
        H = layer_sizes[layer]           # logical hidden size of this layer
        Hp = p["w_hh_t"].shape[0]        # padded hidden size
        h0 = hidden[layer][0][0]         # (B, H)
        c0 = hidden[layer][1][0]
        h0p = jnp.pad(h0, ((0, Bp - B), (0, Hp - H)))
        c0p = jnp.pad(c0, ((0, Bp - B), (0, Hp - H)))

        # hoisted input projection for all T timesteps: one large MXU matmul
        D = x.shape[-1]
        gx = matmul_bias(x.reshape(T * Bp, D), p["w_ih_t"], p["b"])
        gx = gx.reshape(T, Bp, 4 * Hp)

        y, hT, cT = lstm_recurrence(gx, p["w_hh_t"], h0p, c0p)
        new_hidden.append((hT[:B, :H][None, ...], cT[:B, :H][None, ...]))
        x = y                            # eval mode: lockdrop is identity

    E = x.shape[-1]
    decoded = matmul_bias(x.reshape(T * Bp, E), pp["decoder_w_t"],
                          pp["decoder_b"], tn=1024)
    Vp = decoded.shape[-1]
    result = decoded.reshape(T, Bp, Vp)[:, :B, :ntoken]
    return result, new_hidden


def reference_forward(params, tokens, hidden, *, nlayers, ntoken):
    """Pure-JAX reference (unpadded) for correctness checking."""
    x = jnp.take(params["encoder"], tokens, axis=0)
    new_hidden = []
    for layer in range(nlayers):
        p = params["lstms"][layer]
        H = p["w_hh_t"].shape[0]
        h = hidden[layer][0][0]
        c = hidden[layer][1][0]
        ys = []
        for t in range(x.shape[0]):
            gates = jnp.dot(x[t], p["w_ih_t"]) + jnp.dot(h, p["w_hh_t"]) + p["b"]
            i_g = jax.nn.sigmoid(gates[:, 0 * H:1 * H])
            f_g = jax.nn.sigmoid(gates[:, 1 * H:2 * H])
            g_g = jnp.tanh(gates[:, 2 * H:3 * H])
            o_g = jax.nn.sigmoid(gates[:, 3 * H:4 * H])
            c = f_g * c + i_g * g_g
            h = o_g * jnp.tanh(c)
            ys.append(h)
        x = jnp.stack(ys, axis=0)
        new_hidden.append((h[None, ...], c[None, ...]))
    T, B, E = x.shape
    dec = jnp.dot(x.reshape(T * B, E), params["decoder_w_t"]) + params["decoder_b"]
    return dec.reshape(T, B, ntoken), new_hidden


if __name__ == "__main__":
    # small shapes consistent with the module (nhid == ninp so the untied
    # decoder's in_features matches the last layer's output size)
    ntoken, ninp, nhid, nlayers = 64, 32, 32, 3
    T, B = 8, 2

    key = jax.random.PRNGKey(0)
    pkey, tkey = jax.random.split(key)
    params = init_params(pkey, ntoken, ninp, nhid, nlayers)
    kernel_params = pad_params(params, ntoken, ninp, nhid, nlayers)
    tokens = jax.random.randint(tkey, (T, B), 0, ntoken, dtype=jnp.int32)
    hidden = init_hidden(B, ninp, nhid, nlayers)

    fwd = jax.jit(functools.partial(
        rnn_model_forward, nlayers=nlayers, ntoken=ntoken,
        layer_sizes=layer_hidden_sizes(ninp, nhid, nlayers)))
    result, new_hidden = fwd(kernel_params, tokens, hidden)
    jax.block_until_ready(result)
    jax.block_until_ready(new_hidden)

    assert result.shape == (T, B, ntoken)
    assert len(new_hidden) == nlayers
    assert new_hidden[0][0].shape == (1, B, nhid)
    assert new_hidden[-1][1].shape == (1, B, ninp)

    # correctness check against the pure-JAX reference (f32 matmul precision)
    with jax.default_matmul_precision("float32"):
        ref_result, ref_hidden = reference_forward(
            params, tokens, hidden, nlayers=nlayers, ntoken=ntoken)
    np.testing.assert_allclose(np.asarray(result), np.asarray(ref_result),
                               rtol=5e-3, atol=5e-3)
    for layer in range(nlayers):
        np.testing.assert_allclose(np.asarray(new_hidden[layer][0]),
                                   np.asarray(ref_hidden[layer][0]),
                                   rtol=5e-3, atol=5e-3)
        np.testing.assert_allclose(np.asarray(new_hidden[layer][1]),
                                   np.asarray(ref_hidden[layer][1]),
                                   rtol=5e-3, atol=5e-3)

    print("KERNEL_OK")
</pallas_src>

<mosaic_0001>
module attributes {stable_mosaic.version = 11 : i64} {
  func.func @_matmul_bias_kernel(%arg0: i32, %arg1: i32, %arg2: i32, %arg3: memref<64x128xf32, #tpu.memory_space<vmem>>, %arg4: memref<128x512xf32, #tpu.memory_space<vmem>>, %arg5: memref<1x512xf32, #tpu.memory_space<vmem>>, %arg6: memref<64x512xf32, #tpu.memory_space<vmem>>, %arg7: memref<64x512xf32, #tpu.memory_space<vmem>>) attributes {dimension_semantics = [#tpu.dimension_semantics<parallel>, #tpu.dimension_semantics<parallel>, #tpu.dimension_semantics<arbitrary>], iteration_bounds = array<i64: 1, 1, 1>, scalar_prefetch = 0 : i64, scratch_operands = 1 : i64, tpu.core_type = #tpu.core_type<tc>, window_params = [{transform_indices = @transform_0, window_bounds = array<i64: 64, 128>}, {transform_indices = @transform_1, window_bounds = array<i64: 128, 512>}, {transform_indices = @transform_2, window_bounds = array<i64: 1, 512>}, {transform_indices = @transform_3, window_bounds = array<i64: 64, 512>}]} {
    %c0_i32 = arith.constant 0 : i32
    %0 = arith.cmpi eq, %arg2, %c0_i32 : i32
    %1 = arith.extui %0 : i1 to i32
    %c0_i32_0 = arith.constant 0 : i32
    %2 = arith.cmpi ne, %1, %c0_i32_0 : i32
    scf.if %2 {
      %cst_10 = arith.constant 0.000000e+00 : f32
      %12 = vector.broadcast %cst_10 : f32 to vector<64x512xf32>
      %c0_11 = arith.constant 0 : index
      %c0_12 = arith.constant 0 : index
      %13 = vector.load %arg7[%c0_11, %c0_12] : memref<64x512xf32, #tpu.memory_space<vmem>>, vector<64x512xf32>
      tpu.vector_store %arg7[%c0_11, %c0_12], %12 {strides = array<i32>} : memref<64x512xf32, #tpu.memory_space<vmem>>, vector<64x512xf32>,
    } else {
    }
    %c0 = arith.constant 0 : index
    %c0_1 = arith.constant 0 : index
    %3 = vector.load %arg7[%c0, %c0_1] : memref<64x512xf32, #tpu.memory_space<vmem>>, vector<64x512xf32>
    %c0_2 = arith.constant 0 : index
    %c0_3 = arith.constant 0 : index
    %4 = vector.load %arg3[%c0_2, %c0_3] : memref<64x128xf32, #tpu.memory_space<vmem>>, vector<64x128xf32>
    %c0_4 = arith.constant 0 : index
    %c0_5 = arith.constant 0 : index
    %5 = vector.load %arg4[%c0_4, %c0_5] : memref<128x512xf32, #tpu.memory_space<vmem>>, vector<128x512xf32>
    %cst = arith.constant dense<0.000000e+00> : vector<64x512xf32>
    %6 = tpu.matmul %4, %5, %cst {dimension_numbers = #tpu.dot_dimension_numbers<[1], [0], [0], [1], [0, 0, 1, 1], [], []>} : vector<64x128xf32>, vector<128x512xf32>, vector<64x512xf32> -> vector<64x512xf32>
    %7 = arith.addf %3, %6 : vector<64x512xf32>
    %c0_6 = arith.constant 0 : index
    %c0_7 = arith.constant 0 : index
    %8 = vector.load %arg7[%c0_6, %c0_7] : memref<64x512xf32, #tpu.memory_space<vmem>>, vector<64x512xf32>
    tpu.vector_store %arg7[%c0_6, %c0_7], %7 {strides = array<i32>} : memref<64x512xf32, #tpu.memory_space<vmem>>, vector<64x512xf32>,
    %c0_i32_8 = arith.constant 0 : i32
    %9 = arith.cmpi eq, %arg2, %c0_i32_8 : i32
    %10 = arith.extui %9 : i1 to i32
    %c0_i32_9 = arith.constant 0 : i32
    %11 = arith.cmpi ne, %10, %c0_i32_9 : i32
    scf.if %11 {
      %c0_10 = arith.constant 0 : index
      %c0_11 = arith.constant 0 : index
      %12 = vector.load %arg7[%c0_10, %c0_11] : memref<64x512xf32, #tpu.memory_space<vmem>>, vector<64x512xf32>
      %c0_12 = arith.constant 0 : index
      %c0_13 = arith.constant 0 : index
      %13 = vector.load %arg5[%c0_12, %c0_13] : memref<1x512xf32, #tpu.memory_space<vmem>>, vector<1x512xf32>
      %14 = vector.broadcast %13 : vector<1x512xf32> to vector<64x512xf32>
      %15 = arith.addf %12, %14 : vector<64x512xf32>
      %c0_14 = arith.constant 0 : index
      %c0_15 = arith.constant 0 : index
      %16 = vector.load %arg6[%c0_14, %c0_15] : memref<64x512xf32, #tpu.memory_space<vmem>>, vector<64x512xf32>
      tpu.vector_store %arg6[%c0_14, %c0_15], %15 {strides = array<i32>} : memref<64x512xf32, #tpu.memory_space<vmem>>, vector<64x512xf32>,
    } else {
    }
    return
  }
  func.func @transform_0(%arg0: i32, %arg1: i32, %arg2: i32) -> (i32, i32) {
    %c0_i32 = arith.constant 0 : i32
    return %arg0, %arg2 : i32, i32
  }
  func.func @transform_1(%arg0: i32, %arg1: i32, %arg2: i32) -> (i32, i32) {
    %c0_i32 = arith.constant 0 : i32
    return %arg2, %arg1 : i32, i32
  }
  func.func @transform_2(%arg0: i32, %arg1: i32, %arg2: i32) -> (i32, i32) {
    %c0_i32 = arith.constant 0 : i32
    %c0_i32_0 = arith.constant 0 : i32
    return %c0_i32, %arg1 : i32, i32
  }
  func.func @transform_3(%arg0: i32, %arg1: i32, %arg2: i32) -> (i32, i32) {
    %c0_i32 = arith.constant 0 : i32
    return %arg0, %arg1 : i32, i32
  }
}

module attributes {stable_mosaic.version = 11 : i64} {
  func.func @_matmul_bias_kernel(%arg0: i32, %arg1: i32, %arg2: i32, %arg3: memref<64x128xf32, #tpu.memory_space<vmem>>, %arg4: memref<128x128xf32, #tpu.memory_space<vmem>>, %arg5: memref<1x128xf32, #tpu.memory_space<vmem>>, %arg6: memref<64x128xf32, #tpu.memory_space<vmem>>, %arg7: memref<64x128xf32, #tpu.memory_space<vmem>>) attributes {dimension_semantics = [#tpu.dimension_semantics<parallel>, #tpu.dimension_semantics<parallel>, #tpu.dimension_semantics<arbitrary>], iteration_bounds = array<i64: 1, 1, 1>, scalar_prefetch = 0 : i64, scratch_operands = 1 : i64, tpu.core_type = #tpu.core_type<tc>, window_params = [{transform_indices = @transform_0, window_bounds = array<i64: 64, 128>}, {transform_indices = @transform_1, window_bounds = array<i64: 128, 128>}, {transform_indices = @transform_2, window_bounds = array<i64: 1, 128>}, {transform_indices = @transform_3, window_bounds = array<i64: 64, 128>}]} {
    %c0_i32 = arith.constant 0 : i32
    %0 = arith.cmpi eq, %arg2, %c0_i32 : i32
    %1 = arith.extui %0 : i1 to i32
    %c0_i32_0 = arith.constant 0 : i32
    %2 = arith.cmpi ne, %1, %c0_i32_0 : i32
    scf.if %2 {
      %cst_10 = arith.constant 0.000000e+00 : f32
      %12 = vector.broadcast %cst_10 : f32 to vector<64x128xf32>
      %c0_11 = arith.constant 0 : index
      %c0_12 = arith.constant 0 : index
      %13 = vector.load %arg7[%c0_11, %c0_12] : memref<64x128xf32, #tpu.memory_space<vmem>>, vector<64x128xf32>
      tpu.vector_store %arg7[%c0_11, %c0_12], %12 {strides = array<i32>} : memref<64x128xf32, #tpu.memory_space<vmem>>, vector<64x128xf32>,
    } else {
    }
    %c0 = arith.constant 0 : index
    %c0_1 = arith.constant 0 : index
    %3 = vector.load %arg7[%c0, %c0_1] : memref<64x128xf32, #tpu.memory_space<vmem>>, vector<64x128xf32>
    %c0_2 = arith.constant 0 : index
    %c0_3 = arith.constant 0 : index
    %4 = vector.load %arg3[%c0_2, %c0_3] : memref<64x128xf32, #tpu.memory_space<vmem>>, vector<64x128xf32>
    %c0_4 = arith.constant 0 : index
    %c0_5 = arith.constant 0 : index
    %5 = vector.load %arg4[%c0_4, %c0_5] : memref<128x128xf32, #tpu.memory_space<vmem>>, vector<128x128xf32>
    %cst = arith.constant dense<0.000000e+00> : vector<64x128xf32>
    %6 = tpu.matmul %4, %5, %cst {dimension_numbers = #tpu.dot_dimension_numbers<[1], [0], [0], [1], [0, 0, 1, 1], [], []>} : vector<64x128xf32>, vector<128x128xf32>, vector<64x128xf32> -> vector<64x128xf32>
    %7 = arith.addf %3, %6 : vector<64x128xf32>
    %c0_6 = arith.constant 0 : index
    %c0_7 = arith.constant 0 : index
    %8 = vector.load %arg7[%c0_6, %c0_7] : memref<64x128xf32, #tpu.memory_space<vmem>>, vector<64x128xf32>
    tpu.vector_store %arg7[%c0_6, %c0_7], %7 {strides = array<i32>} : memref<64x128xf32, #tpu.memory_space<vmem>>, vector<64x128xf32>,
    %c0_i32_8 = arith.constant 0 : i32
    %9 = arith.cmpi eq, %arg2, %c0_i32_8 : i32
    %10 = arith.extui %9 : i1 to i32
    %c0_i32_9 = arith.constant 0 : i32
    %11 = arith.cmpi ne, %10, %c0_i32_9 : i32
    scf.if %11 {
      %c0_10 = arith.constant 0 : index
      %c0_11 = arith.constant 0 : index
      %12 = vector.load %arg7[%c0_10, %c0_11] : memref<64x128xf32, #tpu.memory_space<vmem>>, vector<64x128xf32>
      %c0_12 = arith.constant 0 : index
      %c0_13 = arith.constant 0 : index
      %13 = vector.load %arg5[%c0_12, %c0_13] : memref<1x128xf32, #tpu.memory_space<vmem>>, vector<1x128xf32>
      %14 = vector.broadcast %13 : vector<1x128xf32> to vector<64x128xf32>
      %15 = arith.addf %12, %14 : vector<64x128xf32>
      %c0_14 = arith.constant 0 : index
      %c0_15 = arith.constant 0 : index
      %16 = vector.load %arg6[%c0_14, %c0_15] : memref<64x128xf32, #tpu.memory_space<vmem>>, vector<64x128xf32>
      tpu.vector_store %arg6[%c0_14, %c0_15], %15 {strides = array<i32>} : memref<64x128xf32, #tpu.memory_space<vmem>>, vector<64x128xf32>,
    } else {
    }
    return
  }
  func.func @transform_0(%arg0: i32, %arg1: i32, %arg2: i32) -> (i32, i32) {
    %c0_i32 = arith.constant 0 : i32
    return %arg0, %arg2 : i32, i32
  }
  func.func @transform_1(%arg0: i32, %arg1: i32, %arg2: i32) -> (i32, i32) {
    %c0_i32 = arith.constant 0 : i32
    return %arg2, %arg1 : i32, i32
  }
  func.func @transform_2(%arg0: i32, %arg1: i32, %arg2: i32) -> (i32, i32) {
    %c0_i32 = arith.constant 0 : i32
    %c0_i32_0 = arith.constant 0 : i32
    return %c0_i32, %arg1 : i32, i32
  }
  func.func @transform_3(%arg0: i32, %arg1: i32, %arg2: i32) -> (i32, i32) {
    %c0_i32 = arith.constant 0 : i32
    return %arg0, %arg1 : i32, i32
  }
}

module attributes {stable_mosaic.version = 11 : i64} {
  func.func @_lstm_rec_kernel(%arg0: i32, %arg1: i32, %arg2: memref<8x8x512xf32, #tpu.memory_space<vmem>>, %arg3: memref<128x512xf32, #tpu.memory_space<vmem>>, %arg4: memref<8x128xf32, #tpu.memory_space<vmem>>, %arg5: memref<8x128xf32, #tpu.memory_space<vmem>>, %arg6: memref<8x8x128xf32, #tpu.memory_space<vmem>>, %arg7: memref<8x128xf32, #tpu.memory_space<vmem>>, %arg8: memref<8x128xf32, #tpu.memory_space<vmem>>, %arg9: memref<8x128xf32, #tpu.memory_space<vmem>>, %arg10: memref<8x128xf32, #tpu.memory_space<vmem>>) attributes {dimension_semantics = [#tpu.dimension_semantics<parallel>, #tpu.dimension_semantics<arbitrary>], iteration_bounds = array<i64: 1, 1>, scalar_prefetch = 0 : i64, scratch_operands = 2 : i64, tpu.core_type = #tpu.core_type<tc>, window_params = [{transform_indices = @transform_0, window_bounds = array<i64: 8, 8, 512>}, {pipeline_mode = #tpu.pipeline_mode<synchronous>, transform_indices = @transform_1, window_bounds = array<i64: 128, 512>}, {transform_indices = @transform_2, window_bounds = array<i64: 8, 128>}, {transform_indices = @transform_3, window_bounds = array<i64: 8, 128>}, {transform_indices = @transform_4, window_bounds = array<i64: 8, 8, 128>}, {transform_indices = @transform_5, window_bounds = array<i64: 8, 128>}, {transform_indices = @transform_6, window_bounds = array<i64: 8, 128>}]} {
    %c0_i32 = arith.constant 0 : i32
    %0 = arith.cmpi eq, %arg1, %c0_i32 : i32
    %1 = arith.extui %0 : i1 to i32
    %c0_i32_0 = arith.constant 0 : i32
    %2 = arith.cmpi ne, %1, %c0_i32_0 : i32
    scf.if %2 {
      %c0_76 = arith.constant 0 : index
      %c0_77 = arith.constant 0 : index
      %283 = vector.load %arg4[%c0_76, %c0_77] : memref<8x128xf32, #tpu.memory_space<vmem>>, vector<8x128xf32>
      %c0_78 = arith.constant 0 : index
      %c0_79 = arith.constant 0 : index
      %284 = vector.load %arg9[%c0_78, %c0_79] : memref<8x128xf32, #tpu.memory_space<vmem>>, vector<8x128xf32>
      tpu.vector_store %arg9[%c0_78, %c0_79], %283 {strides = array<i32>} : memref<8x128xf32, #tpu.memory_space<vmem>>, vector<8x128xf32>,
      %c0_80 = arith.constant 0 : index
      %c0_81 = arith.constant 0 : index
      %285 = vector.load %arg5[%c0_80, %c0_81] : memref<8x128xf32, #tpu.memory_space<vmem>>, vector<8x128xf32>
      %c0_82 = arith.constant 0 : index
      %c0_83 = arith.constant 0 : index
      %286 = vector.load %arg10[%c0_82, %c0_83] : memref<8x128xf32, #tpu.memory_space<vmem>>, vector<8x128xf32>
      tpu.vector_store %arg10[%c0_82, %c0_83], %285 {strides = array<i32>} : memref<8x128xf32, #tpu.memory_space<vmem>>, vector<8x128xf32>,
    } else {
    }
    %c0 = arith.constant 0 : index
    %c0_1 = arith.constant 0 : index
    %3 = vector.load %arg3[%c0, %c0_1] : memref<128x512xf32, #tpu.memory_space<vmem>>, vector<128x512xf32>
    %c0_2 = arith.constant 0 : index
    %c0_3 = arith.constant 0 : index
    %4 = vector.load %arg9[%c0_2, %c0_3] : memref<8x128xf32, #tpu.memory_space<vmem>>, vector<8x128xf32>
    %c0_4 = arith.constant 0 : index
    %c0_5 = arith.constant 0 : index
    %5 = vector.load %arg10[%c0_4, %c0_5] : memref<8x128xf32, #tpu.memory_space<vmem>>, vector<8x128xf32>
    %c0_i32_6 = arith.constant 0 : i32
    %6 = arith.index_cast %c0_i32_6 : i32 to index
    %c0_7 = arith.constant 0 : index
    %c0_8 = arith.constant 0 : index
    %7 = vector.load %arg2[%6, %c0_7, %c0_8] : memref<8x8x512xf32, #tpu.memory_space<vmem>>, vector<1x8x512xf32>
    %8 = vector.shape_cast %7 : vector<1x8x512xf32> to vector<8x512xf32>
    %cst = arith.constant dense<0.000000e+00> : vector<8x512xf32>
    %9 = tpu.matmul %4, %3, %cst {dimension_numbers = #tpu.dot_dimension_numbers<[1], [0], [0], [1], [0, 0, 1, 1], [], []>} : vector<8x128xf32>, vector<128x512xf32>, vector<8x512xf32> -> vector<8x512xf32>
    %10 = arith.addf %8, %9 : vector<8x512xf32>
    %11 = vector.extract_strided_slice %10 {offsets = [0, 0], sizes = [8, 128], strides = [1, 1]} : vector<8x512xf32> to vector<8x128xf32>
    %12 = arith.negf %11 : vector<8x128xf32>
    %13 = math.exp %12 : vector<8x128xf32>
    %cst_9 = arith.constant 1.000000e+00 : f32
    %14 = vector.broadcast %cst_9 : f32 to vector<8x128xf32>
    %15 = arith.addf %14, %13 : vector<8x128xf32>
    %16 = arith.divf %14, %15 : vector<8x128xf32>
    %17 = vector.extract_strided_slice %10 {offsets = [0, 128], sizes = [8, 128], strides = [1, 1]} : vector<8x512xf32> to vector<8x128xf32>
    %18 = arith.negf %17 : vector<8x128xf32>
    %19 = math.exp %18 : vector<8x128xf32>
    %cst_10 = arith.constant 1.000000e+00 : f32
    %20 = vector.broadcast %cst_10 : f32 to vector<8x128xf32>
    %21 = arith.addf %20, %19 : vector<8x128xf32>
    %22 = arith.divf %20, %21 : vector<8x128xf32>
    %23 = vector.extract_strided_slice %10 {offsets = [0, 256], sizes = [8, 128], strides = [1, 1]} : vector<8x512xf32> to vector<8x128xf32>
    %24 = math.tanh %23 : vector<8x128xf32>
    %25 = vector.extract_strided_slice %10 {offsets = [0, 384], sizes = [8, 128], strides = [1, 1]} : vector<8x512xf32> to vector<8x128xf32>
    %26 = arith.negf %25 : vector<8x128xf32>
    %27 = math.exp %26 : vector<8x128xf32>
    %cst_11 = arith.constant 1.000000e+00 : f32
    %28 = vector.broadcast %cst_11 : f32 to vector<8x128xf32>
    %29 = arith.addf %28, %27 : vector<8x128xf32>
    %30 = arith.divf %28, %29 : vector<8x128xf32>
    %31 = arith.mulf %22, %5 : vector<8x128xf32>
    %32 = arith.mulf %16, %24 : vector<8x128xf32>
    %33 = arith.addf %31, %32 : vector<8x128xf32>
    %34 = math.tanh %33 : vector<8x128xf32>
    %35 = arith.mulf %30, %34 : vector<8x128xf32>
    %36 = arith.index_cast %c0_i32_6 : i32 to index
    %c0_12 = arith.constant 0 : index
    %c0_13 = arith.constant 0 : index
    %37 = vector.load %arg6[%36, %c0_12, %c0_13] : memref<8x8x128xf32, #tpu.memory_space<vmem>>, vector<1x8x128xf32>
    %38 = vector.shape_cast %37 : vector<1x8x128xf32> to vector<8x128xf32>
    %39 = vector.shape_cast %35 : vector<8x128xf32> to vector<1x8x128xf32>
    tpu.vector_store %arg6[%36, %c0_12, %c0_13], %39 {strides = array<i32>} : memref<8x8x128xf32, #tpu.memory_space<vmem>>, vector<1x8x128xf32>,
    %c1_i32 = arith.constant 1 : i32
    %40 = arith.index_cast %c1_i32 : i32 to index
    %c0_14 = arith.constant 0 : index
    %c0_15 = arith.constant 0 : index
    %41 = vector.load %arg2[%40, %c0_14, %c0_15] : memref<8x8x512xf32, #tpu.memory_space<vmem>>, vector<1x8x512xf32>
    %42 = vector.shape_cast %41 : vector<1x8x512xf32> to vector<8x512xf32>
    %cst_16 = arith.constant dense<0.000000e+00> : vector<8x512xf32>
    %43 = tpu.matmul %35, %3, %cst_16 {dimension_numbers = #tpu.dot_dimension_numbers<[1], [0], [0], [1], [0, 0, 1, 1], [], []>} : vector<8x128xf32>, vector<128x512xf32>, vector<8x512xf32> -> vector<8x512xf32>
    %44 = arith.addf %42, %43 : vector<8x512xf32>
    %45 = vector.extract_strided_slice %44 {offsets = [0, 0], sizes = [8, 128], strides = [1, 1]} : vector<8x512xf32> to vector<8x128xf32>
    %46 = arith.negf %45 : vector<8x128xf32>
    %47 = math.exp %46 : vector<8x128xf32>
    %cst_17 = arith.constant 1.000000e+00 : f32
    %48 = vector.broadcast %cst_17 : f32 to vector<8x128xf32>
    %49 = arith.addf %48, %47 : vector<8x128xf32>
    %50 = arith.divf %48, %49 : vector<8x128xf32>
    %51 = vector.extract_strided_slice %44 {offsets = [0, 128], sizes = [8, 128], strides = [1, 1]} : vector<8x512xf32> to vector<8x128xf32>
    %52 = arith.negf %51 : vector<8x128xf32>
    %53 = math.exp %52 : vector<8x128xf32>
    %cst_18 = arith.constant 1.000000e+00 : f32
    %54 = vector.broadcast %cst_18 : f32 to vector<8x128xf32>
    %55 = arith.addf %54, %53 : vector<8x128xf32>
    %56 = arith.divf %54, %55 : vector<8x128xf32>
    %57 = vector.extract_strided_slice %44 {offsets = [0, 256], sizes = [8, 128], strides = [1, 1]} : vector<8x512xf32> to vector<8x128xf32>
    %58 = math.tanh %57 : vector<8x128xf32>
    %59 = vector.extract_strided_slice %44 {offsets = [0, 384], sizes = [8, 128], strides = [1, 1]} : vector<8x512xf32> to vector<8x128xf32>
    %60 = arith.negf %59 : vector<8x128xf32>
    %61 = math.exp %60 : vector<8x128xf32>
    %cst_19 = arith.constant 1.000000e+00 : f32
    %62 = vector.broadcast %cst_19 : f32 to vector<8x128xf32>
    %63 = arith.addf %62, %61 : vector<8x128xf32>
    %64 = arith.divf %62, %63 : vector<8x128xf32>
    %65 = arith.mulf %56, %33 : vector<8x128xf32>
    %66 = arith.mulf %50, %58 : vector<8x128xf32>
    %67 = arith.addf %65, %66 : vector<8x128xf32>
    %68 = math.tanh %67 : vector<8x128xf32>
    %69 = arith.mulf %64, %68 : vector<8x128xf32>
    %70 = arith.index_cast %c1_i32 : i32 to index
    %c0_20 = arith.constant 0 : index
    %c0_21 = arith.constant 0 : index
    %71 = vector.load %arg6[%70, %c0_20, %c0_21] : memref<8x8x128xf32, #tpu.memory_space<vmem>>, vector<1x8x128xf32>
    %72 = vector.shape_cast %71 : vector<1x8x128xf32> to vector<8x128xf32>
    %73 = vector.shape_cast %69 : vector<8x128xf32> to vector<1x8x128xf32>
    tpu.vector_store %arg6[%70, %c0_20, %c0_21], %73 {strides = array<i32>} : memref<8x8x128xf32, #tpu.memory_space<vmem>>, vector<1x8x128xf32>,
    %c2_i32 = arith.constant 2 : i32
    %74 = arith.index_cast %c2_i32 : i32 to index
    %c0_22 = arith.constant 0 : index
    %c0_23 = arith.constant 0 : index
    %75 = vector.load %arg2[%74, %c0_22, %c0_23] : memref<8x8x512xf32, #tpu.memory_space<vmem>>, vector<1x8x512xf32>
    %76 = vector.shape_cast %75 : vector<1x8x512xf32> to vector<8x512xf32>
    %cst_24 = arith.constant dense<0.000000e+00> : vector<8x512xf32>
    %77 = tpu.matmul %69, %3, %cst_24 {dimension_numbers = #tpu.dot_dimension_numbers<[1], [0], [0], [1], [0, 0, 1, 1], [], []>} : vector<8x128xf32>, vector<128x512xf32>, vector<8x512xf32> -> vector<8x512xf32>
    %78 = arith.addf %76, %77 : vector<8x512xf32>
    %79 = vector.extract_strided_slice %78 {offsets = [0, 0], sizes = [8, 128], strides = [1, 1]} : vector<8x512xf32> to vector<8x128xf32>
    %80 = arith.negf %79 : vector<8x128xf32>
    %81 = math.exp %80 : vector<8x128xf32>
    %cst_25 = arith.constant 1.000000e+00 : f32
    %82 = vector.broadcast %cst_25 : f32 to vector<8x128xf32>
    %83 = arith.addf %82, %81 : vector<8x128xf32>
    %84 = arith.divf %82, %83 : vector<8x128xf32>
    %85 = vector.extract_strided_slice %78 {offsets = [0, 128], sizes = [8, 128], strides = [1, 1]} : vector<8x512xf32> to vector<8x128xf32>
    %86 = arith.negf %85 : vector<8x128xf32>
    %87 = math.exp %86 : vector<8x128xf32>
    %cst_26 = arith.constant 1.000000e+00 : f32
    %88 = vector.broadcast %cst_26 : f32 to vector<8x128xf32>
    %89 = arith.addf %88, %87 : vector<8x128xf32>
    %90 = arith.divf %88, %89 : vector<8x128xf32>
    %91 = vector.extract_strided_slice %78 {offsets = [0, 256], sizes = [8, 128], strides = [1, 1]} : vector<8x512xf32> to vector<8x128xf32>
    %92 = math.tanh %91 : vector<8x128xf32>
    %93 = vector.extract_strided_slice %78 {offsets = [0, 384], sizes = [8, 128], strides = [1, 1]} : vector<8x512xf32> to vector<8x128xf32>
    %94 = arith.negf %93 : vector<8x128xf32>
    %95 = math.exp %94 : vector<8x128xf32>
    %cst_27 = arith.constant 1.000000e+00 : f32
    %96 = vector.broadcast %cst_27 : f32 to vector<8x128xf32>
    %97 = arith.addf %96, %95 : vector<8x128xf32>
    %98 = arith.divf %96, %97 : vector<8x128xf32>
    %99 = arith.mulf %90, %67 : vector<8x128xf32>
    %100 = arith.mulf %84, %92 : vector<8x128xf32>
    %101 = arith.addf %99, %100 : vector<8x128xf32>
    %102 = math.tanh %101 : vector<8x128xf32>
    %103 = arith.mulf %98, %102 : vector<8x128xf32>
    %104 = arith.index_cast %c2_i32 : i32 to index
    %c0_28 = arith.constant 0 : index
    %c0_29 = arith.constant 0 : index
    %105 = vector.load %arg6[%104, %c0_28, %c0_29] : memref<8x8x128xf32, #tpu.memory_space<vmem>>, vector<1x8x128xf32>
    %106 = vector.shape_cast %105 : vector<1x8x128xf32> to vector<8x128xf32>
    %107 = vector.shape_cast %103 : vector<8x128xf32> to vector<1x8x128xf32>
    tpu.vector_store %arg6[%104, %c0_28, %c0_29], %107 {strides = array<i32>} : memref<8x8x128xf32, #tpu.memory_space<vmem>>, vector<1x8x128xf32>,
    %c3_i32 = arith.constant 3 : i32
    %108 = arith.index_cast %c3_i32 : i32 to index
    %c0_30 = arith.constant 0 : index
    %c0_31 = arith.constant 0 : index
    %109 = vector.load %arg2[%108, %c0_30, %c0_31] : memref<8x8x512xf32, #tpu.memory_space<vmem>>, vector<1x8x512xf32>
    %110 = vector.shape_cast %109 : vector<1x8x512xf32> to vector<8x512xf32>
    %cst_32 = arith.constant dense<0.000000e+00> : vector<8x512xf32>
    %111 = tpu.matmul %103, %3, %cst_32 {dimension_numbers = #tpu.dot_dimension_numbers<[1], [0], [0], [1], [0, 0, 1, 1], [], []>} : vector<8x128xf32>, vector<128x512xf32>, vector<8x512xf32> -> vector<8x512xf32>
    %112 = arith.addf %110, %111 : vector<8x512xf32>
    %113 = vector.extract_strided_slice %112 {offsets = [0, 0], sizes = [8, 128], strides = [1, 1]} : vector<8x512xf32> to vector<8x128xf32>
    %114 = arith.negf %113 : vector<8x128xf32>
    %115 = math.exp %114 : vector<8x128xf32>
    %cst_33 = arith.constant 1.000000e+00 : f32
    %116 = vector.broadcast %cst_33 : f32 to vector<8x128xf32>
    %117 = arith.addf %116, %115 : vector<8x128xf32>
    %118 = arith.divf %116, %117 : vector<8x128xf32>
    %119 = vector.extract_strided_slice %112 {offsets = [0, 128], sizes = [8, 128], strides = [1, 1]} : vector<8x512xf32> to vector<8x128xf32>
    %120 = arith.negf %119 : vector<8x128xf32>
    %121 = math.exp %120 : vector<8x128xf32>
    %cst_34 = arith.constant 1.000000e+00 : f32
    %122 = vector.broadcast %cst_34 : f32 to vector<8x128xf32>
    %123 = arith.addf %122, %121 : vector<8x128xf32>
    %124 = arith.divf %122, %123 : vector<8x128xf32>
    %125 = vector.extract_strided_slice %112 {offsets = [0, 256], sizes = [8, 128], strides = [1, 1]} : vector<8x512xf32> to vector<8x128xf32>
    %126 = math.tanh %125 : vector<8x128xf32>
    %127 = vector.extract_strided_slice %112 {offsets = [0, 384], sizes = [8, 128], strides = [1, 1]} : vector<8x512xf32> to vector<8x128xf32>
    %128 = arith.negf %127 : vector<8x128xf32>
    %129 = math.exp %128 : vector<8x128xf32>
    %cst_35 = arith.constant 1.000000e+00 : f32
    %130 = vector.broadcast %cst_35 : f32 to vector<8x128xf32>
    %131 = arith.addf %130, %129 : vector<8x128xf32>
    %132 = arith.divf %130, %131 : vector<8x128xf32>
    %133 = arith.mulf %124, %101 : vector<8x128xf32>
    %134 = arith.mulf %118, %126 : vector<8x128xf32>
    %135 = arith.addf %133, %134 : vector<8x128xf32>
    %136 = math.tanh %135 : vector<8x128xf32>
    %137 = arith.mulf %132, %136 : vector<8x128xf32>
    %138 = arith.index_cast %c3_i32 : i32 to index
    %c0_36 = arith.constant 0 : index
    %c0_37 = arith.constant 0 : index
    %139 = vector.load %arg6[%138, %c0_36, %c0_37] : memref<8x8x128xf32, #tpu.memory_space<vmem>>, vector<1x8x128xf32>
    %140 = vector.shape_cast %139 : vector<1x8x128xf32> to vector<8x128xf32>
    %141 = vector.shape_cast %137 : vector<8x128xf32> to vector<1x8x128xf32>
    tpu.vector_store %arg6[%138, %c0_36, %c0_37], %141 {strides = array<i32>} : memref<8x8x128xf32, #tpu.memory_space<vmem>>, vector<1x8x128xf32>,
    %c4_i32 = arith.constant 4 : i32
    %142 = arith.index_cast %c4_i32 : i32 to index
    %c0_38 = arith.constant 0 : index
    %c0_39 = arith.constant 0 : index
    %143 = vector.load %arg2[%142, %c0_38, %c0_39] : memref<8x8x512xf32, #tpu.memory_space<vmem>>, vector<1x8x512xf32>
    %144 = vector.shape_cast %143 : vector<1x8x512xf32> to vector<8x512xf32>
    %cst_40 = arith.constant dense<0.000000e+00> : vector<8x512xf32>
    %145 = tpu.matmul %137, %3, %cst_40 {dimension_numbers = #tpu.dot_dimension_numbers<[1], [0], [0], [1], [0, 0, 1, 1], [], []>} : vector<8x128xf32>, vector<128x512xf32>, vector<8x512xf32> -> vector<8x512xf32>
    %146 = arith.addf %144, %145 : vector<8x512xf32>
    %147 = vector.extract_strided_slice %146 {offsets = [0, 0], sizes = [8, 128], strides = [1, 1]} : vector<8x512xf32> to vector<8x128xf32>
    %148 = arith.negf %147 : vector<8x128xf32>
    %149 = math.exp %148 : vector<8x128xf32>
    %cst_41 = arith.constant 1.000000e+00 : f32
    %150 = vector.broadcast %cst_41 : f32 to vector<8x128xf32>
    %151 = arith.addf %150, %149 : vector<8x128xf32>
    %152 = arith.divf %150, %151 : vector<8x128xf32>
    %153 = vector.extract_strided_slice %146 {offsets = [0, 128], sizes = [8, 128], strides = [1, 1]} : vector<8x512xf32> to vector<8x128xf32>
    %154 = arith.negf %153 : vector<8x128xf32>
    %155 = math.exp %154 : vector<8x128xf32>
    %cst_42 = arith.constant 1.000000e+00 : f32
    %156 = vector.broadcast %cst_42 : f32 to vector<8x128xf32>
    %157 = arith.addf %156, %155 : vector<8x128xf32>
    %158 = arith.divf %156, %157 : vector<8x128xf32>
    %159 = vector.extract_strided_slice %146 {offsets = [0, 256], sizes = [8, 128], strides = [1, 1]} : vector<8x512xf32> to vector<8x128xf32>
    %160 = math.tanh %159 : vector<8x128xf32>
    %161 = vector.extract_strided_slice %146 {offsets = [0, 384], sizes = [8, 128], strides = [1, 1]} : vector<8x512xf32> to vector<8x128xf32>
    %162 = arith.negf %161 : vector<8x128xf32>
    %163 = math.exp %162 : vector<8x128xf32>
    %cst_43 = arith.constant 1.000000e+00 : f32
    %164 = vector.broadcast %cst_43 : f32 to vector<8x128xf32>
    %165 = arith.addf %164, %163 : vector<8x128xf32>
    %166 = arith.divf %164, %165 : vector<8x128xf32>
    %167 = arith.mulf %158, %135 : vector<8x128xf32>
    %168 = arith.mulf %152, %160 : vector<8x128xf32>
    %169 = arith.addf %167, %168 : vector<8x128xf32>
    %170 = math.tanh %169 : vector<8x128xf32>
    %171 = arith.mulf %166, %170 : vector<8x128xf32>
    %172 = arith.index_cast %c4_i32 : i32 to index
    %c0_44 = arith.constant 0 : index
    %c0_45 = arith.constant 0 : index
    %173 = vector.load %arg6[%172, %c0_44, %c0_45] : memref<8x8x128xf32, #tpu.memory_space<vmem>>, vector<1x8x128xf32>
    %174 = vector.shape_cast %173 : vector<1x8x128xf32> to vector<8x128xf32>
    %175 = vector.shape_cast %171 : vector<8x128xf32> to vector<1x8x128xf32>
    tpu.vector_store %arg6[%172, %c0_44, %c0_45], %175 {strides = array<i32>} : memref<8x8x128xf32, #tpu.memory_space<vmem>>, vector<1x8x128xf32>,
    %c5_i32 = arith.constant 5 : i32
    %176 = arith.index_cast %c5_i32 : i32 to index
    %c0_46 = arith.constant 0 : index
    %c0_47 = arith.constant 0 : index
    %177 = vector.load %arg2[%176, %c0_46, %c0_47] : memref<8x8x512xf32, #tpu.memory_space<vmem>>, vector<1x8x512xf32>
    %178 = vector.shape_cast %177 : vector<1x8x512xf32> to vector<8x512xf32>
    %cst_48 = arith.constant dense<0.000000e+00> : vector<8x512xf32>
    %179 = tpu.matmul %171, %3, %cst_48 {dimension_numbers = #tpu.dot_dimension_numbers<[1], [0], [0], [1], [0, 0, 1, 1], [], []>} : vector<8x128xf32>, vector<128x512xf32>, vector<8x512xf32> -> vector<8x512xf32>
    %180 = arith.addf %178, %179 : vector<8x512xf32>
    %181 = vector.extract_strided_slice %180 {offsets = [0, 0], sizes = [8, 128], strides = [1, 1]} : vector<8x512xf32> to vector<8x128xf32>
    %182 = arith.negf %181 : vector<8x128xf32>
    %183 = math.exp %182 : vector<8x128xf32>
    %cst_49 = arith.constant 1.000000e+00 : f32
    %184 = vector.broadcast %cst_49 : f32 to vector<8x128xf32>
    %185 = arith.addf %184, %183 : vector<8x128xf32>
    %186 = arith.divf %184, %185 : vector<8x128xf32>
    %187 = vector.extract_strided_slice %180 {offsets = [0, 128], sizes = [8, 128], strides = [1, 1]} : vector<8x512xf32> to vector<8x128xf32>
    %188 = arith.negf %187 : vector<8x128xf32>
    %189 = math.exp %188 : vector<8x128xf32>
    %cst_50 = arith.constant 1.000000e+00 : f32
    %190 = vector.broadcast %cst_50 : f32 to vector<8x128xf32>
    %191 = arith.addf %190, %189 : vector<8x128xf32>
    %192 = arith.divf %190, %191 : vector<8x128xf32>
    %193 = vector.extract_strided_slice %180 {offsets = [0, 256], sizes = [8, 128], strides = [1, 1]} : vector<8x512xf32> to vector<8x128xf32>
    %194 = math.tanh %193 : vector<8x128xf32>
    %195 = vector.extract_strided_slice %180 {offsets = [0, 384], sizes = [8, 128], strides = [1, 1]} : vector<8x512xf32> to vector<8x128xf32>
    %196 = arith.negf %195 : vector<8x128xf32>
    %197 = math.exp %196 : vector<8x128xf32>
    %cst_51 = arith.constant 1.000000e+00 : f32
    %198 = vector.broadcast %cst_51 : f32 to vector<8x128xf32>
    %199 = arith.addf %198, %197 : vector<8x128xf32>
    %200 = arith.divf %198, %199 : vector<8x128xf32>
    %201 = arith.mulf %192, %169 : vector<8x128xf32>
    %202 = arith.mulf %186, %194 : vector<8x128xf32>
    %203 = arith.addf %201, %202 : vector<8x128xf32>
    %204 = math.tanh %203 : vector<8x128xf32>
    %205 = arith.mulf %200, %204 : vector<8x128xf32>
    %206 = arith.index_cast %c5_i32 : i32 to index
    %c0_52 = arith.constant 0 : index
    %c0_53 = arith.constant 0 : index
    %207 = vector.load %arg6[%206, %c0_52, %c0_53] : memref<8x8x128xf32, #tpu.memory_space<vmem>>, vector<1x8x128xf32>
    %208 = vector.shape_cast %207 : vector<1x8x128xf32> to vector<8x128xf32>
    %209 = vector.shape_cast %205 : vector<8x128xf32> to vector<1x8x128xf32>
    tpu.vector_store %arg6[%206, %c0_52, %c0_53], %209 {strides = array<i32>} : memref<8x8x128xf32, #tpu.memory_space<vmem>>, vector<1x8x128xf32>,
    %c6_i32 = arith.constant 6 : i32
    %210 = arith.index_cast %c6_i32 : i32 to index
    %c0_54 = arith.constant 0 : index
    %c0_55 = arith.constant 0 : index
    %211 = vector.load %arg2[%210, %c0_54, %c0_55] : memref<8x8x512xf32, #tpu.memory_space<vmem>>, vector<1x8x512xf32>
    %212 = vector.shape_cast %211 : vector<1x8x512xf32> to vector<8x512xf32>
    %cst_56 = arith.constant dense<0.000000e+00> : vector<8x512xf32>
    %213 = tpu.matmul %205, %3, %cst_56 {dimension_numbers = #tpu.dot_dimension_numbers<[1], [0], [0], [1], [0, 0, 1, 1], [], []>} : vector<8x128xf32>, vector<128x512xf32>, vector<8x512xf32> -> vector<8x512xf32>
    %214 = arith.addf %212, %213 : vector<8x512xf32>
    %215 = vector.extract_strided_slice %214 {offsets = [0, 0], sizes = [8, 128], strides = [1, 1]} : vector<8x512xf32> to vector<8x128xf32>
    %216 = arith.negf %215 : vector<8x128xf32>
    %217 = math.exp %216 : vector<8x128xf32>
    %cst_57 = arith.constant 1.000000e+00 : f32
    %218 = vector.broadcast %cst_57 : f32 to vector<8x128xf32>
    %219 = arith.addf %218, %217 : vector<8x128xf32>
    %220 = arith.divf %218, %219 : vector<8x128xf32>
    %221 = vector.extract_strided_slice %214 {offsets = [0, 128], sizes = [8, 128], strides = [1, 1]} : vector<8x512xf32> to vector<8x128xf32>
    %222 = arith.negf %221 : vector<8x128xf32>
    %223 = math.exp %222 : vector<8x128xf32>
    %cst_58 = arith.constant 1.000000e+00 : f32
    %224 = vector.broadcast %cst_58 : f32 to vector<8x128xf32>
    %225 = arith.addf %224, %223 : vector<8x128xf32>
    %226 = arith.divf %224, %225 : vector<8x128xf32>
    %227 = vector.extract_strided_slice %214 {offsets = [0, 256], sizes = [8, 128], strides = [1, 1]} : vector<8x512xf32> to vector<8x128xf32>
    %228 = math.tanh %227 : vector<8x128xf32>
    %229 = vector.extract_strided_slice %214 {offsets = [0, 384], sizes = [8, 128], strides = [1, 1]} : vector<8x512xf32> to vector<8x128xf32>
    %230 = arith.negf %229 : vector<8x128xf32>
    %231 = math.exp %230 : vector<8x128xf32>
    %cst_59 = arith.constant 1.000000e+00 : f32
    %232 = vector.broadcast %cst_59 : f32 to vector<8x128xf32>
    %233 = arith.addf %232, %231 : vector<8x128xf32>
    %234 = arith.divf %232, %233 : vector<8x128xf32>
    %235 = arith.mulf %226, %203 : vector<8x128xf32>
    %236 = arith.mulf %220, %228 : vector<8x128xf32>
    %237 = arith.addf %235, %236 : vector<8x128xf32>
    %238 = math.tanh %237 : vector<8x128xf32>
    %239 = arith.mulf %234, %238 : vector<8x128xf32>
    %240 = arith.index_cast %c6_i32 : i32 to index
    %c0_60 = arith.constant 0 : index
    %c0_61 = arith.constant 0 : index
    %241 = vector.load %arg6[%240, %c0_60, %c0_61] : memref<8x8x128xf32, #tpu.memory_space<vmem>>, vector<1x8x128xf32>
    %242 = vector.shape_cast %241 : vector<1x8x128xf32> to vector<8x128xf32>
    %243 = vector.shape_cast %239 : vector<8x128xf32> to vector<1x8x128xf32>
    tpu.vector_store %arg6[%240, %c0_60, %c0_61], %243 {strides = array<i32>} : memref<8x8x128xf32, #tpu.memory_space<vmem>>, vector<1x8x128xf32>,
    %c7_i32 = arith.constant 7 : i32
    %244 = arith.index_cast %c7_i32 : i32 to index
    %c0_62 = arith.constant 0 : index
    %c0_63 = arith.constant 0 : index
    %245 = vector.load %arg2[%244, %c0_62, %c0_63] : memref<8x8x512xf32, #tpu.memory_space<vmem>>, vector<1x8x512xf32>
    %246 = vector.shape_cast %245 : vector<1x8x512xf32> to vector<8x512xf32>
    %cst_64 = arith.constant dense<0.000000e+00> : vector<8x512xf32>
    %247 = tpu.matmul %239, %3, %cst_64 {dimension_numbers = #tpu.dot_dimension_numbers<[1], [0], [0], [1], [0, 0, 1, 1], [], []>} : vector<8x128xf32>, vector<128x512xf32>, vector<8x512xf32> -> vector<8x512xf32>
    %248 = arith.addf %246, %247 : vector<8x512xf32>
    %249 = vector.extract_strided_slice %248 {offsets = [0, 0], sizes = [8, 128], strides = [1, 1]} : vector<8x512xf32> to vector<8x128xf32>
    %250 = arith.negf %249 : vector<8x128xf32>
    %251 = math.exp %250 : vector<8x128xf32>
    %cst_65 = arith.constant 1.000000e+00 : f32
    %252 = vector.broadcast %cst_65 : f32 to vector<8x128xf32>
    %253 = arith.addf %252, %251 : vector<8x128xf32>
    %254 = arith.divf %252, %253 : vector<8x128xf32>
    %255 = vector.extract_strided_slice %248 {offsets = [0, 128], sizes = [8, 128], strides = [1, 1]} : vector<8x512xf32> to vector<8x128xf32>
    %256 = arith.negf %255 : vector<8x128xf32>
    %257 = math.exp %256 : vector<8x128xf32>
    %cst_66 = arith.constant 1.000000e+00 : f32
    %258 = vector.broadcast %cst_66 : f32 to vector<8x128xf32>
    %259 = arith.addf %258, %257 : vector<8x128xf32>
    %260 = arith.divf %258, %259 : vector<8x128xf32>
    %261 = vector.extract_strided_slice %248 {offsets = [0, 256], sizes = [8, 128], strides = [1, 1]} : vector<8x512xf32> to vector<8x128xf32>
    %262 = math.tanh %261 : vector<8x128xf32>
    %263 = vector.extract_strided_slice %248 {offsets = [0, 384], sizes = [8, 128], strides = [1, 1]} : vector<8x512xf32> to vector<8x128xf32>
    %264 = arith.negf %263 : vector<8x128xf32>
    %265 = math.exp %264 : vector<8x128xf32>
    %cst_67 = arith.constant 1.000000e+00 : f32
    %266 = vector.broadcast %cst_67 : f32 to vector<8x128xf32>
    %267 = arith.addf %266, %265 : vector<8x128xf32>
    %268 = arith.divf %266, %267 : vector<8x128xf32>
    %269 = arith.mulf %260, %237 : vector<8x128xf32>
    %270 = arith.mulf %254, %262 : vector<8x128xf32>
    %271 = arith.addf %269, %270 : vector<8x128xf32>
    %272 = math.tanh %271 : vector<8x128xf32>
    %273 = arith.mulf %268, %272 : vector<8x128xf32>
    %274 = arith.index_cast %c7_i32 : i32 to index
    %c0_68 = arith.constant 0 : index
    %c0_69 = arith.constant 0 : index
    %275 = vector.load %arg6[%274, %c0_68, %c0_69] : memref<8x8x128xf32, #tpu.memory_space<vmem>>, vector<1x8x128xf32>
    %276 = vector.shape_cast %275 : vector<1x8x128xf32> to vector<8x128xf32>
    %277 = vector.shape_cast %273 : vector<8x128xf32> to vector<1x8x128xf32>
    tpu.vector_store %arg6[%274, %c0_68, %c0_69], %277 {strides = array<i32>} : memref<8x8x128xf32, #tpu.memory_space<vmem>>, vector<1x8x128xf32>,
    %c8_i32 = arith.constant 8 : i32
    %c0_70 = arith.constant 0 : index
    %c0_71 = arith.constant 0 : index
    %278 = vector.load %arg9[%c0_70, %c0_71] : memref<8x128xf32, #tpu.memory_space<vmem>>, vector<8x128xf32>
    tpu.vector_store %arg9[%c0_70, %c0_71], %273 {strides = array<i32>} : memref<8x128xf32, #tpu.memory_space<vmem>>, vector<8x128xf32>,
    %c0_72 = arith.constant 0 : index
    %c0_73 = arith.constant 0 : index
    %279 = vector.load %arg10[%c0_72, %c0_73] : memref<8x128xf32, #tpu.memory_space<vmem>>, vector<8x128xf32>
    tpu.vector_store %arg10[%c0_72, %c0_73], %271 {strides = array<i32>} : memref<8x128xf32, #tpu.memory_space<vmem>>, vector<8x128xf32>,
    %c0_i32_74 = arith.constant 0 : i32
    %280 = arith.cmpi eq, %arg1, %c0_i32_74 : i32
    %281 = arith.extui %280 : i1 to i32
    %c0_i32_75 = arith.constant 0 : i32
    %282 = arith.cmpi ne, %281, %c0_i32_75 : i32
    scf.if %282 {
      %c0_76 = arith.constant 0 : index
      %c0_77 = arith.constant 0 : index
      %283 = vector.load %arg7[%c0_76, %c0_77] : memref<8x128xf32, #tpu.memory_space<vmem>>, vector<8x128xf32>
      tpu.vector_store %arg7[%c0_76, %c0_77], %273 {strides = array<i32>} : memref<8x128xf32, #tpu.memory_space<vmem>>, vector<8x128xf32>,
      %c0_78 = arith.constant 0 : index
      %c0_79 = arith.constant 0 : index
      %284 = vector.load %arg8[%c0_78, %c0_79] : memref<8x128xf32, #tpu.memory_space<vmem>>, vector<8x128xf32>
      tpu.vector_store %arg8[%c0_78, %c0_79], %271 {strides = array<i32>} : memref<8x128xf32, #tpu.memory_space<vmem>>, vector<8x128xf32>,
    } else {
    }
    return
  }
  func.func @transform_0(%arg0: i32, %arg1: i32) -> (i32, i32, i32) {
    %c0_i32 = arith.constant 0 : i32
    %c0_i32_0 = arith.constant 0 : i32
    return %arg1, %arg0, %c0_i32 : i32, i32, i32
  }
  func.func @transform_1(%arg0: i32, %arg1: i32) -> (i32, i32) {
    %c0_i32 = arith.constant 0 : i32
    %c0_i32_0 = arith.constant 0 : i32
    %c0_i32_1 = arith.constant 0 : i32
    return %c0_i32, %c0_i32_0 : i32, i32
  }
  func.func @transform_2(%arg0: i32, %arg1: i32) -> (i32, i32) {
    %c0_i32 = arith.constant 0 : i32
    %c0_i32_0 = arith.constant 0 : i32
    return %arg0, %c0_i32 : i32, i32
  }
  func.func @transform_3(%arg0: i32, %arg1: i32) -> (i32, i32) {
    %c0_i32 = arith.constant 0 : i32
    %c0_i32_0 = arith.constant 0 : i32
    return %arg0, %c0_i32 : i32, i32
  }
  func.func @transform_4(%arg0: i32, %arg1: i32) -> (i32, i32, i32) {
    %c0_i32 = arith.constant 0 : i32
    %c0_i32_0 = arith.constant 0 : i32
    return %arg1, %arg0, %c0_i32 : i32, i32, i32
  }
  func.func @transform_5(%arg0: i32, %arg1: i32) -> (i32, i32) {
    %c0_i32 = arith.constant 0 : i32
    %c0_i32_0 = arith.constant 0 : i32
    return %arg0, %c0_i32 : i32, i32
  }
  func.func @transform_6(%arg0: i32, %arg1: i32) -> (i32, i32) {
    %c0_i32 = arith.constant 0 : i32
    %c0_i32_0 = arith.constant 0 : i32
    return %arg0, %c0_i32 : i32, i32
  }
}

</mosaic_0001>

<llo_original>
// kernel: rnn_model_forward.13
$region0: #{rnn_model_forward.13}
  #allocation0 [shape = 'u32[]', space=smem, size = 0x4, offset = 0x4, fixed_abs, tag = 'smem constant byte address 0x4 - core index']
  #allocation1 [shape = 'u32[144,128]{1,0:T(1,128)}', space=vmem, size = 0x12000, scoped, tag = 'internal scratch']
  #allocation2 [shape = 'f32[64,128]{1,0:T(8,128)}', space=vmem, size = 0x8000, scoped, tag = 'scratch operand']
  %s0 = inlined_call_operand.vmem [shape: f32[64,128], index: 0, kind: input, shape index: {}]
  %s1 = inlined_call_operand.vmem [shape: f32[128,128], index: 1, kind: input, shape index: {}]
  %s2 = inlined_call_operand.vmem [shape: f32[1,128], index: 2, kind: input, shape index: {}]
  %s3 = inlined_call_operand.vmem [shape: f32[64,128], index: 3, kind: output, shape index: {}]
  %s4 = sld [smem:[#allocation0]]
  $region30: #{rnn_model_forward.13} parent=0
    _
  %s6 = ssub.s32 1, %s4
  %s7 = scalar_select 0, %s6, %s4
  // Predicated region
  $region2: #{rnn_model_forward.13} parent=0 // pred_check
    _
  $region3: #{rnn_model_forward.13} parent=0 // pred_check_branch
    %9 = sbr.rel (0) target = $region5
  $region4: #{rnn_model_forward.13} parent=0 // pred_region
    _
  $region5: #{rnn_model_forward.13} parent=0 // pred_fallthru
    _
  // Predicated region
  $region6: #{rnn_model_forward.13} parent=0 // pred_check
    _
  $region7: #{rnn_model_forward.13} parent=0 // pred_check_branch
    %11 = sbr.rel (0) target = $region9
  $region8: #{rnn_model_forward.13} parent=0 // pred_region
    _
  $region9: #{rnn_model_forward.13} parent=0 // pred_fallthru
    _
  // Predicated region
  $region10: #{rnn_model_forward.13} parent=0 // pred_check
    _
  $region11: #{rnn_model_forward.13} parent=0 // pred_check_branch
    %13 = sbr.rel (0) target = $region13
  $region12: #{rnn_model_forward.13} parent=0 // pred_region
    _
  $region13: #{rnn_model_forward.13} parent=0 // pred_fallthru
    _
  %p14 = scmp.eq.s32.totalorder 0, 0
  // Predicated region
  $region14: #{rnn_model_forward.13} parent=0 // pred_check
    %p15 = pneg %p14
  $region15: #{rnn_model_forward.13} parent=0 // pred_check_branch
    %17 = sbr.rel (%p15) target = $region17
  $region16: #{rnn_model_forward.13} parent=0 // pred_region
    %18 = vst [vmem:[#allocation2] sm:$0xff] 0.0
    %19 = vst [vmem:[#allocation2 + $0x8] sm:$0xff] 0.0
    %20 = vst [vmem:[#allocation2 + $0x10] sm:$0xff] 0.0
    %21 = vst [vmem:[#allocation2 + $0x18] sm:$0xff] 0.0
    %22 = vst [vmem:[#allocation2 + $0x20] sm:$0xff] 0.0
    %23 = vst [vmem:[#allocation2 + $0x28] sm:$0xff] 0.0
    %24 = vst [vmem:[#allocation2 + $0x30] sm:$0xff] 0.0
    %25 = vst [vmem:[#allocation2 + $0x38] sm:$0xff] 0.0
  $region17: #{rnn_model_forward.13} parent=0 // pred_fallthru
    _
  %v26 = vld [vmem:[#allocation2] sm:$0xff]
  %v27 = vld [vmem:[#allocation2 + $0x8] sm:$0xff]
  %v28 = vld [vmem:[#allocation2 + $0x10] sm:$0xff]
  %v29 = vld [vmem:[#allocation2 + $0x18] sm:$0xff]
  %v30 = vld [vmem:[#allocation2 + $0x20] sm:$0xff]
  %v31 = vld [vmem:[#allocation2 + $0x28] sm:$0xff]
  %v32 = vld [vmem:[#allocation2 + $0x30] sm:$0xff]
  %v33 = vld [vmem:[#allocation2 + $0x38] sm:$0xff]
  %v34 = vld [vmem:[%s0] sm:$0xff]
  %v35 = vld [vmem:[%s0 + $0x8] sm:$0xff]
  %v36 = vld [vmem:[%s0 + $0x10] sm:$0xff]
  %v37 = vld [vmem:[%s0 + $0x18] sm:$0xff]
  %v38 = vld [vmem:[%s0 + $0x20] sm:$0xff]
  %v39 = vld [vmem:[%s0 + $0x28] sm:$0xff]
  %v40 = vld [vmem:[%s0 + $0x30] sm:$0xff]
  %v41 = vld [vmem:[%s0 + $0x38] sm:$0xff]
  %v42 = vld [vmem:[%s1] sm:$0xff]
  %v43 = vld [vmem:[%s1 + $0x8] sm:$0xff]
  %v44 = vld [vmem:[%s1 + $0x10] sm:$0xff]
  %v45 = vld [vmem:[%s1 + $0x18] sm:$0xff]
  %v46 = vld [vmem:[%s1 + $0x20] sm:$0xff]
  %v47 = vld [vmem:[%s1 + $0x28] sm:$0xff]
  %v48 = vld [vmem:[%s1 + $0x30] sm:$0xff]
  %v49 = vld [vmem:[%s1 + $0x38] sm:$0xff]
  %v50 = vld [vmem:[%s1 + $0x40] sm:$0xff]
  %v51 = vld [vmem:[%s1 + $0x48] sm:$0xff]
  %v52 = vld [vmem:[%s1 + $0x50] sm:$0xff]
  %v53 = vld [vmem:[%s1 + $0x58] sm:$0xff]
  %v54 = vld [vmem:[%s1 + $0x60] sm:$0xff]
  %v55 = vld [vmem:[%s1 + $0x68] sm:$0xff]
  %v56 = vld [vmem:[%s1 + $0x70] sm:$0xff]
  %v57 = vld [vmem:[%s1 + $0x78] sm:$0xff]
  %58 = vmatprep.subr.mxu0 0.0
  %59 = vmatpush1.msra.mxu0 %v42
  %60 = vmatprep.subr.mxu0 0.0
  %61 = vmatpush1.msra.mxu0 %v43
  %62 = vmatprep.subr.mxu0 0.0
  %63 = vmatpush1.msra.mxu0 %v44
  %64 = vmatprep.subr.mxu0 0.0
  %65 = vmatpush1.msra.mxu0 %v45
  %66 = vmatprep.subr.mxu0 0.0
  %67 = vmatpush1.msra.mxu0 %v46
  %68 = vmatprep.subr.mxu0 0.0
  %69 = vmatpush1.msra.mxu0 %v47
  %70 = vmatprep.subr.mxu0 0.0
  %71 = vmatpush1.msra.mxu0 %v48
  %72 = vmatprep.subr.mxu0 0.0
  %73 = vmatpush1.msra.mxu0 %v49
  %74 = vmatprep.subr.mxu0 0.0
  %75 = vmatpush1.msra.mxu0 %v50
  %76 = vmatprep.subr.mxu0 0.0
  %77 = vmatpush1.msra.mxu0 %v51
  %78 = vmatprep.subr.mxu0 0.0
  %79 = vmatpush1.msra.mxu0 %v52
  %80 = vmatprep.subr.mxu0 0.0
  %81 = vmatpush1.msra.mxu0 %v53
  %82 = vmatprep.subr.mxu0 0.0
  %83 = vmatpush1.msra.mxu0 %v54
  %84 = vmatprep.subr.mxu0 0.0
  %85 = vmatpush1.msra.mxu0 %v55
  %86 = vmatprep.subr.mxu0 0.0
  %87 = vmatpush1.msra.mxu0 %v56
  %88 = vmatprep.subr.mxu0 0.0
  %89 = vmatpush1.msra.mxu0 %v57
  %90 = vmatprep.subr.mxu0 0.0
  %91 = vmatpush1.msra.mxu0 0.0
  %92 = vmatprep.subr.mxu0 0.0
  %93 = vmatpush1.msra.mxu0 0.0
  %94 = vmatprep.subr.mxu0 0.0
  %95 = vmatpush1.msra.mxu0 0.0
  %96 = vmatprep.subr.mxu0 0.0
  %97 = vmatpush1.msra.mxu0 0.0
  %98 = vmatprep.subr.mxu0 0.0
  %99 = vmatpush1.msra.mxu0 0.0
  %100 = vmatprep.subr.mxu0 0.0
  %101 = vmatpush1.msra.mxu0 0.0
  %102 = vmatprep.subr.mxu0 0.0
  %103 = vmatpush1.msra.mxu0 0.0
  %104 = vmatprep.subr.mxu0 0.0
  %105 = vmatpush1.msra.mxu0 0.0
  %106 = vmatprep.subr.mxu0 0.0
  %107 = vmatpush1.msra.mxu0 0.0
  %108 = vmatprep.subr.mxu0 0.0
  %109 = vmatpush1.msra.mxu0 0.0
  %110 = vmatprep.subr.mxu0 0.0
  %111 = vmatpush1.msra.mxu0 0.0
  %112 = vmatprep.subr.mxu0 0.0
  %113 = vmatpush1.msra.mxu0 0.0
  %114 = vmatprep.subr.mxu0 0.0
  %115 = vmatpush1.msra.mxu0 0.0
  %116 = vmatprep.subr.mxu0 0.0
  %117 = vmatpush1.msra.mxu0 0.0
  %118 = vmatprep.subr.mxu0 0.0
  %119 = vmatpush1.msra.mxu0 0.0
  %120 = vmatprep.subr.mxu0 0.0
  %121 = vmatpush1.msra.mxu0 0.0
  %122 = vmatprep.mubr.f32.mxu0 0.0
  %123 = vmatmul.mubr.f32.gmra.mrb[0].mxu0 %v34
  %v124 = vpop.f32.mrb[0].mxu0
  %v125 = vadd.f32 0.0, %v124
  %v126 = vpop.f32.mrb[0].mxu0
  %127 = vmatprep.mubr.f32.mxu0 0.0
  %128 = vmatmul.mubr.f32.gmra.mrb[0].mxu0 %v35
  %v129 = vpop.f32.mrb[0].mxu0
  %v130 = vadd.f32 0.0, %v129
  %v131 = vpop.f32.mrb[0].mxu0
  %132 = vmatprep.mubr.f32.mxu0 0.0
  %133 = vmatmul.mubr.f32.gmra.mrb[0].mxu0 %v36
  %v134 = vpop.f32.mrb[0].mxu0
  %v135 = vadd.f32 0.0, %v134
  %v136 = vpop.f32.mrb[0].mxu0
  %137 = vmatprep.mubr.f32.mxu0 0.0
  %138 = vmatmul.mubr.f32.gmra.mrb[0].mxu0 %v37
  %v139 = vpop.f32.mrb[0].mxu0
  %v140 = vadd.f32 0.0, %v139
  %v141 = vpop.f32.mrb[0].mxu0
  %142 = vmatprep.mubr.f32.mxu0 0.0
  %143 = vmatmul.mubr.f32.gmra.mrb[0].mxu0 %v38
  %v144 = vpop.f32.mrb[0].mxu0
  %v145 = vadd.f32 0.0, %v144
  %v146 = vpop.f32.mrb[0].mxu0
  %147 = vmatprep.mubr.f32.mxu0 0.0
  %148 = vmatmul.mubr.f32.gmra.mrb[0].mxu0 %v39
  %v149 = vpop.f32.mrb[0].mxu0
  %v150 = vadd.f32 0.0, %v149
  %v151 = vpop.f32.mrb[0].mxu0
  %152 = vmatprep.mubr.f32.mxu0 0.0
  %153 = vmatmul.mubr.f32.gmra.mrb[0].mxu0 %v40
  %v154 = vpop.f32.mrb[0].mxu0
  %v155 = vadd.f32 0.0, %v154
  %v156 = vpop.f32.mrb[0].mxu0
  %157 = vmatprep.mubr.f32.mxu0 0.0
  %158 = vmatmul.mubr.f32.gmra.mrb[0].mxu0 %v41
  %v159 = vpop.f32.mrb[0].mxu0
  %v160 = vadd.f32 0.0, %v159
  %v161 = vpop.f32.mrb[0].mxu0
  %162 = vdwg.mxu0
  %v163 = vadd.f32 %v26, %v125
  %v164 = vadd.f32 %v27, %v130
  %v165 = vadd.f32 %v28, %v135
  %v166 = vadd.f32 %v29, %v140
  %v167 = vadd.f32 %v30, %v145
  %v168 = vadd.f32 %v31, %v150
  %v169 = vadd.f32 %v32, %v155
  %v170 = vadd.f32 %v33, %v160
  %171 = vst [vmem:[#allocation2] sm:$0xff] %v163
  %172 = vst [vmem:[#allocation2 + $0x8] sm:$0xff] %v164
  %173 = vst [vmem:[#allocation2 + $0x10] sm:$0xff] %v165
  %174 = vst [vmem:[#allocation2 + $0x18] sm:$0xff] %v166
  %175 = vst [vmem:[#allocation2 + $0x20] sm:$0xff] %v167
  %176 = vst [vmem:[#allocation2 + $0x28] sm:$0xff] %v168
  %177 = vst [vmem:[#allocation2 + $0x30] sm:$0xff] %v169
  %178 = vst [vmem:[#allocation2 + $0x38] sm:$0xff] %v170
  // Predicated region
  $region18: #{rnn_model_forward.13} parent=0 // pred_check
    %p179 = pneg %p14
  $region19: #{rnn_model_forward.13} parent=0 // pred_check_branch
    %181 = sbr.rel (%p179) target = $region21
  $region20: #{rnn_model_forward.13} parent=0 // pred_region
    %v182 = vld [vmem:[#allocation2] sm:$0xff]
    %v183 = vld [vmem:[#allocation2 + $0x8] sm:$0xff]
    %v184 = vld [vmem:[#allocation2 + $0x10] sm:$0xff]
    %v185 = vld [vmem:[#allocation2 + $0x18] sm:$0xff]
    %v186 = vld [vmem:[#allocation2 + $0x20] sm:$0xff]
    %v187 = vld [vmem:[#allocation2 + $0x28] sm:$0xff]
    %v188 = vld [vmem:[#allocation2 + $0x30] sm:$0xff]
    %v189 = vld [vmem:[#allocation2 + $0x38] sm:$0xff]
    %v190 = vld [vmem:[%s2] sm:$0x1]
    %v192 = vlaneseq
    %v193 = vshrl.u32 %v192, 7
    %v194 = vsub.s32 0, %v193
    %v195 = vrot.slane %v190, %v194
    %v197 = vadd.f32 %v182, %v195
    %v198 = vadd.f32 %v183, %v195
    %v199 = vadd.f32 %v184, %v195
    %v200 = vadd.f32 %v185, %v195
    %v201 = vadd.f32 %v186, %v195
    %v202 = vadd.f32 %v187, %v195
    %v203 = vadd.f32 %v188, %v195
    %v204 = vadd.f32 %v189, %v195
    %205 = vst [vmem:[%s3] sm:$0xff] %v197
    %206 = vst [vmem:[%s3 + $0x8] sm:$0xff] %v198
    %207 = vst [vmem:[%s3 + $0x10] sm:$0xff] %v199
    %208 = vst [vmem:[%s3 + $0x18] sm:$0xff] %v200
    %209 = vst [vmem:[%s3 + $0x20] sm:$0xff] %v201
    %210 = vst [vmem:[%s3 + $0x28] sm:$0xff] %v202
    %211 = vst [vmem:[%s3 + $0x30] sm:$0xff] %v203
    %212 = vst [vmem:[%s3 + $0x38] sm:$0xff] %v204
  $region21: #{rnn_model_forward.13} parent=0 // pred_fallthru
    _
  // Predicated region
  $region22: #{rnn_model_forward.13} parent=0 // pred_check
    _
  $region23: #{rnn_model_forward.13} parent=0 // pred_check_branch
    %214 = sbr.rel (0) target = $region25
  $region24: #{rnn_model_forward.13} parent=0 // pred_region
    _
  $region25: #{rnn_model_forward.13} parent=0 // pred_fallthru
    _
  // Predicated region
  $region26: #{rnn_model_forward.13} parent=0 // pred_check
    _
  $region27: #{rnn_model_forward.13} parent=0 // pred_check_branch
    %216 = sbr.rel (0) target = $region29
  $region28: #{rnn_model_forward.13} parent=0 // pred_region
    _
  $region29: #{rnn_model_forward.13} parent=0 // pred_fallthru
    _

// kernel: rnn_model_forward.7
$region0: #{rnn_model_forward.7}
  #allocation0 [shape = 'u32[]', space=smem, size = 0x4, offset = 0x4, fixed_abs, tag = 'smem constant byte address 0x4 - core index']
  #allocation1 [shape = 'u32[144,128]{1,0:T(1,128)}', space=vmem, size = 0x12000, scoped, tag = 'internal scratch']
  #allocation2 [shape = 'f32[64,512]{1,0:T(8,128)}', space=vmem, size = 0x20000, scoped, tag = 'scratch operand']
  %s0 = inlined_call_operand.vmem [shape: f32[64,128], index: 0, kind: input, shape index: {}]
  %s1 = inlined_call_operand.vmem [shape: f32[128,512], index: 1, kind: input, shape index: {}]
  %s2 = inlined_call_operand.vmem [shape: f32[1,512], index: 2, kind: input, shape index: {}]
  %s3 = inlined_call_operand.vmem [shape: f32[64,512], index: 3, kind: output, shape index: {}]
  %s4 = sld [smem:[#allocation0]]
  $region30: #{rnn_model_forward.7} parent=0
    _
  %s6 = ssub.s32 1, %s4
  %s7 = scalar_select 0, %s6, %s4
  // Predicated region
  $region2: #{rnn_model_forward.7} parent=0 // pred_check
    _
  $region3: #{rnn_model_forward.7} parent=0 // pred_check_branch
    %9 = sbr.rel (0) target = $region5
  $region4: #{rnn_model_forward.7} parent=0 // pred_region
    _
  $region5: #{rnn_model_forward.7} parent=0 // pred_fallthru
    _
  // Predicated region
  $region6: #{rnn_model_forward.7} parent=0 // pred_check
    _
  $region7: #{rnn_model_forward.7} parent=0 // pred_check_branch
    %11 = sbr.rel (0) target = $region9
  $region8: #{rnn_model_forward.7} parent=0 // pred_region
    _
  $region9: #{rnn_model_forward.7} parent=0 // pred_fallthru
    _
  // Predicated region
  $region10: #{rnn_model_forward.7} parent=0 // pred_check
    _
  $region11: #{rnn_model_forward.7} parent=0 // pred_check_branch
    %13 = sbr.rel (0) target = $region13
  $region12: #{rnn_model_forward.7} parent=0 // pred_region
    _
  $region13: #{rnn_model_forward.7} parent=0 // pred_fallthru
    _
  %p14 = scmp.eq.s32.totalorder 0, 0
  // Predicated region
  $region14: #{rnn_model_forward.7} parent=0 // pred_check
    %p15 = pneg %p14
  $region15: #{rnn_model_forward.7} parent=0 // pred_check_branch
    %17 = sbr.rel (%p15) target = $region17
  $region16: #{rnn_model_forward.7} parent=0 // pred_region
    %18 = vst [vmem:[#allocation2] sm:$0xff] 0.0
    %19 = vst [vmem:[#allocation2 + $0x8] sm:$0xff] 0.0
    %20 = vst [vmem:[#allocation2 + $0x10] sm:$0xff] 0.0
    %21 = vst [vmem:[#allocation2 + $0x18] sm:$0xff] 0.0
    %22 = vst [vmem:[#allocation2 + $0x20] sm:$0xff] 0.0
    %23 = vst [vmem:[#allocation2 + $0x28] sm:$0xff] 0.0
    %24 = vst [vmem:[#allocation2 + $0x30] sm:$0xff] 0.0
    %25 = vst [vmem:[#allocation2 + $0x38] sm:$0xff] 0.0
    %26 = vst [vmem:[#allocation2 + $0x40] sm:$0xff] 0.0
    %27 = vst [vmem:[#allocation2 + $0x48] sm:$0xff] 0.0
    %28 = vst [vmem:[#allocation2 + $0x50] sm:$0xff] 0.0
    %29 = vst [vmem:[#allocation2 + $0x58] sm:$0xff] 0.0
    %30 = vst [vmem:[#allocation2 + $0x60] sm:$0xff] 0.0
    %31 = vst [vmem:[#allocation2 + $0x68] sm:$0xff] 0.0
    %32 = vst [vmem:[#allocation2 + $0x70] sm:$0xff] 0.0
    %33 = vst [vmem:[#allocation2 + $0x78] sm:$0xff] 0.0
    %34 = vst [vmem:[#allocation2 + $0x80] sm:$0xff] 0.0
    %35 = vst [vmem:[#allocation2 + $0x88] sm:$0xff] 0.0
    %36 = vst [vmem:[#allocation2 + $0x90] sm:$0xff] 0.0
    %37 = vst [vmem:[#allocation2 + $0x98] sm:$0xff] 0.0
    %38 = vst [vmem:[#allocation2 + $0xa0] sm:$0xff] 0.0
    %39 = vst [vmem:[#allocation2 + $0xa8] sm:$0xff] 0.0
    %40 = vst [vmem:[#allocation2 + $0xb0] sm:$0xff] 0.0
    %41 = vst [vmem:[#allocation2 + $0xb8] sm:$0xff] 0.0
    %42 = vst [vmem:[#allocation2 + $0xc0] sm:$0xff] 0.0
    %43 = vst [vmem:[#allocation2 + $0xc8] sm:$0xff] 0.0
    %44 = vst [vmem:[#allocation2 + $0xd0] sm:$0xff] 0.0
    %45 = vst [vmem:[#allocation2 + $0xd8] sm:$0xff] 0.0
    %46 = vst [vmem:[#allocation2 + $0xe0] sm:$0xff] 0.0
    %47 = vst [vmem:[#allocation2 + $0xe8] sm:$0xff] 0.0
    %48 = vst [vmem:[#allocation2 + $0xf0] sm:$0xff] 0.0
    %49 = vst [vmem:[#allocation2 + $0xf8] sm:$0xff] 0.0
  $region17: #{rnn_model_forward.7} parent=0 // pred_fallthru
    _
  %v50 = vld [vmem:[#allocation2] sm:$0xff]
  %v51 = vld [vmem:[#allocation2 + $0x8] sm:$0xff]
  %v52 = vld [vmem:[#allocation2 + $0x10] sm:$0xff]
  %v53 = vld [vmem:[#allocation2 + $0x18] sm:$0xff]
  %v54 = vld [vmem:[#allocation2 + $0x20] sm:$0xff]
  %v55 = vld [vmem:[#allocation2 + $0x28] sm:$0xff]
  %v56 = vld [vmem:[#allocation2 + $0x30] sm:$0xff]
  %v57 = vld [vmem:[#allocation2 + $0x38] sm:$0xff]
  %v58 = vld [vmem:[#allocation2 + $0x40] sm:$0xff]
  %v59 = vld [vmem:[#allocation2 + $0x48] sm:$0xff]
  %v60 = vld [vmem:[#allocation2 + $0x50] sm:$0xff]
  %v61 = vld [vmem:[#allocation2 + $0x58] sm:$0xff]
  %v62 = vld [vmem:[#allocation2 + $0x60] sm:$0xff]
  %v63 = vld [vmem:[#allocation2 + $0x68] sm:$0xff]
  %v64 = vld [vmem:[#allocation2 + $0x70] sm:$0xff]
  %v65 = vld [vmem:[#allocation2 + $0x78] sm:$0xff]
  %v66 = vld [vmem:[#allocation2 + $0x80] sm:$0xff]
  %v67 = vld [vmem:[#allocation2 + $0x88] sm:$0xff]
  %v68 = vld [vmem:[#allocation2 + $0x90] sm:$0xff]
  %v69 = vld [vmem:[#allocation2 + $0x98] sm:$0xff]
  %v70 = vld [vmem:[#allocation2 + $0xa0] sm:$0xff]
  %v71 = vld [vmem:[#allocation2 + $0xa8] sm:$0xff]
  %v72 = vld [vmem:[#allocation2 + $0xb0] sm:$0xff]
  %v73 = vld [vmem:[#allocation2 + $0xb8] sm:$0xff]
  %v74 = vld [vmem:[#allocation2 + $0xc0] sm:$0xff]
  %v75 = vld [vmem:[#allocation2 + $0xc8] sm:$0xff]
  %v76 = vld [vmem:[#allocation2 + $0xd0] sm:$0xff]
  %v77 = vld [vmem:[#allocation2 + $0xd8] sm:$0xff]
  %v78 = vld [vmem:[#allocation2 + $0xe0] sm:$0xff]
  %v79 = vld [vmem:[#allocation2 + $0xe8] sm:$0xff]
  %v80 = vld [vmem:[#allocation2 + $0xf0] sm:$0xff]
  %v81 = vld [vmem:[#allocation2 + $0xf8] sm:$0xff]
  %v82 = vld [vmem:[%s0] sm:$0xff]
  %v83 = vld [vmem:[%s0 + $0x8] sm:$0xff]
  %v84 = vld [vmem:[%s0 + $0x10] sm:$0xff]
  %v85 = vld [vmem:[%s0 + $0x18] sm:$0xff]
  %v86 = vld [vmem:[%s0 + $0x20] sm:$0xff]
  %v87 = vld [vmem:[%s0 + $0x28] sm:$0xff]
  %v88 = vld [vmem:[%s0 + $0x30] sm:$0xff]
  %v89 = vld [vmem:[%s0 + $0x38] sm:$0xff]
  %v90 = vld [vmem:[%s1] sm:$0xff]
  %v91 = vld [vmem:[%s1 + $0x8] sm:$0xff]
  %v92 = vld [vmem:[%s1 + $0x10] sm:$0xff]
  %v93 = vld [vmem:[%s1 + $0x18] sm:$0xff]
  %v94 = vld [vmem:[%s1 + $0x20] sm:$0xff]
  %v95 = vld [vmem:[%s1 + $0x28] sm:$0xff]
  %v96 = vld [vmem:[%s1 + $0x30] sm:$0xff]
  %v97 = vld [vmem:[%s1 + $0x38] sm:$0xff]
  %v98 = vld [vmem:[%s1 + $0x40] sm:$0xff]
  %v99 = vld [vmem:[%s1 + $0x48] sm:$0xff]
  %v100 = vld [vmem:[%s1 + $0x50] sm:$0xff]
  %v101 = vld [vmem:[%s1 + $0x58] sm:$0xff]
  %v102 = vld [vmem:[%s1 + $0x60] sm:$0xff]
  %v103 = vld [vmem:[%s1 + $0x68] sm:$0xff]
  %v104 = vld [vmem:[%s1 + $0x70] sm:$0xff]
  %v105 = vld [vmem:[%s1 + $0x78] sm:$0xff]
  %v106 = vld [vmem:[%s1 + $0x80] sm:$0xff]
  %v107 = vld [vmem:[%s1 + $0x88] sm:$0xff]
  %v108 = vld [vmem:[%s1 + $0x90] sm:$0xff]
  %v109 = vld [vmem:[%s1 + $0x98] sm:$0xff]
  %v110 = vld [vmem:[%s1 + $0xa0] sm:$0xff]
  %v111 = vld [vmem:[%s1 + $0xa8] sm:$0xff]
  %v112 = vld [vmem:[%s1 + $0xb0] sm:$0xff]
  %v113 = vld [vmem:[%s1 + $0xb8] sm:$0xff]
  %v114 = vld [vmem:[%s1 + $0xc0] sm:$0xff]
  %v115 = vld [vmem:[%s1 + $0xc8] sm:$0xff]
  %v116 = vld [vmem:[%s1 + $0xd0] sm:$0xff]
  %v117 = vld [vmem:[%s1 + $0xd8] sm:$0xff]
  %v118 = vld [vmem:[%s1 + $0xe0] sm:$0xff]
  %v119 = vld [vmem:[%s1 + $0xe8] sm:$0xff]
  %v120 = vld [vmem:[%s1 + $0xf0] sm:$0xff]
  %v121 = vld [vmem:[%s1 + $0xf8] sm:$0xff]
  %v122 = vld [vmem:[%s1 + $0x100] sm:$0xff]
  %v123 = vld [vmem:[%s1 + $0x108] sm:$0xff]
  %v124 = vld [vmem:[%s1 + $0x110] sm:$0xff]
  %v125 = vld [vmem:[%s1 + $0x118] sm:$0xff]
  %v126 = vld [vmem:[%s1 + $0x120] sm:$0xff]
  %v127 = vld [vmem:[%s1 + $0x128] sm:$0xff]
  %v128 = vld [vmem:[%s1 + $0x130] sm:$0xff]
  %v129 = vld [vmem:[%s1 + $0x138] sm:$0xff]
  %v130 = vld [vmem:[%s1 + $0x140] sm:$0xff]
  %v131 = vld [vmem:[%s1 + $0x148] sm:$0xff]
  %v132 = vld [vmem:[%s1 + $0x150] sm:$0xff]
  %v133 = vld [vmem:[%s1 + $0x158] sm:$0xff]
  %v134 = vld [vmem:[%s1 + $0x160] sm:$0xff]
  %v135 = vld [vmem:[%s1 + $0x168] sm:$0xff]
  %v136 = vld [vmem:[%s1 + $0x170] sm:$0xff]
  %v137 = vld [vmem:[%s1 + $0x178] sm:$0xff]
  %v138 = vld [vmem:[%s1 + $0x180] sm:$0xff]
  %v139 = vld [vmem:[%s1 + $0x188] sm:$0xff]
  %v140 = vld [vmem:[%s1 + $0x190] sm:$0xff]
  %v141 = vld [vmem:[%s1 + $0x198] sm:$0xff]
  %v142 = vld [vmem:[%s1 + $0x1a0] sm:$0xff]
  %v143 = vld [vmem:[%s1 + $0x1a8] sm:$0xff]
  %v144 = vld [vmem:[%s1 + $0x1b0] sm:$0xff]
  %v145 = vld [vmem:[%s1 + $0x1b8] sm:$0xff]
  %v146 = vld [vmem:[%s1 + $0x1c0] sm:$0xff]
  %v147 = vld [vmem:[%s1 + $0x1c8] sm:$0xff]
  %v148 = vld [vmem:[%s1 + $0x1d0] sm:$0xff]
  %v149 = vld [vmem:[%s1 + $0x1d8] sm:$0xff]
  %v150 = vld [vmem:[%s1 + $0x1e0] sm:$0xff]
  %v151 = vld [vmem:[%s1 + $0x1e8] sm:$0xff]
  %v152 = vld [vmem:[%s1 + $0x1f0] sm:$0xff]
  %v153 = vld [vmem:[%s1 + $0x1f8] sm:$0xff]
  %154 = vmatprep.subr.mxu0 %v91
  %155 = vmatpush1.msra.mxu0 %v90
  %156 = vmatprep.subr.mxu0 %v95
  %157 = vmatpush1.msra.mxu0 %v94
  %158 = vmatprep.subr.mxu0 %v99
  %159 = vmatpush1.msra.mxu0 %v98
  %160 = vmatprep.subr.mxu0 %v103
  %161 = vmatpush1.msra.mxu0 %v102
  %162 = vmatprep.subr.mxu0 %v107
  %163 = vmatpush1.msra.mxu0 %v106
  %164 = vmatprep.subr.mxu0 %v111
  %165 = vmatpush1.msra.mxu0 %v110
  %166 = vmatprep.subr.mxu0 %v115
  %167 = vmatpush1.msra.mxu0 %v114
  %168 = vmatprep.subr.mxu0 %v119
  %169 = vmatpush1.msra.mxu0 %v118
  %170 = vmatprep.subr.mxu0 %v123
  %171 = vmatpush1.msra.mxu0 %v122
  %172 = vmatprep.subr.mxu0 %v127
  %173 = vmatpush1.msra.mxu0 %v126
  %174 = vmatprep.subr.mxu0 %v131
  %175 = vmatpush1.msra.mxu0 %v130
  %176 = vmatprep.subr.mxu0 %v135
  %177 = vmatpush1.msra.mxu0 %v134
  %178 = vmatprep.subr.mxu0 %v139
  %179 = vmatpush1.msra.mxu0 %v138
  %180 = vmatprep.subr.mxu0 %v143
  %181 = vmatpush1.msra.mxu0 %v142
  %182 = vmatprep.subr.mxu0 %v147
  %183 = vmatpush1.msra.mxu0 %v146
  %184 = vmatprep.subr.mxu0 %v151
  %185 = vmatpush1.msra.mxu0 %v150
  %186 = vmatprep.subr.mxu0 0.0
  %187 = vmatpush1.msra.mxu0 0.0
  %188 = vmatprep.subr.mxu0 0.0
  %189 = vmatpush1.msra.mxu0 0.0
  %190 = vmatprep.subr.mxu0 0.0
  %191 = vmatpush1.msra.mxu0 0.0
  %192 = vmatprep.subr.mxu0 0.0
  %193 = vmatpush1.msra.mxu0 0.0
  %194 = vmatprep.subr.mxu0 0.0
  %195 = vmatpush1.msra.mxu0 0.0
  %196 = vmatprep.subr.mxu0 0.0
  %197 = vmatpush1.msra.mxu0 0.0
  %198 = vmatprep.subr.mxu0 0.0
  %199 = vmatpush1.msra.mxu0 0.0
  %200 = vmatprep.subr.mxu0 0.0
  %201 = vmatpush1.msra.mxu0 0.0
  %202 = vmatprep.subr.mxu0 0.0
  %203 = vmatpush1.msra.mxu0 0.0
  %204 = vmatprep.subr.mxu0 0.0
  %205 = vmatpush1.msra.mxu0 0.0
  %206 = vmatprep.subr.mxu0 0.0
  %207 = vmatpush1.msra.mxu0 0.0
  %208 = vmatprep.subr.mxu0 0.0
  %209 = vmatpush1.msra.mxu0 0.0
  %210 = vmatprep.subr.mxu0 0.0
  %211 = vmatpush1.msra.mxu0 0.0
  %212 = vmatprep.subr.mxu0 0.0
  %213 = vmatpush1.msra.mxu0 0.0
  %214 = vmatprep.subr.mxu0 0.0
  %215 = vmatpush1.msra.mxu0 0.0
  %216 = vmatprep.subr.mxu0 0.0
  %217 = vmatpush1.msra.mxu0 0.0
  %218 = vmatprep.mubr.f32.mxu0 0.0
  %219 = vmatmul.mubr.f32.gmra.mrb[0].mxu0 %v82
  %v220 = vpop.f32.mrb[0].mxu0
  %v221 = vadd.f32 0.0, %v220
  %v222 = vpop.f32.mrb[0].mxu0
  %v223 = vadd.f32 0.0, %v222
  %224 = vmatprep.mubr.f32.mxu0 0.0
  %225 = vmatmul.mubr.f32.gmra.mrb[0].mxu0 %v83
  %v226 = vpop.f32.mrb[0].mxu0
  %v227 = vadd.f32 0.0, %v226
  %v228 = vpop.f32.mrb[0].mxu0
  %v229 = vadd.f32 0.0, %v228
  %230 = vmatprep.mubr.f32.mxu0 0.0
  %231 = vmatmul.mubr.f32.gmra.mrb[0].mxu0 %v84
  %v232 = vpop.f32.mrb[0].mxu0
  %v233 = vadd.f32 0.0, %v232
  %v234 = vpop.f32.mrb[0].mxu0
  %v235 = vadd.f32 0.0, %v234
  %236 = vmatprep.mubr.f32.mxu0 0.0
  %237 = vmatmul.mubr.f32.gmra.mrb[0].mxu0 %v85
  %v238 = vpop.f32.mrb[0].mxu0
  %v239 = vadd.f32 0.0, %v238
  %v240 = vpop.f32.mrb[0].mxu0
  %v241 = vadd.f32 0.0, %v240
  %242 = vmatprep.mubr.f32.mxu0 0.0
  %243 = vmatmul.mubr.f32.gmra.mrb[0].mxu0 %v86
  %v244 = vpop.f32.mrb[0].mxu0
  %v245 = vadd.f32 0.0, %v244
  %v246 = vpop.f32.mrb[0].mxu0
  %v247 = vadd.f32 0.0, %v246
  %248 = vmatprep.mubr.f32.mxu0 0.0
  %249 = vmatmul.mubr.f32.gmra.mrb[0].mxu0 %v87
  %v250 = vpop.f32.mrb[0].mxu0
  %v251 = vadd.f32 0.0, %v250
  %v252 = vpop.f32.mrb[0].mxu0
  %v253 = vadd.f32 0.0, %v252
  %254 = vmatprep.mubr.f32.mxu0 0.0
  %255 = vmatmul.mubr.f32.gmra.mrb[0].mxu0 %v88
  %v256 = vpop.f32.mrb[0].mxu0
  %v257 = vadd.f32 0.0, %v256
  %v258 = vpop.f32.mrb[0].mxu0
  %v259 = vadd.f32 0.0, %v258
  %260 = vmatprep.mubr.f32.mxu0 0.0
  %261 = vmatmul.mubr.f32.gmra.mrb[0].mxu0 %v89
  %v262 = vpop.f32.mrb[0].mxu0
  %v263 = vadd.f32 0.0, %v262
  %v264 = vpop.f32.mrb[0].mxu0
  %v265 = vadd.f32 0.0, %v264
  %266 = vdwg.mxu0
  %267 = vmatprep.subr.mxu0 %v93
  %268 = vmatpush1.msra.mxu0 %v92
  %269 = vmatprep.subr.mxu0 %v97
  %270 = vmatpush1.msra.mxu0 %v96
  %271 = vmatprep.subr.mxu0 %v101
  %272 = vmatpush1.msra.mxu0 %v100
  %273 = vmatprep.subr.mxu0 %v105
  %274 = vmatpush1.msra.mxu0 %v104
  %275 = vmatprep.subr.mxu0 %v109
  %276 = vmatpush1.msra.mxu0 %v108
  %277 = vmatprep.subr.mxu0 %v113
  %278 = vmatpush1.msra.mxu0 %v112
  %279 = vmatprep.subr.mxu0 %v117
  %280 = vmatpush1.msra.mxu0 %v116
  %281 = vmatprep.subr.mxu0 %v121
  %282 = vmatpush1.msra.mxu0 %v120
  %283 = vmatprep.subr.mxu0 %v125
  %284 = vmatpush1.msra.mxu0 %v124
  %285 = vmatprep.subr.mxu0 %v129
  %286 = vmatpush1.msra.mxu0 %v128
  %287 = vmatprep.subr.mxu0 %v133
  %288 = vmatpush1.msra.mxu0 %v132
  %289 = vmatprep.subr.mxu0 %v137
  %290 = vmatpush1.msra.mxu0 %v136
  %291 = vmatprep.subr.mxu0 %v141
  %292 = vmatpush1.msra.mxu0 %v140
  %293 = vmatprep.subr.mxu0 %v145
  %294 = vmatpush1.msra.mxu0 %v144
  %295 = vmatprep.subr.mxu0 %v149
  %296 = vmatpush1.msra.mxu0 %v148
  %297 = vmatprep.subr.mxu0 %v153
  %298 = vmatpush1.msra.mxu0 %v152
  %299 = vmatprep.subr.mxu0 0.0
  %300 = vmatpush1.msra.mxu0 0.0
  %301 = vmatprep.subr.mxu0 0.0
  %302 = vmatpush1.msra.mxu0 0.0
  %303 = vmatprep.subr.mxu0 0.0
  %304 = vmatpush1.msra.mxu0 0.0
  %305 = vmatprep.subr.mxu0 0.0
  %306 = vmatpush1.msra.mxu0 0.0
  %307 = vmatprep.subr.mxu0 0.0
  %308 = vmatpush1.msra.mxu0 0.0
  %309 = vmatprep.subr.mxu0 0.0
  %310 = vmatpush1.msra.mxu0 0.0
  %311 = vmatprep.subr.mxu0 0.0
  %312 = vmatpush1.msra.mxu0 0.0
  %313 = vmatprep.subr.mxu0 0.0
  %314 = vmatpush1.msra.mxu0 0.0
  %315 = vmatprep.subr.mxu0 0.0
  %316 = vmatpush1.msra.mxu0 0.0
  %317 = vmatprep.subr.mxu0 0.0
  %318 = vmatpush1.msra.mxu0 0.0
  %319 = vmatprep.subr.mxu0 0.0
  %320 = vmatpush1.msra.mxu0 0.0
  %321 = vmatprep.subr.mxu0 0.0
  %322 = vmatpush1.msra.mxu0 0.0
  %323 = vmatprep.subr.mxu0 0.0
  %324 = vmatpush1.msra.mxu0 0.0
  %325 = vmatprep.subr.mxu0 0.0
  %326 = vmatpush1.msra.mxu0 0.0
  %327 = vmatprep.subr.mxu0 0.0
  %328 = vmatpush1.msra.mxu0 0.0
  %329 = vmatprep.subr.mxu0 0.0
  %330 = vmatpush1.msra.mxu0 0.0
  %331 = vmatprep.mubr.f32.mxu0 0.0
  %332 = vmatmul.mubr.f32.gmra.mrb[0].mxu0 %v82
  %v333 = vpop.f32.mrb[0].mxu0
  %v334 = vadd.f32 0.0, %v333
  %v335 = vpop.f32.mrb[0].mxu0
  %v336 = vadd.f32 0.0, %v335
  %337 = vmatprep.mubr.f32.mxu0 0.0
  %338 = vmatmul.mubr.f32.gmra.mrb[0].mxu0 %v83
  %v339 = vpop.f32.mrb[0].mxu0
  %v340 = vadd.f32 0.0, %v339
  %v341 = vpop.f32.mrb[0].mxu0
  %v342 = vadd.f32 0.0, %v341
  %343 = vmatprep.mubr.f32.mxu0 0.0
  %344 = vmatmul.mubr.f32.gmra.mrb[0].mxu0 %v84
  %v345 = vpop.f32.mrb[0].mxu0
  %v346 = vadd.f32 0.0, %v345
  %v347 = vpop.f32.mrb[0].mxu0
  %v348 = vadd.f32 0.0, %v347
  %349 = vmatprep.mubr.f32.mxu0 0.0
  %350 = vmatmul.mubr.f32.gmra.mrb[0].mxu0 %v85
  %v351 = vpop.f32.mrb[0].mxu0
  %v352 = vadd.f32 0.0, %v351
  %v353 = vpop.f32.mrb[0].mxu0
  %v354 = vadd.f32 0.0, %v353
  %355 = vmatprep.mubr.f32.mxu0 0.0
  %356 = vmatmul.mubr.f32.gmra.mrb[0].mxu0 %v86
  %v357 = vpop.f32.mrb[0].mxu0
  %v358 = vadd.f32 0.0, %v357
  %v359 = vpop.f32.mrb[0].mxu0
  %v360 = vadd.f32 0.0, %v359
  %361 = vmatprep.mubr.f32.mxu0 0.0
  %362 = vmatmul.mubr.f32.gmra.mrb[0].mxu0 %v87
  %v363 = vpop.f32.mrb[0].mxu0
  %v364 = vadd.f32 0.0, %v363
  %v365 = vpop.f32.mrb[0].mxu0
  %v366 = vadd.f32 0.0, %v365
  %367 = vmatprep.mubr.f32.mxu0 0.0
  %368 = vmatmul.mubr.f32.gmra.mrb[0].mxu0 %v88
  %v369 = vpop.f32.mrb[0].mxu0
  %v370 = vadd.f32 0.0, %v369
  %v371 = vpop.f32.mrb[0].mxu0
  %v372 = vadd.f32 0.0, %v371
  %373 = vmatprep.mubr.f32.mxu0 0.0
  %374 = vmatmul.mubr.f32.gmra.mrb[0].mxu0 %v89
  %v375 = vpop.f32.mrb[0].mxu0
  %v376 = vadd.f32 0.0, %v375
  %v377 = vpop.f32.mrb[0].mxu0
  %v378 = vadd.f32 0.0, %v377
  %379 = vdwg.mxu0
  %v380 = vadd.f32 %v50, %v221
  %v381 = vadd.f32 %v51, %v223
  %v382 = vadd.f32 %v52, %v334
  %v383 = vadd.f32 %v53, %v336
  %v384 = vadd.f32 %v54, %v227
  %v385 = vadd.f32 %v55, %v229
  %v386 = vadd.f32 %v56, %v340
  %v387 = vadd.f32 %v57, %v342
  %v388 = vadd.f32 %v58, %v233
  %v389 = vadd.f32 %v59, %v235
  %v390 = vadd.f32 %v60, %v346
  %v391 = vadd.f32 %v61, %v348
  %v392 = vadd.f32 %v62, %v239
  %v393 = vadd.f32 %v63, %v241
  %v394 = vadd.f32 %v64, %v352
  %v395 = vadd.f32 %v65, %v354
  %v396 = vadd.f32 %v66, %v245
  %v397 = vadd.f32 %v67, %v247
  %v398 = vadd.f32 %v68, %v358
  %v399 = vadd.f32 %v69, %v360
  %v400 = vadd.f32 %v70, %v251
  %v401 = vadd.f32 %v71, %v253
  %v402 = vadd.f32 %v72, %v364
  %v403 = vadd.f32 %v73, %v366
  %v404 = vadd.f32 %v74, %v257
  %v405 = vadd.f32 %v75, %v259
  %v406 = vadd.f32 %v76, %v370
  %v407 = vadd.f32 %v77, %v372
  %v408 = vadd.f32 %v78, %v263
  %v409 = vadd.f32 %v79, %v265
  %v410 = vadd.f32 %v80, %v376
  %v411 = vadd.f32 %v81, %v378
  %412 = vst [vmem:[#allocation2] sm:$0xff] %v380
  %413 = vst [vmem:[#allocation2 + $0x8] sm:$0xff] %v381
  %414 = vst [vmem:[#allocation2 + $0x10] sm:$0xff] %v382
  %415 = vst [vmem:[#allocation2 + $0x18] sm:$0xff] %v383
  %416 = vst [vmem:[#allocation2 + $0x20] sm:$0xff] %v384
  %417 = vst [vmem:[#allocation2 + $0x28] sm:$0xff] %v385
  %418 = vst [vmem:[#allocation2 + $0x30] sm:$0xff] %v386
  %419 = vst [vmem:[#allocation2 + $0x38] sm:$0xff] %v387
  %420 = vst [vmem:[#allocation2 + $0x40] sm:$0xff] %v388
  %421 = vst [vmem:[#allocation2 + $0x48] sm:$0xff] %v389
  %422 = vst [vmem:[#allocation2 + $0x50] sm:$0xff] %v390
  %423 = vst [vmem:[#allocation2 + $0x58] sm:$0xff] %v391
  %424 = vst [vmem:[#allocation2 + $0x60] sm:$0xff] %v392
  %425 = vst [vmem:[#allocation2 + $0x68] sm:$0xff] %v393
  %426 = vst [vmem:[#allocation2 + $0x70] sm:$0xff] %v394
  %427 = vst [vmem:[#allocation2 + $0x78] sm:$0xff] %v395
  %428 = vst [vmem:[#allocation2 + $0x80] sm:$0xff] %v396
  %429 = vst [vmem:[#allocation2 + $0x88] sm:$0xff] %v397
  %430 = vst [vmem:[#allocation2 + $0x90] sm:$0xff] %v398
  %431 = vst [vmem:[#allocation2 + $0x98] sm:$0xff] %v399
  %432 = vst [vmem:[#allocation2 + $0xa0] sm:$0xff] %v400
  %433 = vst [vmem:[#allocation2 + $0xa8] sm:$0xff] %v401
  %434 = vst [vmem:[#allocation2 + $0xb0] sm:$0xff] %v402
  %435 = vst [vmem:[#allocation2 + $0xb8] sm:$0xff] %v403
  %436 = vst [vmem:[#allocation2 + $0xc0] sm:$0xff] %v404
  %437 = vst [vmem:[#allocation2 + $0xc8] sm:$0xff] %v405
  %438 = vst [vmem:[#allocation2 + $0xd0] sm:$0xff] %v406
  %439 = vst [vmem:[#allocation2 + $0xd8] sm:$0xff] %v407
  %440 = vst [vmem:[#allocation2 + $0xe0] sm:$0xff] %v408
  %441 = vst [vmem:[#allocation2 + $0xe8] sm:$0xff] %v409
  %442 = vst [vmem:[#allocation2 + $0xf0] sm:$0xff] %v410
  %443 = vst [vmem:[#allocation2 + $0xf8] sm:$0xff] %v411
  // Predicated region
  $region18: #{rnn_model_forward.7} parent=0 // pred_check
    %p444 = pneg %p14
  $region19: #{rnn_model_forward.7} parent=0 // pred_check_branch
    %446 = sbr.rel (%p444) target = $region21
  $region20: #{rnn_model_forward.7} parent=0 // pred_region
    %v447 = vld [vmem:[#allocation2] sm:$0xff]
    %v448 = vld [vmem:[#allocation2 + $0x8] sm:$0xff]
    %v449 = vld [vmem:[#allocation2 + $0x10] sm:$0xff]
    %v450 = vld [vmem:[#allocation2 + $0x18] sm:$0xff]
    %v451 = vld [vmem:[#allocation2 + $0x20] sm:$0xff]
    %v452 = vld [vmem:[#allocation2 + $0x28] sm:$0xff]
    %v453 = vld [vmem:[#allocation2 + $0x30] sm:$0xff]
    %v454 = vld [vmem:[#allocation2 + $0x38] sm:$0xff]
    %v455 = vld [vmem:[#allocation2 + $0x40] sm:$0xff]
    %v456 = vld [vmem:[#allocation2 + $0x48] sm:$0xff]
    %v457 = vld [vmem:[#allocation2 + $0x50] sm:$0xff]
    %v458 = vld [vmem:[#allocation2 + $0x58] sm:$0xff]
    %v459 = vld [vmem:[#allocation2 + $0x60] sm:$0xff]
    %v460 = vld [vmem:[#allocation2 + $0x68] sm:$0xff]
    %v461 = vld [vmem:[#allocation2 + $0x70] sm:$0xff]
    %v462 = vld [vmem:[#allocation2 + $0x78] sm:$0xff]
    %v463 = vld [vmem:[#allocation2 + $0x80] sm:$0xff]
    %v464 = vld [vmem:[#allocation2 + $0x88] sm:$0xff]
    %v465 = vld [vmem:[#allocation2 + $0x90] sm:$0xff]
    %v466 = vld [vmem:[#allocation2 + $0x98] sm:$0xff]
    %v467 = vld [vmem:[#allocation2 + $0xa0] sm:$0xff]
    %v468 = vld [vmem:[#allocation2 + $0xa8] sm:$0xff]
    %v469 = vld [vmem:[#allocation2 + $0xb0] sm:$0xff]
    %v470 = vld [vmem:[#allocation2 + $0xb8] sm:$0xff]
    %v471 = vld [vmem:[#allocation2 + $0xc0] sm:$0xff]
    %v472 = vld [vmem:[#allocation2 + $0xc8] sm:$0xff]
    %v473 = vld [vmem:[#allocation2 + $0xd0] sm:$0xff]
    %v474 = vld [vmem:[#allocation2 + $0xd8] sm:$0xff]
    %v475 = vld [vmem:[#allocation2 + $0xe0] sm:$0xff]
    %v476 = vld [vmem:[#allocation2 + $0xe8] sm:$0xff]
    %v477 = vld [vmem:[#allocation2 + $0xf0] sm:$0xff]
    %v478 = vld [vmem:[#allocation2 + $0xf8] sm:$0xff]
    %v479 = vld [vmem:[%s2] sm:$0xf]
    %v481 = vlaneseq
    %v482 = vshrl.u32 %v481, 7
    %v483 = vsub.s32 0, %v482
    %v484 = vrot.slane %v479, %v483
    %v485 = vlaneseq
    %v486 = vshrl.u32 %v485, 7
    %v487 = vsub.s32 1, %v486
    %v488 = vrot.slane %v479, %v487
    %v489 = vlaneseq
    %v490 = vshrl.u32 %v489, 7
    %v491 = vsub.s32 2, %v490
    %v492 = vrot.slane %v479, %v491
    %v493 = vlaneseq
    %v494 = vshrl.u32 %v493, 7
    %v495 = vsub.s32 3, %v494
    %v496 = vrot.slane %v479, %v495
    %v501 = vadd.f32 %v447, %v484
    %v502 = vadd.f32 %v448, %v488
    %v503 = vadd.f32 %v449, %v492
    %v504 = vadd.f32 %v450, %v496
    %v505 = vadd.f32 %v451, %v484
    %v506 = vadd.f32 %v452, %v488
    %v507 = vadd.f32 %v453, %v492
    %v508 = vadd.f32 %v454, %v496
    %v509 = vadd.f32 %v455, %v484
    %v510 = vadd.f32 %v456, %v488
    %v511 = vadd.f32 %v457, %v492
    %v512 = vadd.f32 %v458, %v496
    %v513 = vadd.f32 %v459, %v484
    %v514 = vadd.f32 %v460, %v488
    %v515 = vadd.f32 %v461, %v492
    %v516 = vadd.f32 %v462, %v496
    %v517 = vadd.f32 %v463, %v484
    %v518 = vadd.f32 %v464, %v488
    %v519 = vadd.f32 %v465, %v492
    %v520 = vadd.f32 %v466, %v496
    %v521 = vadd.f32 %v467, %v484
    %v522 = vadd.f32 %v468, %v488
    %v523 = vadd.f32 %v469, %v492
    %v524 = vadd.f32 %v470, %v496
    %v525 = vadd.f32 %v471, %v484
    %v526 = vadd.f32 %v472, %v488
    %v527 = vadd.f32 %v473, %v492
    %v528 = vadd.f32 %v474, %v496
    %v529 = vadd.f32 %v475, %v484
    %v530 = vadd.f32 %v476, %v488
    %v531 = vadd.f32 %v477, %v492
    %v532 = vadd.f32 %v478, %v496
    %533 = vst [vmem:[%s3] sm:$0xff] %v501
    %534 = vst [vmem:[%s3 + $0x8] sm:$0xff] %v502
    %535 = vst [vmem:[%s3 + $0x10] sm:$0xff] %v503
    %536 = vst [vmem:[%s3 + $0x18] sm:$0xff] %v504
    %537 = vst [vmem:[%s3 + $0x20] sm:$0xff] %v505
    %538 = vst [vmem:[%s3 + $0x28] sm:$0xff] %v506
    %539 = vst [vmem:[%s3 + $0x30] sm:$0xff] %v507
    %540 = vst [vmem:[%s3 + $0x38] sm:$0xff] %v508
    %541 = vst [vmem:[%s3 + $0x40] sm:$0xff] %v509
    %542 = vst [vmem:[%s3 + $0x48] sm:$0xff] %v510
    %543 = vst [vmem:[%s3 + $0x50] sm:$0xff] %v511
    %544 = vst [vmem:[%s3 + $0x58] sm:$0xff] %v512
    %545 = vst [vmem:[%s3 + $0x60] sm:$0xff] %v513
    %546 = vst [vmem:[%s3 + $0x68] sm:$0xff] %v514
    %547 = vst [vmem:[%s3 + $0x70] sm:$0xff] %v515
    %548 = vst [vmem:[%s3 + $0x78] sm:$0xff] %v516
    %549 = vst [vmem:[%s3 + $0x80] sm:$0xff] %v517
    %550 = vst [vmem:[%s3 + $0x88] sm:$0xff] %v518
    %551 = vst [vmem:[%s3 + $0x90] sm:$0xff] %v519
    %552 = vst [vmem:[%s3 + $0x98] sm:$0xff] %v520
    %553 = vst [vmem:[%s3 + $0xa0] sm:$0xff] %v521
    %554 = vst [vmem:[%s3 + $0xa8] sm:$0xff] %v522
    %555 = vst [vmem:[%s3 + $0xb0] sm:$0xff] %v523
    %556 = vst [vmem:[%s3 + $0xb8] sm:$0xff] %v524
    %557 = vst [vmem:[%s3 + $0xc0] sm:$0xff] %v525
    %558 = vst [vmem:[%s3 + $0xc8] sm:$0xff] %v526
    %559 = vst [vmem:[%s3 + $0xd0] sm:$0xff] %v527
    %560 = vst [vmem:[%s3 + $0xd8] sm:$0xff] %v528
    %561 = vst [vmem:[%s3 + $0xe0] sm:$0xff] %v529
    %562 = vst [vmem:[%s3 + $0xe8] sm:$0xff] %v530
    %563 = vst [vmem:[%s3 + $0xf0] sm:$0xff] %v531
    %564 = vst [vmem:[%s3 + $0xf8] sm:$0xff] %v532
  $region21: #{rnn_model_forward.7} parent=0 // pred_fallthru
    _
  // Predicated region
  $region22: #{rnn_model_forward.7} parent=0 // pred_check
    _
  $region23: #{rnn_model_forward.7} parent=0 // pred_check_branch
    %566 = sbr.rel (0) target = $region25
  $region24: #{rnn_model_forward.7} parent=0 // pred_region
    _
  $region25: #{rnn_model_forward.7} parent=0 // pred_fallthru
    _
  // Predicated region
  $region26: #{rnn_model_forward.7} parent=0 // pred_check
    _
  $region27: #{rnn_model_forward.7} parent=0 // pred_check_branch
    %568 = sbr.rel (0) target = $region29
  $region28: #{rnn_model_forward.7} parent=0 // pred_region
    _
  $region29: #{rnn_model_forward.7} parent=0 // pred_fallthru
    _

// kernel: rnn_model_forward.8
$region0: #{rnn_model_forward.8}
  #allocation0 [shape = 'u32[]', space=smem, size = 0x4, offset = 0x4, fixed_abs, tag = 'smem constant byte address 0x4 - core index']
  #allocation1 [shape = 'u32[144,128]{1,0:T(1,128)}', space=vmem, size = 0x12000, scoped, tag = 'internal scratch']
  #allocation2 [shape = 'f32[8,128]{1,0:T(8,128)}', space=vmem, size = 0x1000, scoped, tag = 'scratch operand']
  #allocation3 [shape = 'f32[8,128]{1,0:T(8,128)}', space=vmem, size = 0x1000, scoped, tag = 'scratch operand']
  %s0 = inlined_call_operand.vmem [shape: f32[8,8,512], index: 0, kind: input, shape index: {}]
  %s1 = inlined_call_operand.vmem [shape: f32[128,512], index: 1, kind: input, shape index: {}]
  %s2 = inlined_call_operand.vmem [shape: f32[8,128], index: 2, kind: input, shape index: {}]
  %s3 = inlined_call_operand.vmem [shape: f32[8,128], index: 3, kind: input, shape index: {}]
  %s4 = inlined_call_operand.vmem [shape: f32[8,8,128], index: 4, kind: output, shape index: {0}]
  %s5 = inlined_call_operand.vmem [shape: f32[8,128], index: 5, kind: output, shape index: {1}]
  %s6 = inlined_call_operand.vmem [shape: f32[8,128], index: 6, kind: output, shape index: {2}]
  %7 = xla_tuple %s4, %s5, %s6
  %s8 = sld [smem:[#allocation0]]
  $region50: #{rnn_model_forward.8} parent=0
    _
  %s10 = ssub.s32 1, %s8
  %s11 = scalar_select 0, %s10, %s8
  // Predicated region
  $region2: #{rnn_model_forward.8} parent=0 // pred_check
    _
  $region3: #{rnn_model_forward.8} parent=0 // pred_check_branch
    %13 = sbr.rel (0) target = $region5
  $region4: #{rnn_model_forward.8} parent=0 // pred_region
    _
  $region5: #{rnn_model_forward.8} parent=0 // pred_fallthru
    _
  // Predicated region
  $region6: #{rnn_model_forward.8} parent=0 // pred_check
    _
  $region7: #{rnn_model_forward.8} parent=0 // pred_check_branch
    %15 = sbr.rel (0) target = $region9
  $region8: #{rnn_model_forward.8} parent=0 // pred_region
    _
  $region9: #{rnn_model_forward.8} parent=0 // pred_fallthru
    _
  // Predicated region
  $region10: #{rnn_model_forward.8} parent=0 // pred_check
    _
  $region11: #{rnn_model_forward.8} parent=0 // pred_check_branch
    %17 = sbr.rel (0) target = $region13
  $region12: #{rnn_model_forward.8} parent=0 // pred_region
    _
  $region13: #{rnn_model_forward.8} parent=0 // pred_fallthru
    _
  // Predicated region
  $region14: #{rnn_model_forward.8} parent=0 // pred_check
    _
  $region15: #{rnn_model_forward.8} parent=0 // pred_check_branch
    %19 = sbr.rel (0) target = $region17
  $region16: #{rnn_model_forward.8} parent=0 // pred_region
    _
  $region17: #{rnn_model_forward.8} parent=0 // pred_fallthru
    _
  %p20 = scmp.eq.s32.totalorder 0, 0
  // Predicated region
  $region18: #{rnn_model_forward.8} parent=0 // pred_check
    %p21 = pneg %p20
  $region19: #{rnn_model_forward.8} parent=0 // pred_check_branch
    %23 = sbr.rel (%p21) target = $region21
  $region20: #{rnn_model_forward.8} parent=0 // pred_region
    %v24 = vld [vmem:[%s2] sm:$0xff]
    %25 = vst [vmem:[#allocation2] sm:$0xff] %v24
    %v26 = vld [vmem:[%s3] sm:$0xff]
    %27 = vst [vmem:[#allocation3] sm:$0xff] %v26
  $region21: #{rnn_model_forward.8} parent=0 // pred_fallthru
    _
  %v28 = vld [vmem:[%s1] sm:$0xff]
  %v29 = vld [vmem:[%s1 + $0x8] sm:$0xff]
  %v30 = vld [vmem:[%s1 + $0x10] sm:$0xff]
  %v31 = vld [vmem:[%s1 + $0x18] sm:$0xff]
  %v32 = vld [vmem:[%s1 + $0x20] sm:$0xff]
  %v33 = vld [vmem:[%s1 + $0x28] sm:$0xff]
  %v34 = vld [vmem:[%s1 + $0x30] sm:$0xff]
  %v35 = vld [vmem:[%s1 + $0x38] sm:$0xff]
  %v36 = vld [vmem:[%s1 + $0x40] sm:$0xff]
  %v37 = vld [vmem:[%s1 + $0x48] sm:$0xff]
  %v38 = vld [vmem:[%s1 + $0x50] sm:$0xff]
  %v39 = vld [vmem:[%s1 + $0x58] sm:$0xff]
  %v40 = vld [vmem:[%s1 + $0x60] sm:$0xff]
  %v41 = vld [vmem:[%s1 + $0x68] sm:$0xff]
  %v42 = vld [vmem:[%s1 + $0x70] sm:$0xff]
  %v43 = vld [vmem:[%s1 + $0x78] sm:$0xff]
  %v44 = vld [vmem:[%s1 + $0x80] sm:$0xff]
  %v45 = vld [vmem:[%s1 + $0x88] sm:$0xff]
  %v46 = vld [vmem:[%s1 + $0x90] sm:$0xff]
  %v47 = vld [vmem:[%s1 + $0x98] sm:$0xff]
  %v48 = vld [vmem:[%s1 + $0xa0] sm:$0xff]
  %v49 = vld [vmem:[%s1 + $0xa8] sm:$0xff]
  %v50 = vld [vmem:[%s1 + $0xb0] sm:$0xff]
  %v51 = vld [vmem:[%s1 + $0xb8] sm:$0xff]
  %v52 = vld [vmem:[%s1 + $0xc0] sm:$0xff]
  %v53 = vld [vmem:[%s1 + $0xc8] sm:$0xff]
  %v54 = vld [vmem:[%s1 + $0xd0] sm:$0xff]
  %v55 = vld [vmem:[%s1 + $0xd8] sm:$0xff]
  %v56 = vld [vmem:[%s1 + $0xe0] sm:$0xff]
  %v57 = vld [vmem:[%s1 + $0xe8] sm:$0xff]
  %v58 = vld [vmem:[%s1 + $0xf0] sm:$0xff]
  %v59 = vld [vmem:[%s1 + $0xf8] sm:$0xff]
  %v60 = vld [vmem:[%s1 + $0x100] sm:$0xff]
  %v61 = vld [vmem:[%s1 + $0x108] sm:$0xff]
  %v62 = vld [vmem:[%s1 + $0x110] sm:$0xff]
  %v63 = vld [vmem:[%s1 + $0x118] sm:$0xff]
  %v64 = vld [vmem:[%s1 + $0x120] sm:$0xff]
  %v65 = vld [vmem:[%s1 + $0x128] sm:$0xff]
  %v66 = vld [vmem:[%s1 + $0x130] sm:$0xff]
  %v67 = vld [vmem:[%s1 + $0x138] sm:$0xff]
  %v68 = vld [vmem:[%s1 + $0x140] sm:$0xff]
  %v69 = vld [vmem:[%s1 + $0x148] sm:$0xff]
  %v70 = vld [vmem:[%s1 + $0x150] sm:$0xff]
  %v71 = vld [vmem:[%s1 + $0x158] sm:$0xff]
  %v72 = vld [vmem:[%s1 + $0x160] sm:$0xff]
  %v73 = vld [vmem:[%s1 + $0x168] sm:$0xff]
  %v74 = vld [vmem:[%s1 + $0x170] sm:$0xff]
  %v75 = vld [vmem:[%s1 + $0x178] sm:$0xff]
  %v76 = vld [vmem:[%s1 + $0x180] sm:$0xff]
  %v77 = vld [vmem:[%s1 + $0x188] sm:$0xff]
  %v78 = vld [vmem:[%s1 + $0x190] sm:$0xff]
  %v79 = vld [vmem:[%s1 + $0x198] sm:$0xff]
  %v80 = vld [vmem:[%s1 + $0x1a0] sm:$0xff]
  %v81 = vld [vmem:[%s1 + $0x1a8] sm:$0xff]
  %v82 = vld [vmem:[%s1 + $0x1b0] sm:$0xff]
  %v83 = vld [vmem:[%s1 + $0x1b8] sm:$0xff]
  %v84 = vld [vmem:[%s1 + $0x1c0] sm:$0xff]
  %v85 = vld [vmem:[%s1 + $0x1c8] sm:$0xff]
  %v86 = vld [vmem:[%s1 + $0x1d0] sm:$0xff]
  %v87 = vld [vmem:[%s1 + $0x1d8] sm:$0xff]
  %v88 = vld [vmem:[%s1 + $0x1e0] sm:$0xff]
  %v89 = vld [vmem:[%s1 + $0x1e8] sm:$0xff]
  %v90 = vld [vmem:[%s1 + $0x1f0] sm:$0xff]
  %v91 = vld [vmem:[%s1 + $0x1f8] sm:$0xff]
  %v92 = vld [vmem:[#allocation2] sm:$0xff]
  %v93 = vld [vmem:[#allocation3] sm:$0xff]
  %v94 = vld [vmem:[%s0] sm:$0xff]
  %v95 = vld [vmem:[%s0 + $0x8] sm:$0xff]
  %v96 = vld [vmem:[%s0 + $0x10] sm:$0xff]
  %v97 = vld [vmem:[%s0 + $0x18] sm:$0xff]
  %98 = vmatprep.subr.mxu0 %v29
  %99 = vmatpush1.msra.mxu0 %v28
  %100 = vmatprep.subr.mxu0 %v33
  %101 = vmatpush1.msra.mxu0 %v32
  %102 = vmatprep.subr.mxu0 %v37
  %103 = vmatpush1.msra.mxu0 %v36
  %104 = vmatprep.subr.mxu0 %v41
  %105 = vmatpush1.msra.mxu0 %v40
  %106 = vmatprep.subr.mxu0 %v45
  %107 = vmatpush1.msra.mxu0 %v44
  %108 = vmatprep.subr.mxu0 %v49
  %109 = vmatpush1.msra.mxu0 %v48
  %110 = vmatprep.subr.mxu0 %v53
  %111 = vmatpush1.msra.mxu0 %v52
  %112 = vmatprep.subr.mxu0 %v57
  %113 = vmatpush1.msra.mxu0 %v56
  %114 = vmatprep.subr.mxu0 %v61
  %115 = vmatpush1.msra.mxu0 %v60
  %116 = vmatprep.subr.mxu0 %v65
  %117 = vmatpush1.msra.mxu0 %v64
  %118 = vmatprep.subr.mxu0 %v69
  %119 = vmatpush1.msra.mxu0 %v68
  %120 = vmatprep.subr.mxu0 %v73
  %121 = vmatpush1.msra.mxu0 %v72
  %122 = vmatprep.subr.mxu0 %v77
  %123 = vmatpush1.msra.mxu0 %v76
  %124 = vmatprep.subr.mxu0 %v81
  %125 = vmatpush1.msra.mxu0 %v80
  %126 = vmatprep.subr.mxu0 %v85
  %127 = vmatpush1.msra.mxu0 %v84
  %128 = vmatprep.subr.mxu0 %v89
  %129 = vmatpush1.msra.mxu0 %v88
  %130 = vmatprep.subr.mxu0 0.0
  %131 = vmatpush1.msra.mxu0 0.0
  %132 = vmatprep.subr.mxu0 0.0
  %133 = vmatpush1.msra.mxu0 0.0
  %134 = vmatprep.subr.mxu0 0.0
  %135 = vmatpush1.msra.mxu0 0.0
  %136 = vmatprep.subr.mxu0 0.0
  %137 = vmatpush1.msra.mxu0 0.0
  %138 = vmatprep.subr.mxu0 0.0
  %139 = vmatpush1.msra.mxu0 0.0
  %140 = vmatprep.subr.mxu0 0.0
  %141 = vmatpush1.msra.mxu0 0.0
  %142 = vmatprep.subr.mxu0 0.0
  %143 = vmatpush1.msra.mxu0 0.0
  %144 = vmatprep.subr.mxu0 0.0
  %145 = vmatpush1.msra.mxu0 0.0
  %146 = vmatprep.subr.mxu0 0.0
  %147 = vmatpush1.msra.mxu0 0.0
  %148 = vmatprep.subr.mxu0 0.0
  %149 = vmatpush1.msra.mxu0 0.0
  %150 = vmatprep.subr.mxu0 0.0
  %151 = vmatpush1.msra.mxu0 0.0
  %152 = vmatprep.subr.mxu0 0.0
  %153 = vmatpush1.msra.mxu0 0.0
  %154 = vmatprep.subr.mxu0 0.0
  %155 = vmatpush1.msra.mxu0 0.0
  %156 = vmatprep.subr.mxu0 0.0
  %157 = vmatpush1.msra.mxu0 0.0
  %158 = vmatprep.subr.mxu0 0.0
  %159 = vmatpush1.msra.mxu0 0.0
  %160 = vmatprep.subr.mxu0 0.0
  %161 = vmatpush1.msra.mxu0 0.0
  %162 = vmatprep.mubr.f32.mxu0 0.0
  %163 = vmatmul.mubr.f32.gmra.mrb[0].mxu0 %v92
  %v164 = vpop.f32.mrb[0].mxu0
  %v165 = vadd.f32 0.0, %v164
  %v166 = vpop.f32.mrb[0].mxu0
  %v167 = vadd.f32 0.0, %v166
  %168 = vdwg.mxu0
  %169 = vmatprep.subr.mxu0 %v31
  %170 = vmatpush1.msra.mxu0 %v30
  %171 = vmatprep.subr.mxu0 %v35
  %172 = vmatpush1.msra.mxu0 %v34
  %173 = vmatprep.subr.mxu0 %v39
  %174 = vmatpush1.msra.mxu0 %v38
  %175 = vmatprep.subr.mxu0 %v43
  %176 = vmatpush1.msra.mxu0 %v42
  %177 = vmatprep.subr.mxu0 %v47
  %178 = vmatpush1.msra.mxu0 %v46
  %179 = vmatprep.subr.mxu0 %v51
  %180 = vmatpush1.msra.mxu0 %v50
  %181 = vmatprep.subr.mxu0 %v55
  %182 = vmatpush1.msra.mxu0 %v54
  %183 = vmatprep.subr.mxu0 %v59
  %184 = vmatpush1.msra.mxu0 %v58
  %185 = vmatprep.subr.mxu0 %v63
  %186 = vmatpush1.msra.mxu0 %v62
  %187 = vmatprep.subr.mxu0 %v67
  %188 = vmatpush1.msra.mxu0 %v66
  %189 = vmatprep.subr.mxu0 %v71
  %190 = vmatpush1.msra.mxu0 %v70
  %191 = vmatprep.subr.mxu0 %v75
  %192 = vmatpush1.msra.mxu0 %v74
  %193 = vmatprep.subr.mxu0 %v79
  %194 = vmatpush1.msra.mxu0 %v78
  %195 = vmatprep.subr.mxu0 %v83
  %196 = vmatpush1.msra.mxu0 %v82
  %197 = vmatprep.subr.mxu0 %v87
  %198 = vmatpush1.msra.mxu0 %v86
  %199 = vmatprep.subr.mxu0 %v91
  %200 = vmatpush1.msra.mxu0 %v90
  %201 = vmatprep.subr.mxu0 0.0
  %202 = vmatpush1.msra.mxu0 0.0
  %203 = vmatprep.subr.mxu0 0.0
  %204 = vmatpush1.msra.mxu0 0.0
  %205 = vmatprep.subr.mxu0 0.0
  %206 = vmatpush1.msra.mxu0 0.0
  %207 = vmatprep.subr.mxu0 0.0
  %208 = vmatpush1.msra.mxu0 0.0
  %209 = vmatprep.subr.mxu0 0.0
  %210 = vmatpush1.msra.mxu0 0.0
  %211 = vmatprep.subr.mxu0 0.0
  %212 = vmatpush1.msra.mxu0 0.0
  %213 = vmatprep.subr.mxu0 0.0
  %214 = vmatpush1.msra.mxu0 0.0
  %215 = vmatprep.subr.mxu0 0.0
  %216 = vmatpush1.msra.mxu0 0.0
  %217 = vmatprep.subr.mxu0 0.0
  %218 = vmatpush1.msra.mxu0 0.0
  %219 = vmatprep.subr.mxu0 0.0
  %220 = vmatpush1.msra.mxu0 0.0
  %221 = vmatprep.subr.mxu0 0.0
  %222 = vmatpush1.msra.mxu0 0.0
  %223 = vmatprep.subr.mxu0 0.0
  %224 = vmatpush1.msra.mxu0 0.0
  %225 = vmatprep.subr.mxu0 0.0
  %226 = vmatpush1.msra.mxu0 0.0
  %227 = vmatprep.subr.mxu0 0.0
  %228 = vmatpush1.msra.mxu0 0.0
  %229 = vmatprep.subr.mxu0 0.0
  %230 = vmatpush1.msra.mxu0 0.0
  %231 = vmatprep.subr.mxu0 0.0
  %232 = vmatpush1.msra.mxu0 0.0
  %233 = vmatprep.mubr.f32.mxu0 0.0
  %234 = vmatmul.mubr.f32.gmra.mrb[0].mxu0 %v92
  %v235 = vpop.f32.mrb[0].mxu0
  %v236 = vadd.f32 0.0, %v235
  %v237 = vpop.f32.mrb[0].mxu0
  %v238 = vadd.f32 0.0, %v237
  %239 = vdwg.mxu0
  %v240 = vadd.f32 %v94, %v165
  %v241 = vadd.f32 %v95, %v167
  %v242 = vadd.f32 %v96, %v236
  %v243 = vadd.f32 %v97, %v238
  %v244 = vxor.u32 %v240, 2147483648
  %v245 = vmul.f32 %v244, 1.442695
  %v246 = vpow.pop %v245
  %v247 = vadd.f32 %v246, 1.0
  %v248 = vrcp.pop %v247
  %v249 = vmul.f32 1.0, %v248
  %v250 = vxor.u32 %v241, 2147483648
  %v251 = vmul.f32 %v250, 1.442695
  %v252 = vpow.pop %v251
  %v253 = vadd.f32 %v252, 1.0
  %v254 = vrcp.pop %v253
  %v255 = vmul.f32 1.0, %v254
  %v256 = vtanh.pop %v242
  %v257 = vxor.u32 %v243, 2147483648
  %v258 = vmul.f32 %v257, 1.442695
  %v259 = vpow.pop %v258
  %v260 = vadd.f32 %v259, 1.0
  %v261 = vrcp.pop %v260
  %v262 = vmul.f32 1.0, %v261
  %v263 = vmul.f32 %v255, %v93
  %v264 = vmul.f32 %v249, %v256
  %v265 = vadd.f32 %v263, %v264
  %v266 = vtanh.pop %v265
  %v267 = vmul.f32 %v262, %v266
  %268 = vst [vmem:[%s4] sm:$0xff] %v267
  %s269 = scalar_lea.vmem %s0, 32
  %v270 = vld [vmem:[%s269] sm:$0xff]
  %v271 = vld [vmem:[%s269 + $0x8] sm:$0xff]
  %v272 = vld [vmem:[%s269 + $0x10] sm:$0xff]
  %v273 = vld [vmem:[%s269 + $0x18] sm:$0xff]
  %274 = vmatprep.subr.mxu0 %v29
  %275 = vmatpush1.msra.mxu0 %v28
  %276 = vmatprep.subr.mxu0 %v33
  %277 = vmatpush1.msra.mxu0 %v32
  %278 = vmatprep.subr.mxu0 %v37
  %279 = vmatpush1.msra.mxu0 %v36
  %280 = vmatprep.subr.mxu0 %v41
  %281 = vmatpush1.msra.mxu0 %v40
  %282 = vmatprep.subr.mxu0 %v45
  %283 = vmatpush1.msra.mxu0 %v44
  %284 = vmatprep.subr.mxu0 %v49
  %285 = vmatpush1.msra.mxu0 %v48
  %286 = vmatprep.subr.mxu0 %v53
  %287 = vmatpush1.msra.mxu0 %v52
  %288 = vmatprep.subr.mxu0 %v57
  %289 = vmatpush1.msra.mxu0 %v56
  %290 = vmatprep.subr.mxu0 %v61
  %291 = vmatpush1.msra.mxu0 %v60
  %292 = vmatprep.subr.mxu0 %v65
  %293 = vmatpush1.msra.mxu0 %v64
  %294 = vmatprep.subr.mxu0 %v69
  %295 = vmatpush1.msra.mxu0 %v68
  %296 = vmatprep.subr.mxu0 %v73
  %297 = vmatpush1.msra.mxu0 %v72
  %298 = vmatprep.subr.mxu0 %v77
  %299 = vmatpush1.msra.mxu0 %v76
  %300 = vmatprep.subr.mxu0 %v81
  %301 = vmatpush1.msra.mxu0 %v80
  %302 = vmatprep.subr.mxu0 %v85
  %303 = vmatpush1.msra.mxu0 %v84
  %304 = vmatprep.subr.mxu0 %v89
  %305 = vmatpush1.msra.mxu0 %v88
  %306 = vmatprep.subr.mxu0 0.0
  %307 = vmatpush1.msra.mxu0 0.0
  %308 = vmatprep.subr.mxu0 0.0
  %309 = vmatpush1.msra.mxu0 0.0
  %310 = vmatprep.subr.mxu0 0.0
  %311 = vmatpush1.msra.mxu0 0.0
  %312 = vmatprep.subr.mxu0 0.0
  %313 = vmatpush1.msra.mxu0 0.0
  %314 = vmatprep.subr.mxu0 0.0
  %315 = vmatpush1.msra.mxu0 0.0
  %316 = vmatprep.subr.mxu0 0.0
  %317 = vmatpush1.msra.mxu0 0.0
  %318 = vmatprep.subr.mxu0 0.0
  %319 = vmatpush1.msra.mxu0 0.0
  %320 = vmatprep.subr.mxu0 0.0
  %321 = vmatpush1.msra.mxu0 0.0
  %322 = vmatprep.subr.mxu0 0.0
  %323 = vmatpush1.msra.mxu0 0.0
  %324 = vmatprep.subr.mxu0 0.0
  %325 = vmatpush1.msra.mxu0 0.0
  %326 = vmatprep.subr.mxu0 0.0
  %327 = vmatpush1.msra.mxu0 0.0
  %328 = vmatprep.subr.mxu0 0.0
  %329 = vmatpush1.msra.mxu0 0.0
  %330 = vmatprep.subr.mxu0 0.0
  %331 = vmatpush1.msra.mxu0 0.0
  %332 = vmatprep.subr.mxu0 0.0
  %333 = vmatpush1.msra.mxu0 0.0
  %334 = vmatprep.subr.mxu0 0.0
  %335 = vmatpush1.msra.mxu0 0.0
  %336 = vmatprep.subr.mxu0 0.0
  %337 = vmatpush1.msra.mxu0 0.0
  %338 = vmatprep.mubr.f32.mxu0 0.0
  %339 = vmatmul.mubr.f32.gmra.mrb[0].mxu0 %v267
  %v340 = vpop.f32.mrb[0].mxu0
  %v341 = vadd.f32 0.0, %v340
  %v342 = vpop.f32.mrb[0].mxu0
  %v343 = vadd.f32 0.0, %v342
  %344 = vdwg.mxu0
  %345 = vmatprep.subr.mxu0 %v31
  %346 = vmatpush1.msra.mxu0 %v30
  %347 = vmatprep.subr.mxu0 %v35
  %348 = vmatpush1.msra.mxu0 %v34
  %349 = vmatprep.subr.mxu0 %v39
  %350 = vmatpush1.msra.mxu0 %v38
  %351 = vmatprep.subr.mxu0 %v43
  %352 = vmatpush1.msra.mxu0 %v42
  %353 = vmatprep.subr.mxu0 %v47
  %354 = vmatpush1.msra.mxu0 %v46
  %355 = vmatprep.subr.mxu0 %v51
  %356 = vmatpush1.msra.mxu0 %v50
  %357 = vmatprep.subr.mxu0 %v55
  %358 = vmatpush1.msra.mxu0 %v54
  %359 = vmatprep.subr.mxu0 %v59
  %360 = vmatpush1.msra.mxu0 %v58
  %361 = vmatprep.subr.mxu0 %v63
  %362 = vmatpush1.msra.mxu0 %v62
  %363 = vmatprep.subr.mxu0 %v67
  %364 = vmatpush1.msra.mxu0 %v66
  %365 = vmatprep.subr.mxu0 %v71
  %366 = vmatpush1.msra.mxu0 %v70
  %367 = vmatprep.subr.mxu0 %v75
  %368 = vmatpush1.msra.mxu0 %v74
  %369 = vmatprep.subr.mxu0 %v79
  %370 = vmatpush1.msra.mxu0 %v78
  %371 = vmatprep.subr.mxu0 %v83
  %372 = vmatpush1.msra.mxu0 %v82
  %373 = vmatprep.subr.mxu0 %v87
  %374 = vmatpush1.msra.mxu0 %v86
  %375 = vmatprep.subr.mxu0 %v91
  %376 = vmatpush1.msra.mxu0 %v90
  %377 = vmatprep.subr.mxu0 0.0
  %378 = vmatpush1.msra.mxu0 0.0
  %379 = vmatprep.subr.mxu0 0.0
  %380 = vmatpush1.msra.mxu0 0.0
  %381 = vmatprep.subr.mxu0 0.0
  %382 = vmatpush1.msra.mxu0 0.0
  %383 = vmatprep.subr.mxu0 0.0
  %384 = vmatpush1.msra.mxu0 0.0
  %385 = vmatprep.subr.mxu0 0.0
  %386 = vmatpush1.msra.mxu0 0.0
  %387 = vmatprep.subr.mxu0 0.0
  %388 = vmatpush1.msra.mxu0 0.0
  %389 = vmatprep.subr.mxu0 0.0
  %390 = vmatpush1.msra.mxu0 0.0
  %391 = vmatprep.subr.mxu0 0.0
  %392 = vmatpush1.msra.mxu0 0.0
  %393 = vmatprep.subr.mxu0 0.0
  %394 = vmatpush1.msra.mxu0 0.0
  %395 = vmatprep.subr.mxu0 0.0
  %396 = vmatpush1.msra.mxu0 0.0
  %397 = vmatprep.subr.mxu0 0.0
  %398 = vmatpush1.msra.mxu0 0.0
  %399 = vmatprep.subr.mxu0 0.0
  %400 = vmatpush1.msra.mxu0 0.0
  %401 = vmatprep.subr.mxu0 0.0
  %402 = vmatpush1.msra.mxu0 0.0
  %403 = vmatprep.subr.mxu0 0.0
  %404 = vmatpush1.msra.mxu0 0.0
  %405 = vmatprep.subr.mxu0 0.0
  %406 = vmatpush1.msra.mxu0 0.0
  %407 = vmatprep.subr.mxu0 0.0
  %408 = vmatpush1.msra.mxu0 0.0
  %409 = vmatprep.mubr.f32.mxu0 0.0
  %410 = vmatmul.mubr.f32.gmra.mrb[0].mxu0 %v267
  %v411 = vpop.f32.mrb[0].mxu0
  %v412 = vadd.f32 0.0, %v411
  %v413 = vpop.f32.mrb[0].mxu0
  %v414 = vadd.f32 0.0, %v413
  %415 = vdwg.mxu0
  %v416 = vadd.f32 %v270, %v341
  %v417 = vadd.f32 %v271, %v343
  %v418 = vadd.f32 %v272, %v412
  %v419 = vadd.f32 %v273, %v414
  %v420 = vxor.u32 %v416, 2147483648
  %v421 = vmul.f32 %v420, 1.442695
  %v422 = vpow.pop %v421
  %v423 = vadd.f32 %v422, 1.0
  %v424 = vrcp.pop %v423
  %v425 = vmul.f32 1.0, %v424
  %v426 = vxor.u32 %v417, 2147483648
  %v427 = vmul.f32 %v426, 1.442695
  %v428 = vpow.pop %v427
  %v429 = vadd.f32 %v428, 1.0
  %v430 = vrcp.pop %v429
  %v431 = vmul.f32 1.0, %v430
  %v432 = vtanh.pop %v418
  %v433 = vxor.u32 %v419, 2147483648
  %v434 = vmul.f32 %v433, 1.442695
  %v435 = vpow.pop %v434
  %v436 = vadd.f32 %v435, 1.0
  %v437 = vrcp.pop %v436
  %v438 = vmul.f32 1.0, %v437
  %v439 = vmul.f32 %v431, %v265
  %v440 = vmul.f32 %v425, %v432
  %v441 = vadd.f32 %v439, %v440
  %v442 = vtanh.pop %v441
  %v443 = vmul.f32 %v438, %v442
  %s444 = scalar_lea.vmem %s4, 8
  %445 = vst [vmem:[%s444] sm:$0xff] %v443
  %s446 = scalar_lea.vmem %s0, 64
  %v447 = vld [vmem:[%s446] sm:$0xff]
  %v448 = vld [vmem:[%s446 + $0x8] sm:$0xff]
  %v449 = vld [vmem:[%s446 + $0x10] sm:$0xff]
  %v450 = vld [vmem:[%s446 + $0x18] sm:$0xff]
  %451 = vmatprep.subr.mxu0 %v29
  %452 = vmatpush1.msra.mxu0 %v28
  %453 = vmatprep.subr.mxu0 %v33
  %454 = vmatpush1.msra.mxu0 %v32
  %455 = vmatprep.subr.mxu0 %v37
  %456 = vmatpush1.msra.mxu0 %v36
  %457 = vmatprep.subr.mxu0 %v41
  %458 = vmatpush1.msra.mxu0 %v40
  %459 = vmatprep.subr.mxu0 %v45
  %460 = vmatpush1.msra.mxu0 %v44
  %461 = vmatprep.subr.mxu0 %v49
  %462 = vmatpush1.msra.mxu0 %v48
  %463 = vmatprep.subr.mxu0 %v53
  %464 = vmatpush1.msra.mxu0 %v52
  %465 = vmatprep.subr.mxu0 %v57
  %466 = vmatpush1.msra.mxu0 %v56
  %467 = vmatprep.subr.mxu0 %v61
  %468 = vmatpush1.msra.mxu0 %v60
  %469 = vmatprep.subr.mxu0 %v65
  %470 = vmatpush1.msra.mxu0 %v64
  %471 = vmatprep.subr.mxu0 %v69
  %472 = vmatpush1.msra.mxu0 %v68
  %473 = vmatprep.subr.mxu0 %v73
  %474 = vmatpush1.msra.mxu0 %v72
  %475 = vmatprep.subr.mxu0 %v77
  %476 = vmatpush1.msra.mxu0 %v76
  %477 = vmatprep.subr.mxu0 %v81
  %478 = vmatpush1.msra.mxu0 %v80
  %479 = vmatprep.subr.mxu0 %v85
  %480 = vmatpush1.msra.mxu0 %v84
  %481 = vmatprep.subr.mxu0 %v89
  %482 = vmatpush1.msra.mxu0 %v88
  %483 = vmatprep.subr.mxu0 0.0
  %484 = vmatpush1.msra.mxu0 0.0
  %485 = vmatprep.subr.mxu0 0.0
  %486 = vmatpush1.msra.mxu0 0.0
  %487 = vmatprep.subr.mxu0 0.0
  %488 = vmatpush1.msra.mxu0 0.0
  %489 = vmatprep.subr.mxu0 0.0
  %490 = vmatpush1.msra.mxu0 0.0
  %491 = vmatprep.subr.mxu0 0.0
  %492 = vmatpush1.msra.mxu0 0.0
  %493 = vmatprep.subr.mxu0 0.0
  %494 = vmatpush1.msra.mxu0 0.0
  %495 = vmatprep.subr.mxu0 0.0
  %496 = vmatpush1.msra.mxu0 0.0
  %497 = vmatprep.subr.mxu0 0.0
  %498 = vmatpush1.msra.mxu0 0.0
  %499 = vmatprep.subr.mxu0 0.0
  %500 = vmatpush1.msra.mxu0 0.0
  %501 = vmatprep.subr.mxu0 0.0
  %502 = vmatpush1.msra.mxu0 0.0
  %503 = vmatprep.subr.mxu0 0.0
  %504 = vmatpush1.msra.mxu0 0.0
  %505 = vmatprep.subr.mxu0 0.0
  %506 = vmatpush1.msra.mxu0 0.0
  %507 = vmatprep.subr.mxu0 0.0
  %508 = vmatpush1.msra.mxu0 0.0
  %509 = vmatprep.subr.mxu0 0.0
  %510 = vmatpush1.msra.mxu0 0.0
  %511 = vmatprep.subr.mxu0 0.0
  %512 = vmatpush1.msra.mxu0 0.0
  %513 = vmatprep.subr.mxu0 0.0
  %514 = vmatpush1.msra.mxu0 0.0
  %515 = vmatprep.mubr.f32.mxu0 0.0
  %516 = vmatmul.mubr.f32.gmra.mrb[0].mxu0 %v443
  %v517 = vpop.f32.mrb[0].mxu0
  %v518 = vadd.f32 0.0, %v517
  %v519 = vpop.f32.mrb[0].mxu0
  %v520 = vadd.f32 0.0, %v519
  %521 = vdwg.mxu0
  %522 = vmatprep.subr.mxu0 %v31
  %523 = vmatpush1.msra.mxu0 %v30
  %524 = vmatprep.subr.mxu0 %v35
  %525 = vmatpush1.msra.mxu0 %v34
  %526 = vmatprep.subr.mxu0 %v39
  %527 = vmatpush1.msra.mxu0 %v38
  %528 = vmatprep.subr.mxu0 %v43
  %529 = vmatpush1.msra.mxu0 %v42
  %530 = vmatprep.subr.mxu0 %v47
  %531 = vmatpush1.msra.mxu0 %v46
  %532 = vmatprep.subr.mxu0 %v51
  %533 = vmatpush1.msra.mxu0 %v50
  %534 = vmatprep.subr.mxu0 %v55
  %535 = vmatpush1.msra.mxu0 %v54
  %536 = vmatprep.subr.mxu0 %v59
  %537 = vmatpush1.msra.mxu0 %v58
  %538 = vmatprep.subr.mxu0 %v63
  %539 = vmatpush1.msra.mxu0 %v62
  %540 = vmatprep.subr.mxu0 %v67
  %541 = vmatpush1.msra.mxu0 %v66
  %542 = vmatprep.subr.mxu0 %v71
  %543 = vmatpush1.msra.mxu0 %v70
  %544 = vmatprep.subr.mxu0 %v75
  %545 = vmatpush1.msra.mxu0 %v74
  %546 = vmatprep.subr.mxu0 %v79
  %547 = vmatpush1.msra.mxu0 %v78
  %548 = vmatprep.subr.mxu0 %v83
  %549 = vmatpush1.msra.mxu0 %v82
  %550 = vmatprep.subr.mxu0 %v87
  %551 = vmatpush1.msra.mxu0 %v86
  %552 = vmatprep.subr.mxu0 %v91
  %553 = vmatpush1.msra.mxu0 %v90
  %554 = vmatprep.subr.mxu0 0.0
  %555 = vmatpush1.msra.mxu0 0.0
  %556 = vmatprep.subr.mxu0 0.0
  %557 = vmatpush1.msra.mxu0 0.0
  %558 = vmatprep.subr.mxu0 0.0
  %559 = vmatpush1.msra.mxu0 0.0
  %560 = vmatprep.subr.mxu0 0.0
  %561 = vmatpush1.msra.mxu0 0.0
  %562 = vmatprep.subr.mxu0 0.0
  %563 = vmatpush1.msra.mxu0 0.0
  %564 = vmatprep.subr.mxu0 0.0
  %565 = vmatpush1.msra.mxu0 0.0
  %566 = vmatprep.subr.mxu0 0.0
  %567 = vmatpush1.msra.mxu0 0.0
  %568 = vmatprep.subr.mxu0 0.0
  %569 = vmatpush1.msra.mxu0 0.0
  %570 = vmatprep.subr.mxu0 0.0
  %571 = vmatpush1.msra.mxu0 0.0
  %572 = vmatprep.subr.mxu0 0.0
  %573 = vmatpush1.msra.mxu0 0.0
  %574 = vmatprep.subr.mxu0 0.0
  %575 = vmatpush1.msra.mxu0 0.0
  %576 = vmatprep.subr.mxu0 0.0
  %577 = vmatpush1.msra.mxu0 0.0
  %578 = vmatprep.subr.mxu0 0.0
  %579 = vmatpush1.msra.mxu0 0.0
  %580 = vmatprep.subr.mxu0 0.0
  %581 = vmatpush1.msra.mxu0 0.0
  %582 = vmatprep.subr.mxu0 0.0
  %583 = vmatpush1.msra.mxu0 0.0
  %584 = vmatprep.subr.mxu0 0.0
  %585 = vmatpush1.msra.mxu0 0.0
  %586 = vmatprep.mubr.f32.mxu0 0.0
  %587 = vmatmul.mubr.f32.gmra.mrb[0].mxu0 %v443
  %v588 = vpop.f32.mrb[0].mxu0
  %v589 = vadd.f32 0.0, %v588
  %v590 = vpop.f32.mrb[0].mxu0
  %v591 = vadd.f32 0.0, %v590
  %592 = vdwg.mxu0
  %v593 = vadd.f32 %v447, %v518
  %v594 = vadd.f32 %v448, %v520
  %v595 = vadd.f32 %v449, %v589
  %v596 = vadd.f32 %v450, %v591
  %v597 = vxor.u32 %v593, 2147483648
  %v598 = vmul.f32 %v597, 1.442695
  %v599 = vpow.pop %v598
  %v600 = vadd.f32 %v599, 1.0
  %v601 = vrcp.pop %v600
  %v602 = vmul.f32 1.0, %v601
  %v603 = vxor.u32 %v594, 2147483648
  %v604 = vmul.f32 %v603, 1.442695
  %v605 = vpow.pop %v604
  %v606 = vadd.f32 %v605, 1.0
  %v607 = vrcp.pop %v606
  %v608 = vmul.f32 1.0, %v607
  %v609 = vtanh.pop %v595
  %v610 = vxor.u32 %v596, 2147483648
  %v611 = vmul.f32 %v610, 1.442695
  %v612 = vpow.pop %v611
  %v613 = vadd.f32 %v612, 1.0
  %v614 = vrcp.pop %v613
  %v615 = vmul.f32 1.0, %v614
  %v616 = vmul.f32 %v608, %v441
  %v617 = vmul.f32 %v602, %v609
  %v618 = vadd.f32 %v616, %v617
  %v619 = vtanh.pop %v618
  %v620 = vmul.f32 %v615, %v619
  %s621 = scalar_lea.vmem %s4, 16
  %622 = vst [vmem:[%s621] sm:$0xff] %v620
  %s623 = scalar_lea.vmem %s0, 96
  %v624 = vld [vmem:[%s623] sm:$0xff]
  %v625 = vld [vmem:[%s623 + $0x8] sm:$0xff]
  %v626 = vld [vmem:[%s623 + $0x10] sm:$0xff]
  %v627 = vld [vmem:[%s623 + $0x18] sm:$0xff]
  %628 = vmatprep.subr.mxu0 %v29
  %629 = vmatpush1.msra.mxu0 %v28
  %630 = vmatprep.subr.mxu0 %v33
  %631 = vmatpush1.msra.mxu0 %v32
  %632 = vmatprep.subr.mxu0 %v37
  %633 = vmatpush1.msra.mxu0 %v36
  %634 = vmatprep.subr.mxu0 %v41
  %635 = vmatpush1.msra.mxu0 %v40
  %636 = vmatprep.subr.mxu0 %v45
  %637 = vmatpush1.msra.mxu0 %v44
  %638 = vmatprep.subr.mxu0 %v49
  %639 = vmatpush1.msra.mxu0 %v48
  %640 = vmatprep.subr.mxu0 %v53
  %641 = vmatpush1.msra.mxu0 %v52
  %642 = vmatprep.subr.mxu0 %v57
  %643 = vmatpush1.msra.mxu0 %v56
  %644 = vmatprep.subr.mxu0 %v61
  %645 = vmatpush1.msra.mxu0 %v60
  %646 = vmatprep.subr.mxu0 %v65
  %647 = vmatpush1.msra.mxu0 %v64
  %648 = vmatprep.subr.mxu0 %v69
  %649 = vmatpush1.msra.mxu0 %v68
  %650 = vmatprep.subr.mxu0 %v73
  %651 = vmatpush1.msra.mxu0 %v72
  %652 = vmatprep.subr.mxu0 %v77
  %653 = vmatpush1.msra.mxu0 %v76
  %654 = vmatprep.subr.mxu0 %v81
  %655 = vmatpush1.msra.mxu0 %v80
  %656 = vmatprep.subr.mxu0 %v85
  %657 = vmatpush1.msra.mxu0 %v84
  %658 = vmatprep.subr.mxu0 %v89
  %659 = vmatpush1.msra.mxu0 %v88
  %660 = vmatprep.subr.mxu0 0.0
  %661 = vmatpush1.msra.mxu0 0.0
  %662 = vmatprep.subr.mxu0 0.0
  %663 = vmatpush1.msra.mxu0 0.0
  %664 = vmatprep.subr.mxu0 0.0
  %665 = vmatpush1.msra.mxu0 0.0
  %666 = vmatprep.subr.mxu0 0.0
  %667 = vmatpush1.msra.mxu0 0.0
  %668 = vmatprep.subr.mxu0 0.0
  %669 = vmatpush1.msra.mxu0 0.0
  %670 = vmatprep.subr.mxu0 0.0
  %671 = vmatpush1.msra.mxu0 0.0
  %672 = vmatprep.subr.mxu0 0.0
  %673 = vmatpush1.msra.mxu0 0.0
  %674 = vmatprep.subr.mxu0 0.0
  %675 = vmatpush1.msra.mxu0 0.0
  %676 = vmatprep.subr.mxu0 0.0
  %677 = vmatpush1.msra.mxu0 0.0
  %678 = vmatprep.subr.mxu0 0.0
  %679 = vmatpush1.msra.mxu0 0.0
  %680 = vmatprep.subr.mxu0 0.0
  %681 = vmatpush1.msra.mxu0 0.0
  %682 = vmatprep.subr.mxu0 0.0
  %683 = vmatpush1.msra.mxu0 0.0
  %684 = vmatprep.subr.mxu0 0.0
  %685 = vmatpush1.msra.mxu0 0.0
  %686 = vmatprep.subr.mxu0 0.0
  %687 = vmatpush1.msra.mxu0 0.0
  %688 = vmatprep.subr.mxu0 0.0
  %689 = vmatpush1.msra.mxu0 0.0
  %690 = vmatprep.subr.mxu0 0.0
  %691 = vmatpush1.msra.mxu0 0.0
  %692 = vmatprep.mubr.f32.mxu0 0.0
  %693 = vmatmul.mubr.f32.gmra.mrb[0].mxu0 %v620
  %v694 = vpop.f32.mrb[0].mxu0
  %v695 = vadd.f32 0.0, %v694
  %v696 = vpop.f32.mrb[0].mxu0
  %v697 = vadd.f32 0.0, %v696
  %698 = vdwg.mxu0
  %699 = vmatprep.subr.mxu0 %v31
  %700 = vmatpush1.msra.mxu0 %v30
  %701 = vmatprep.subr.mxu0 %v35
  %702 = vmatpush1.msra.mxu0 %v34
  %703 = vmatprep.subr.mxu0 %v39
  %704 = vmatpush1.msra.mxu0 %v38
  %705 = vmatprep.subr.mxu0 %v43
  %706 = vmatpush1.msra.mxu0 %v42
  %707 = vmatprep.subr.mxu0 %v47
  %708 = vmatpush1.msra.mxu0 %v46
  %709 = vmatprep.subr.mxu0 %v51
  %710 = vmatpush1.msra.mxu0 %v50
  %711 = vmatprep.subr.mxu0 %v55
  %712 = vmatpush1.msra.mxu0 %v54
  %713 = vmatprep.subr.mxu0 %v59
  %714 = vmatpush1.msra.mxu0 %v58
  %715 = vmatprep.subr.mxu0 %v63
  %716 = vmatpush1.msra.mxu0 %v62
  %717 = vmatprep.subr.mxu0 %v67
  %718 = vmatpush1.msra.mxu0 %v66
  %719 = vmatprep.subr.mxu0 %v71
  %720 = vmatpush1.msra.mxu0 %v70
  %721 = vmatprep.subr.mxu0 %v75
  %722 = vmatpush1.msra.mxu0 %v74
  %723 = vmatprep.subr.mxu0 %v79
  %724 = vmatpush1.msra.mxu0 %v78
  %725 = vmatprep.subr.mxu0 %v83
  %726 = vmatpush1.msra.mxu0 %v82
  %727 = vmatprep.subr.mxu0 %v87
  %728 = vmatpush1.msra.mxu0 %v86
  %729 = vmatprep.subr.mxu0 %v91
  %730 = vmatpush1.msra.mxu0 %v90
  %731 = vmatprep.subr.mxu0 0.0
  %732 = vmatpush1.msra.mxu0 0.0
  %733 = vmatprep.subr.mxu0 0.0
  %734 = vmatpush1.msra.mxu0 0.0
  %735 = vmatprep.subr.mxu0 0.0
  %736 = vmatpush1.msra.mxu0 0.0
  %737 = vmatprep.subr.mxu0 0.0
  %738 = vmatpush1.msra.mxu0 0.0
  %739 = vmatprep.subr.mxu0 0.0
  %740 = vmatpush1.msra.mxu0 0.0
  %741 = vmatprep.subr.mxu0 0.0
  %742 = vmatpush1.msra.mxu0 0.0
  %743 = vmatprep.subr.mxu0 0.0
  %744 = vmatpush1.msra.mxu0 0.0
  %745 = vmatprep.subr.mxu0 0.0
  %746 = vmatpush1.msra.mxu0 0.0
  %747 = vmatprep.subr.mxu0 0.0
  %748 = vmatpush1.msra.mxu0 0.0
  %749 = vmatprep.subr.mxu0 0.0
  %750 = vmatpush1.msra.mxu0 0.0
  %751 = vmatprep.subr.mxu0 0.0
  %752 = vmatpush1.msra.mxu0 0.0
  %753 = vmatprep.subr.mxu0 0.0
  %754 = vmatpush1.msra.mxu0 0.0
  %755 = vmatprep.subr.mxu0 0.0
  %756 = vmatpush1.msra.mxu0 0.0
  %757 = vmatprep.subr.mxu0 0.0
  %758 = vmatpush1.msra.mxu0 0.0
  %759 = vmatprep.subr.mxu0 0.0
  %760 = vmatpush1.msra.mxu0 0.0
  %761 = vmatprep.subr.mxu0 0.0
  %762 = vmatpush1.msra.mxu0 0.0
  %763 = vmatprep.mubr.f32.mxu0 0.0
  %764 = vmatmul.mubr.f32.gmra.mrb[0].mxu0 %v620
  %v765 = vpop.f32.mrb[0].mxu0
  %v766 = vadd.f32 0.0, %v765
  %v767 = vpop.f32.mrb[0].mxu0
  %v768 = vadd.f32 0.0, %v767
  %769 = vdwg.mxu0
  %v770 = vadd.f32 %v624, %v695
  %v771 = vadd.f32 %v625, %v697
  %v772 = vadd.f32 %v626, %v766
  %v773 = vadd.f32 %v627, %v768
  %v774 = vxor.u32 %v770, 2147483648
  %v775 = vmul.f32 %v774, 1.442695
  %v776 = vpow.pop %v775
  %v777 = vadd.f32 %v776, 1.0
  %v778 = vrcp.pop %v777
  %v779 = vmul.f32 1.0, %v778
  %v780 = vxor.u32 %v771, 2147483648
  %v781 = vmul.f32 %v780, 1.442695
  %v782 = vpow.pop %v781
  %v783 = vadd.f32 %v782, 1.0
  %v784 = vrcp.pop %v783
  %v785 = vmul.f32 1.0, %v784
  %v786 = vtanh.pop %v772
  %v787 = vxor.u32 %v773, 2147483648
  %v788 = vmul.f32 %v787, 1.442695
  %v789 = vpow.pop %v788
  %v790 = vadd.f32 %v789, 1.0
  %v791 = vrcp.pop %v790
  %v792 = vmul.f32 1.0, %v791
  %v793 = vmul.f32 %v785, %v618
  %v794 = vmul.f32 %v779, %v786
  %v795 = vadd.f32 %v793, %v794
  %v796 = vtanh.pop %v795
  %v797 = vmul.f32 %v792, %v796
  %s798 = scalar_lea.vmem %s4, 24
  %799 = vst [vmem:[%s798] sm:$0xff] %v797
  %s800 = scalar_lea.vmem %s0, 128
  %v801 = vld [vmem:[%s800] sm:$0xff]
  %v802 = vld [vmem:[%s800 + $0x8] sm:$0xff]
  %v803 = vld [vmem:[%s800 + $0x10] sm:$0xff]
  %v804 = vld [vmem:[%s800 + $0x18] sm:$0xff]
  %805 = vmatprep.subr.mxu0 %v29
  %806 = vmatpush1.msra.mxu0 %v28
  %807 = vmatprep.subr.mxu0 %v33
  %808 = vmatpush1.msra.mxu0 %v32
  %809 = vmatprep.subr.mxu0 %v37
  %810 = vmatpush1.msra.mxu0 %v36
  %811 = vmatprep.subr.mxu0 %v41
  %812 = vmatpush1.msra.mxu0 %v40
  %813 = vmatprep.subr.mxu0 %v45
  %814 = vmatpush1.msra.mxu0 %v44
  %815 = vmatprep.subr.mxu0 %v49
  %816 = vmatpush1.msra.mxu0 %v48
  %817 = vmatprep.subr.mxu0 %v53
  %818 = vmatpush1.msra.mxu0 %v52
  %819 = vmatprep.subr.mxu0 %v57
  %820 = vmatpush1.msra.mxu0 %v56
  %821 = vmatprep.subr.mxu0 %v61
  %822 = vmatpush1.msra.mxu0 %v60
  %823 = vmatprep.subr.mxu0 %v65
  %824 = vmatpush1.msra.mxu0 %v64
  %825 = vmatprep.subr.mxu0 %v69
  %826 = vmatpush1.msra.mxu0 %v68
  %827 = vmatprep.subr.mxu0 %v73
  %828 = vmatpush1.msra.mxu0 %v72
  %829 = vmatprep.subr.mxu0 %v77
  %830 = vmatpush1.msra.mxu0 %v76
  %831 = vmatprep.subr.mxu0 %v81
  %832 = vmatpush1.msra.mxu0 %v80
  %833 = vmatprep.subr.mxu0 %v85
  %834 = vmatpush1.msra.mxu0 %v84
  %835 = vmatprep.subr.mxu0 %v89
  %836 = vmatpush1.msra.mxu0 %v88
  %837 = vmatprep.subr.mxu0 0.0
  %838 = vmatpush1.msra.mxu0 0.0
  %839 = vmatprep.subr.mxu0 0.0
  %840 = vmatpush1.msra.mxu0 0.0
  %841 = vmatprep.subr.mxu0 0.0
  %842 = vmatpush1.msra.mxu0 0.0
  %843 = vmatprep.subr.mxu0 0.0
  %844 = vmatpush1.msra.mxu0 0.0
  %845 = vmatprep.subr.mxu0 0.0
  %846 = vmatpush1.msra.mxu0 0.0
  %847 = vmatprep.subr.mxu0 0.0
  %848 = vmatpush1.msra.mxu0 0.0
  %849 = vmatprep.subr.mxu0 0.0
  %850 = vmatpush1.msra.mxu0 0.0
  %851 = vmatprep.subr.mxu0 0.0
  %852 = vmatpush1.msra.mxu0 0.0
  %853 = vmatprep.subr.mxu0 0.0
  %854 = vmatpush1.msra.mxu0 0.0
  %855 = vmatprep.subr.mxu0 0.0
  %856 = vmatpush1.msra.mxu0 0.0
  %857 = vmatprep.subr.mxu0 0.0
  %858 = vmatpush1.msra.mxu0 0.0
  %859 = vmatprep.subr.mxu0 0.0
  %860 = vmatpush1.msra.mxu0 0.0
  %861 = vmatprep.subr.mxu0 0.0
  %862 = vmatpush1.msra.mxu0 0.0
  %863 = vmatprep.subr.mxu0 0.0
  %864 = vmatpush1.msra.mxu0 0.0
  %865 = vmatprep.subr.mxu0 0.0
  %866 = vmatpush1.msra.mxu0 0.0
  %867 = vmatprep.subr.mxu0 0.0
  %868 = vmatpush1.msra.mxu0 0.0
  %869 = vmatprep.mubr.f32.mxu0 0.0
  %870 = vmatmul.mubr.f32.gmra.mrb[0].mxu0 %v797
  %v871 = vpop.f32.mrb[0].mxu0
  %v872 = vadd.f32 0.0, %v871
  %v873 = vpop.f32.mrb[0].mxu0
  %v874 = vadd.f32 0.0, %v873
  %875 = vdwg.mxu0
  %876 = vmatprep.subr.mxu0 %v31
  %877 = vmatpush1.msra.mxu0 %v30
  %878 = vmatprep.subr.mxu0 %v35
  %879 = vmatpush1.msra.mxu0 %v34
  %880 = vmatprep.subr.mxu0 %v39
  %881 = vmatpush1.msra.mxu0 %v38
  %882 = vmatprep.subr.mxu0 %v43
  %883 = vmatpush1.msra.mxu0 %v42
  %884 = vmatprep.subr.mxu0 %v47
  %885 = vmatpush1.msra.mxu0 %v46
  %886 = vmatprep.subr.mxu0 %v51
  %887 = vmatpush1.msra.mxu0 %v50
  %888 = vmatprep.subr.mxu0 %v55
  %889 = vmatpush1.msra.mxu0 %v54
  %890 = vmatprep.subr.mxu0 %v59
  %891 = vmatpush1.msra.mxu0 %v58
  %892 = vmatprep.subr.mxu0 %v63
  %893 = vmatpush1.msra.mxu0 %v62
  %894 = vmatprep.subr.mxu0 %v67
  %895 = vmatpush1.msra.mxu0 %v66
  %896 = vmatprep.subr.mxu0 %v71
  %897 = vmatpush1.msra.mxu0 %v70
  %898 = vmatprep.subr.mxu0 %v75
  %899 = vmatpush1.msra.mxu0 %v74
  %900 = vmatprep.subr.mxu0 %v79
  %901 = vmatpush1.msra.mxu0 %v78
  %902 = vmatprep.subr.mxu0 %v83
  %903 = vmatpush1.msra.mxu0 %v82
  %904 = vmatprep.subr.mxu0 %v87
  %905 = vmatpush1.msra.mxu0 %v86
  %906 = vmatprep.subr.mxu0 %v91
  %907 = vmatpush1.msra.mxu0 %v90
  %908 = vmatprep.subr.mxu0 0.0
  %909 = vmatpush1.msra.mxu0 0.0
  %910 = vmatprep.subr.mxu0 0.0
  %911 = vmatpush1.msra.mxu0 0.0
  %912 = vmatprep.subr.mxu0 0.0
  %913 = vmatpush1.msra.mxu0 0.0
  %914 = vmatprep.subr.mxu0 0.0
  %915 = vmatpush1.msra.mxu0 0.0
  %916 = vmatprep.subr.mxu0 0.0
  %917 = vmatpush1.msra.mxu0 0.0
  %918 = vmatprep.subr.mxu0 0.0
  %919 = vmatpush1.msra.mxu0 0.0
  %920 = vmatprep.subr.mxu0 0.0
  %921 = vmatpush1.msra.mxu0 0.0
  %922 = vmatprep.subr.mxu0 0.0
  %923 = vmatpush1.msra.mxu0 0.0
  %924 = vmatprep.subr.mxu0 0.0
  %925 = vmatpush1.msra.mxu0 0.0
  %926 = vmatprep.subr.mxu0 0.0
  %927 = vmatpush1.msra.mxu0 0.0
  %928 = vmatprep.subr.mxu0 0.0
  %929 = vmatpush1.msra.mxu0 0.0
  %930 = vmatprep.subr.mxu0 0.0
  %931 = vmatpush1.msra.mxu0 0.0
  %932 = vmatprep.subr.mxu0 0.0
  %933 = vmatpush1.msra.mxu0 0.0
  %934 = vmatprep.subr.mxu0 0.0
  %935 = vmatpush1.msra.mxu0 0.0
  %936 = vmatprep.subr.mxu0 0.0
  %937 = vmatpush1.msra.mxu0 0.0
  %938 = vmatprep.subr.mxu0 0.0
  %939 = vmatpush1.msra.mxu0 0.0
  %940 = vmatprep.mubr.f32.mxu0 0.0
  %941 = vmatmul.mubr.f32.gmra.mrb[0].mxu0 %v797
  %v942 = vpop.f32.mrb[0].mxu0
  %v943 = vadd.f32 0.0, %v942
  %v944 = vpop.f32.mrb[0].mxu0
  %v945 = vadd.f32 0.0, %v944
  %946 = vdwg.mxu0
  %v947 = vadd.f32 %v801, %v872
  %v948 = vadd.f32 %v802, %v874
  %v949 = vadd.f32 %v803, %v943
  %v950 = vadd.f32 %v804, %v945
  %v951 = vxor.u32 %v947, 2147483648
  %v952 = vmul.f32 %v951, 1.442695
  %v953 = vpow.pop %v952
  %v954 = vadd.f32 %v953, 1.0
  %v955 = vrcp.pop %v954
  %v956 = vmul.f32 1.0, %v955
  %v957 = vxor.u32 %v948, 2147483648
  %v958 = vmul.f32 %v957, 1.442695
  %v959 = vpow.pop %v958
  %v960 = vadd.f32 %v959, 1.0
  %v961 = vrcp.pop %v960
  %v962 = vmul.f32 1.0, %v961
  %v963 = vtanh.pop %v949
  %v964 = vxor.u32 %v950, 2147483648
  %v965 = vmul.f32 %v964, 1.442695
  %v966 = vpow.pop %v965
  %v967 = vadd.f32 %v966, 1.0
  %v968 = vrcp.pop %v967
  %v969 = vmul.f32 1.0, %v968
  %v970 = vmul.f32 %v962, %v795
  %v971 = vmul.f32 %v956, %v963
  %v972 = vadd.f32 %v970, %v971
  %v973 = vtanh.pop %v972
  %v974 = vmul.f32 %v969, %v973
  %s975 = scalar_lea.vmem %s4, 32
  %976 = vst [vmem:[%s975] sm:$0xff] %v974
  %s977 = scalar_lea.vmem %s0, 160
  %v978 = vld [vmem:[%s977] sm:$0xff]
  %v979 = vld [vmem:[%s977 + $0x8] sm:$0xff]
  %v980 = vld [vmem:[%s977 + $0x10] sm:$0xff]
  %v981 = vld [vmem:[%s977 + $0x18] sm:$0xff]
  %982 = vmatprep.subr.mxu0 %v29
  %983 = vmatpush1.msra.mxu0 %v28
  %984 = vmatprep.subr.mxu0 %v33
  %985 = vmatpush1.msra.mxu0 %v32
  %986 = vmatprep.subr.mxu0 %v37
  %987 = vmatpush1.msra.mxu0 %v36
  %988 = vmatprep.subr.mxu0 %v41
  %989 = vmatpush1.msra.mxu0 %v40
  %990 = vmatprep.subr.mxu0 %v45
  %991 = vmatpush1.msra.mxu0 %v44
  %992 = vmatprep.subr.mxu0 %v49
  %993 = vmatpush1.msra.mxu0 %v48
  %994 = vmatprep.subr.mxu0 %v53
  %995 = vmatpush1.msra.mxu0 %v52
  %996 = vmatprep.subr.mxu0 %v57
  %997 = vmatpush1.msra.mxu0 %v56
  %998 = vmatprep.subr.mxu0 %v61
  %999 = vmatpush1.msra.mxu0 %v60
  %1000 = vmatprep.subr.mxu0 %v65
  %1001 = vmatpush1.msra.mxu0 %v64
  %1002 = vmatprep.subr.mxu0 %v69
  %1003 = vmatpush1.msra.mxu0 %v68
  %1004 = vmatprep.subr.mxu0 %v73
  %1005 = vmatpush1.msra.mxu0 %v72
  %1006 = vmatprep.subr.mxu0 %v77
  %1007 = vmatpush1.msra.mxu0 %v76
  %1008 = vmatprep.subr.mxu0 %v81
  %1009 = vmatpush1.msra.mxu0 %v80
  %1010 = vmatprep.subr.mxu0 %v85
  %1011 = vmatpush1.msra.mxu0 %v84
  %1012 = vmatprep.subr.mxu0 %v89
  %1013 = vmatpush1.msra.mxu0 %v88
  %1014 = vmatprep.subr.mxu0 0.0
  %1015 = vmatpush1.msra.mxu0 0.0
  %1016 = vmatprep.subr.mxu0 0.0
  %1017 = vmatpush1.msra.mxu0 0.0
  %1018 = vmatprep.subr.mxu0 0.0
  %1019 = vmatpush1.msra.mxu0 0.0
  %1020 = vmatprep.subr.mxu0 0.0
  %1021 = vmatpush1.msra.mxu0 0.0
  %1022 = vmatprep.subr.mxu0 0.0
  %1023 = vmatpush1.msra.mxu0 0.0
  %1024 = vmatprep.subr.mxu0 0.0
  %1025 = vmatpush1.msra.mxu0 0.0
  %1026 = vmatprep.subr.mxu0 0.0
  %1027 = vmatpush1.msra.mxu0 0.0
  %1028 = vmatprep.subr.mxu0 0.0
  %1029 = vmatpush1.msra.mxu0 0.0
  %1030 = vmatprep.subr.mxu0 0.0
  %1031 = vmatpush1.msra.mxu0 0.0
  %1032 = vmatprep.subr.mxu0 0.0
  %1033 = vmatpush1.msra.mxu0 0.0
  %1034 = vmatprep.subr.mxu0 0.0
  %1035 = vmatpush1.msra.mxu0 0.0
  %1036 = vmatprep.subr.mxu0 0.0
  %1037 = vmatpush1.msra.mxu0 0.0
  %1038 = vmatprep.subr.mxu0 0.0
  %1039 = vmatpush1.msra.mxu0 0.0
  %1040 = vmatprep.subr.mxu0 0.0
  %1041 = vmatpush1.msra.mxu0 0.0
  %1042 = vmatprep.subr.mxu0 0.0
  %1043 = vmatpush1.msra.mxu0 0.0
  %1044 = vmatprep.subr.mxu0 0.0
  %1045 = vmatpush1.msra.mxu0 0.0
  %1046 = vmatprep.mubr.f32.mxu0 0.0
  %1047 = vmatmul.mubr.f32.gmra.mrb[0].mxu0 %v974
  %v1048 = vpop.f32.mrb[0].mxu0
  %v1049 = vadd.f32 0.0, %v1048
  %v1050 = vpop.f32.mrb[0].mxu0
  %v1051 = vadd.f32 0.0, %v1050
  %1052 = vdwg.mxu0
  %1053 = vmatprep.subr.mxu0 %v31
  %1054 = vmatpush1.msra.mxu0 %v30
  %1055 = vmatprep.subr.mxu0 %v35
  %1056 = vmatpush1.msra.mxu0 %v34
  %1057 = vmatprep.subr.mxu0 %v39
  %1058 = vmatpush1.msra.mxu0 %v38
  %1059 = vmatprep.subr.mxu0 %v43
  %1060 = vmatpush1.msra.mxu0 %v42
  %1061 = vmatprep.subr.mxu0 %v47
  %1062 = vmatpush1.msra.mxu0 %v46
  %1063 = vmatprep.subr.mxu0 %v51
  %1064 = vmatpush1.msra.mxu0 %v50
  %1065 = vmatprep.subr.mxu0 %v55
  %1066 = vmatpush1.msra.mxu0 %v54
  %1067 = vmatprep.subr.mxu0 %v59
  %1068 = vmatpush1.msra.mxu0 %v58
  %1069 = vmatprep.subr.mxu0 %v63
  %1070 = vmatpush1.msra.mxu0 %v62
  %1071 = vmatprep.subr.mxu0 %v67
  %1072 = vmatpush1.msra.mxu0 %v66
  %1073 = vmatprep.subr.mxu0 %v71
  %1074 = vmatpush1.msra.mxu0 %v70
  %1075 = vmatprep.subr.mxu0 %v75
  %1076 = vmatpush1.msra.mxu0 %v74
  %1077 = vmatprep.subr.mxu0 %v79
  %1078 = vmatpush1.msra.mxu0 %v78
  %1079 = vmatprep.subr.mxu0 %v83
  %1080 = vmatpush1.msra.mxu0 %v82
  %1081 = vmatprep.subr.mxu0 %v87
  %1082 = vmatpush1.msra.mxu0 %v86
  %1083 = vmatprep.subr.mxu0 %v91
  %1084 = vmatpush1.msra.mxu0 %v90
  %1085 = vmatprep.subr.mxu0 0.0
  %1086 = vmatpush1.msra.mxu0 0.0
  %1087 = vmatprep.subr.mxu0 0.0
  %1088 = vmatpush1.msra.mxu0 0.0
  %1089 = vmatprep.subr.mxu0 0.0
  %1090 = vmatpush1.msra.mxu0 0.0
  %1091 = vmatprep.subr.mxu0 0.0
  %1092 = vmatpush1.msra.mxu0 0.0
  %1093 = vmatprep.subr.mxu0 0.0
  %1094 = vmatpush1.msra.mxu0 0.0
  %1095 = vmatprep.subr.mxu0 0.0
  %1096 = vmatpush1.msra.mxu0 0.0
  %1097 = vmatprep.subr.mxu0 0.0
  %1098 = vmatpush1.msra.mxu0 0.0
  %1099 = vmatprep.subr.mxu0 0.0
  %1100 = vmatpush1.msra.mxu0 0.0
  %1101 = vmatprep.subr.mxu0 0.0
  %1102 = vmatpush1.msra.mxu0 0.0
  %1103 = vmatprep.subr.mxu0 0.0
  %1104 = vmatpush1.msra.mxu0 0.0
  %1105 = vmatprep.subr.mxu0 0.0
  %1106 = vmatpush1.msra.mxu0 0.0
  %1107 = vmatprep.subr.mxu0 0.0
  %1108 = vmatpush1.msra.mxu0 0.0
  %1109 = vmatprep.subr.mxu0 0.0
  %1110 = vmatpush1.msra.mxu0 0.0
  %1111 = vmatprep.subr.mxu0 0.0
  %1112 = vmatpush1.msra.mxu0 0.0
  %1113 = vmatprep.subr.mxu0 0.0
  %1114 = vmatpush1.msra.mxu0 0.0
  %1115 = vmatprep.subr.mxu0 0.0
  %1116 = vmatpush1.msra.mxu0 0.0
  %1117 = vmatprep.mubr.f32.mxu0 0.0
  %1118 = vmatmul.mubr.f32.gmra.mrb[0].mxu0 %v974
  %v1119 = vpop.f32.mrb[0].mxu0
  %v1120 = vadd.f32 0.0, %v1119
  %v1121 = vpop.f32.mrb[0].mxu0
  %v1122 = vadd.f32 0.0, %v1121
  %1123 = vdwg.mxu0
  %v1124 = vadd.f32 %v978, %v1049
  %v1125 = vadd.f32 %v979, %v1051
  %v1126 = vadd.f32 %v980, %v1120
  %v1127 = vadd.f32 %v981, %v1122
  %v1128 = vxor.u32 %v1124, 2147483648
  %v1129 = vmul.f32 %v1128, 1.442695
  %v1130 = vpow.pop %v1129
  %v1131 = vadd.f32 %v1130, 1.0
  %v1132 = vrcp.pop %v1131
  %v1133 = vmul.f32 1.0, %v1132
  %v1134 = vxor.u32 %v1125, 2147483648
  %v1135 = vmul.f32 %v1134, 1.442695
  %v1136 = vpow.pop %v1135
  %v1137 = vadd.f32 %v1136, 1.0
  %v1138 = vrcp.pop %v1137
  %v1139 = vmul.f32 1.0, %v1138
  %v1140 = vtanh.pop %v1126
  %v1141 = vxor.u32 %v1127, 2147483648
  %v1142 = vmul.f32 %v1141, 1.442695
  %v1143 = vpow.pop %v1142
  %v1144 = vadd.f32 %v1143, 1.0
  %v1145 = vrcp.pop %v1144
  %v1146 = vmul.f32 1.0, %v1145
  %v1147 = vmul.f32 %v1139, %v972
  %v1148 = vmul.f32 %v1133, %v1140
  %v1149 = vadd.f32 %v1147, %v1148
  %v1150 = vtanh.pop %v1149
  %v1151 = vmul.f32 %v1146, %v1150
  %s1152 = scalar_lea.vmem %s4, 40
  %1153 = vst [vmem:[%s1152] sm:$0xff] %v1151
  %s1154 = scalar_lea.vmem %s0, 192
  %v1155 = vld [vmem:[%s1154] sm:$0xff]
  %v1156 = vld [vmem:[%s1154 + $0x8] sm:$0xff]
  %v1157 = vld [vmem:[%s1154 + $0x10] sm:$0xff]
  %v1158 = vld [vmem:[%s1154 + $0x18] sm:$0xff]
  %1159 = vmatprep.subr.mxu0 %v29
  %1160 = vmatpush1.msra.mxu0 %v28
  %1161 = vmatprep.subr.mxu0 %v33
  %1162 = vmatpush1.msra.mxu0 %v32
  %1163 = vmatprep.subr.mxu0 %v37
  %1164 = vmatpush1.msra.mxu0 %v36
  %1165 = vmatprep.subr.mxu0 %v41
  %1166 = vmatpush1.msra.mxu0 %v40
  %1167 = vmatprep.subr.mxu0 %v45
  %1168 = vmatpush1.msra.mxu0 %v44
  %1169 = vmatprep.subr.mxu0 %v49
  %1170 = vmatpush1.msra.mxu0 %v48
  %1171 = vmatprep.subr.mxu0 %v53
  %1172 = vmatpush1.msra.mxu0 %v52
  %1173 = vmatprep.subr.mxu0 %v57
  %1174 = vmatpush1.msra.mxu0 %v56
  %1175 = vmatprep.subr.mxu0 %v61
  %1176 = vmatpush1.msra.mxu0 %v60
  %1177 = vmatprep.subr.mxu0 %v65
  %1178 = vmatpush1.msra.mxu0 %v64
  %1179 = vmatprep.subr.mxu0 %v69
  %1180 = vmatpush1.msra.mxu0 %v68
  %1181 = vmatprep.subr.mxu0 %v73
  %1182 = vmatpush1.msra.mxu0 %v72
  %1183 = vmatprep.subr.mxu0 %v77
  %1184 = vmatpush1.msra.mxu0 %v76
  %1185 = vmatprep.subr.mxu0 %v81
  %1186 = vmatpush1.msra.mxu0 %v80
  %1187 = vmatprep.subr.mxu0 %v85
  %1188 = vmatpush1.msra.mxu0 %v84
  %1189 = vmatprep.subr.mxu0 %v89
  %1190 = vmatpush1.msra.mxu0 %v88
  %1191 = vmatprep.subr.mxu0 0.0
  %1192 = vmatpush1.msra.mxu0 0.0
  %1193 = vmatprep.subr.mxu0 0.0
  %1194 = vmatpush1.msra.mxu0 0.0
  %1195 = vmatprep.subr.mxu0 0.0
  %1196 = vmatpush1.msra.mxu0 0.0
  %1197 = vmatprep.subr.mxu0 0.0
  %1198 = vmatpush1.msra.mxu0 0.0
  %1199 = vmatprep.subr.mxu0 0.0
  %1200 = vmatpush1.msra.mxu0 0.0
  %1201 = vmatprep.subr.mxu0 0.0
  %1202 = vmatpush1.msra.mxu0 0.0
  %1203 = vmatprep.subr.mxu0 0.0
  %1204 = vmatpush1.msra.mxu0 0.0
  %1205 = vmatprep.subr.mxu0 0.0
  %1206 = vmatpush1.msra.mxu0 0.0
  %1207 = vmatprep.subr.mxu0 0.0
  %1208 = vmatpush1.msra.mxu0 0.0
  %1209 = vmatprep.subr.mxu0 0.0
  %1210 = vmatpush1.msra.mxu0 0.0
  %1211 = vmatprep.subr.mxu0 0.0
  %1212 = vmatpush1.msra.mxu0 0.0
  %1213 = vmatprep.subr.mxu0 0.0
  %1214 = vmatpush1.msra.mxu0 0.0
  %1215 = vmatprep.subr.mxu0 0.0
  %1216 = vmatpush1.msra.mxu0 0.0
  %1217 = vmatprep.subr.mxu0 0.0
  %1218 = vmatpush1.msra.mxu0 0.0
  %1219 = vmatprep.subr.mxu0 0.0
  %1220 = vmatpush1.msra.mxu0 0.0
  %1221 = vmatprep.subr.mxu0 0.0
  %1222 = vmatpush1.msra.mxu0 0.0
  %1223 = vmatprep.mubr.f32.mxu0 0.0
  %1224 = vmatmul.mubr.f32.gmra.mrb[0].mxu0 %v1151
  %v1225 = vpop.f32.mrb[0].mxu0
  %v1226 = vadd.f32 0.0, %v1225
  %v1227 = vpop.f32.mrb[0].mxu0
  %v1228 = vadd.f32 0.0, %v1227
  %1229 = vdwg.mxu0
  %1230 = vmatprep.subr.mxu0 %v31
  %1231 = vmatpush1.msra.mxu0 %v30
  %1232 = vmatprep.subr.mxu0 %v35
  %1233 = vmatpush1.msra.mxu0 %v34
  %1234 = vmatprep.subr.mxu0 %v39
  %1235 = vmatpush1.msra.mxu0 %v38
  %1236 = vmatprep.subr.mxu0 %v43
  %1237 = vmatpush1.msra.mxu0 %v42
  %1238 = vmatprep.subr.mxu0 %v47
  %1239 = vmatpush1.msra.mxu0 %v46
  %1240 = vmatprep.subr.mxu0 %v51
  %1241 = vmatpush1.msra.mxu0 %v50
  %1242 = vmatprep.subr.mxu0 %v55
  %1243 = vmatpush1.msra.mxu0 %v54
  %1244 = vmatprep.subr.mxu0 %v59
  %1245 = vmatpush1.msra.mxu0 %v58
  %1246 = vmatprep.subr.mxu0 %v63
  %1247 = vmatpush1.msra.mxu0 %v62
  %1248 = vmatprep.subr.mxu0 %v67
  %1249 = vmatpush1.msra.mxu0 %v66
  %1250 = vmatprep.subr.mxu0 %v71
  %1251 = vmatpush1.msra.mxu0 %v70
  %1252 = vmatprep.subr.mxu0 %v75
  %1253 = vmatpush1.msra.mxu0 %v74
  %1254 = vmatprep.subr.mxu0 %v79
  %1255 = vmatpush1.msra.mxu0 %v78
  %1256 = vmatprep.subr.mxu0 %v83
  %1257 = vmatpush1.msra.mxu0 %v82
  %1258 = vmatprep.subr.mxu0 %v87
  %1259 = vmatpush1.msra.mxu0 %v86
  %1260 = vmatprep.subr.mxu0 %v91
  %1261 = vmatpush1.msra.mxu0 %v90
  %1262 = vmatprep.subr.mxu0 0.0
  %1263 = vmatpush1.msra.mxu0 0.0
  %1264 = vmatprep.subr.mxu0 0.0
  %1265 = vmatpush1.msra.mxu0 0.0
  %1266 = vmatprep.subr.mxu0 0.0
  %1267 = vmatpush1.msra.mxu0 0.0
  %1268 = vmatprep.subr.mxu0 0.0
  %1269 = vmatpush1.msra.mxu0 0.0
  %1270 = vmatprep.subr.mxu0 0.0
  %1271 = vmatpush1.msra.mxu0 0.0
  %1272 = vmatprep.subr.mxu0 0.0
  %1273 = vmatpush1.msra.mxu0 0.0
  %1274 = vmatprep.subr.mxu0 0.0
  %1275 = vmatpush1.msra.mxu0 0.0
  %1276 = vmatprep.subr.mxu0 0.0
  %1277 = vmatpush1.msra.mxu0 0.0
  %1278 = vmatprep.subr.mxu0 0.0
  %1279 = vmatpush1.msra.mxu0 0.0
  %1280 = vmatprep.subr.mxu0 0.0
  %1281 = vmatpush1.msra.mxu0 0.0
  %1282 = vmatprep.subr.mxu0 0.0
  %1283 = vmatpush1.msra.mxu0 0.0
  %1284 = vmatprep.subr.mxu0 0.0
  %1285 = vmatpush1.msra.mxu0 0.0
  %1286 = vmatprep.subr.mxu0 0.0
  %1287 = vmatpush1.msra.mxu0 0.0
  %1288 = vmatprep.subr.mxu0 0.0
  %1289 = vmatpush1.msra.mxu0 0.0
  %1290 = vmatprep.subr.mxu0 0.0
  %1291 = vmatpush1.msra.mxu0 0.0
  %1292 = vmatprep.subr.mxu0 0.0
  %1293 = vmatpush1.msra.mxu0 0.0
  %1294 = vmatprep.mubr.f32.mxu0 0.0
  %1295 = vmatmul.mubr.f32.gmra.mrb[0].mxu0 %v1151
  %v1296 = vpop.f32.mrb[0].mxu0
  %v1297 = vadd.f32 0.0, %v1296
  %v1298 = vpop.f32.mrb[0].mxu0
  %v1299 = vadd.f32 0.0, %v1298
  %1300 = vdwg.mxu0
  %v1301 = vadd.f32 %v1155, %v1226
  %v1302 = vadd.f32 %v1156, %v1228
  %v1303 = vadd.f32 %v1157, %v1297
  %v1304 = vadd.f32 %v1158, %v1299
  %v1305 = vxor.u32 %v1301, 2147483648
  %v1306 = vmul.f32 %v1305, 1.442695
  %v1307 = vpow.pop %v1306
  %v1308 = vadd.f32 %v1307, 1.0
  %v1309 = vrcp.pop %v1308
  %v1310 = vmul.f32 1.0, %v1309
  %v1311 = vxor.u32 %v1302, 2147483648
  %v1312 = vmul.f32 %v1311, 1.442695
  %v1313 = vpow.pop %v1312
  %v1314 = vadd.f32 %v1313, 1.0
  %v1315 = vrcp.pop %v1314
  %v1316 = vmul.f32 1.0, %v1315
  %v1317 = vtanh.pop %v1303
  %v1318 = vxor.u32 %v1304, 2147483648
  %v1319 = vmul.f32 %v1318, 1.442695
  %v1320 = vpow.pop %v1319
  %v1321 = vadd.f32 %v1320, 1.0
  %v1322 = vrcp.pop %v1321
  %v1323 = vmul.f32 1.0, %v1322
  %v1324 = vmul.f32 %v1316, %v1149
  %v1325 = vmul.f32 %v1310, %v1317
  %v1326 = vadd.f32 %v1324, %v1325
  %v1327 = vtanh.pop %v1326
  %v1328 = vmul.f32 %v1323, %v1327
  %s1329 = scalar_lea.vmem %s4, 48
  %1330 = vst [vmem:[%s1329] sm:$0xff] %v1328
  %s1331 = scalar_lea.vmem %s0, 224
  %v1332 = vld [vmem:[%s1331] sm:$0xff]
  %v1333 = vld [vmem:[%s1331 + $0x8] sm:$0xff]
  %v1334 = vld [vmem:[%s1331 + $0x10] sm:$0xff]
  %v1335 = vld [vmem:[%s1331 + $0x18] sm:$0xff]
  %1336 = vmatprep.subr.mxu0 %v29
  %1337 = vmatpush1.msra.mxu0 %v28
  %1338 = vmatprep.subr.mxu0 %v33
  %1339 = vmatpush1.msra.mxu0 %v32
  %1340 = vmatprep.subr.mxu0 %v37
  %1341 = vmatpush1.msra.mxu0 %v36
  %1342 = vmatprep.subr.mxu0 %v41
  %1343 = vmatpush1.msra.mxu0 %v40
  %1344 = vmatprep.subr.mxu0 %v45
  %1345 = vmatpush1.msra.mxu0 %v44
  %1346 = vmatprep.subr.mxu0 %v49
  %1347 = vmatpush1.msra.mxu0 %v48
  %1348 = vmatprep.subr.mxu0 %v53
  %1349 = vmatpush1.msra.mxu0 %v52
  %1350 = vmatprep.subr.mxu0 %v57
  %1351 = vmatpush1.msra.mxu0 %v56
  %1352 = vmatprep.subr.mxu0 %v61
  %1353 = vmatpush1.msra.mxu0 %v60
  %1354 = vmatprep.subr.mxu0 %v65
  %1355 = vmatpush1.msra.mxu0 %v64
  %1356 = vmatprep.subr.mxu0 %v69
  %1357 = vmatpush1.msra.mxu0 %v68
  %1358 = vmatprep.subr.mxu0 %v73
  %1359 = vmatpush1.msra.mxu0 %v72
  %1360 = vmatprep.subr.mxu0 %v77
  %1361 = vmatpush1.msra.mxu0 %v76
  %1362 = vmatprep.subr.mxu0 %v81
  %1363 = vmatpush1.msra.mxu0 %v80
  %1364 = vmatprep.subr.mxu0 %v85
  %1365 = vmatpush1.msra.mxu0 %v84
  %1366 = vmatprep.subr.mxu0 %v89
  %1367 = vmatpush1.msra.mxu0 %v88
  %1368 = vmatprep.subr.mxu0 0.0
  %1369 = vmatpush1.msra.mxu0 0.0
  %1370 = vmatprep.subr.mxu0 0.0
  %1371 = vmatpush1.msra.mxu0 0.0
  %1372 = vmatprep.subr.mxu0 0.0
  %1373 = vmatpush1.msra.mxu0 0.0
  %1374 = vmatprep.subr.mxu0 0.0
  %1375 = vmatpush1.msra.mxu0 0.0
  %1376 = vmatprep.subr.mxu0 0.0
  %1377 = vmatpush1.msra.mxu0 0.0
  %1378 = vmatprep.subr.mxu0 0.0
  %1379 = vmatpush1.msra.mxu0 0.0
  %1380 = vmatprep.subr.mxu0 0.0
  %1381 = vmatpush1.msra.mxu0 0.0
  %1382 = vmatprep.subr.mxu0 0.0
  %1383 = vmatpush1.msra.mxu0 0.0
  %1384 = vmatprep.subr.mxu0 0.0
  %1385 = vmatpush1.msra.mxu0 0.0
  %1386 = vmatprep.subr.mxu0 0.0
  %1387 = vmatpush1.msra.mxu0 0.0
  %1388 = vmatprep.subr.mxu0 0.0
  %1389 = vmatpush1.msra.mxu0 0.0
  %1390 = vmatprep.subr.mxu0 0.0
  %1391 = vmatpush1.msra.mxu0 0.0
  %1392 = vmatprep.subr.mxu0 0.0
  %1393 = vmatpush1.msra.mxu0 0.0
  %1394 = vmatprep.subr.mxu0 0.0
  %1395 = vmatpush1.msra.mxu0 0.0
  %1396 = vmatprep.subr.mxu0 0.0
  %1397 = vmatpush1.msra.mxu0 0.0
  %1398 = vmatprep.subr.mxu0 0.0
  %1399 = vmatpush1.msra.mxu0 0.0
  %1400 = vmatprep.mubr.f32.mxu0 0.0
  %1401 = vmatmul.mubr.f32.gmra.mrb[0].mxu0 %v1328
  %v1402 = vpop.f32.mrb[0].mxu0
  %v1403 = vadd.f32 0.0, %v1402
  %v1404 = vpop.f32.mrb[0].mxu0
  %v1405 = vadd.f32 0.0, %v1404
  %1406 = vdwg.mxu0
  %1407 = vmatprep.subr.mxu0 %v31
  %1408 = vmatpush1.msra.mxu0 %v30
  %1409 = vmatprep.subr.mxu0 %v35
  %1410 = vmatpush1.msra.mxu0 %v34
  %1411 = vmatprep.subr.mxu0 %v39
  %1412 = vmatpush1.msra.mxu0 %v38
  %1413 = vmatprep.subr.mxu0 %v43
  %1414 = vmatpush1.msra.mxu0 %v42
  %1415 = vmatprep.subr.mxu0 %v47
  %1416 = vmatpush1.msra.mxu0 %v46
  %1417 = vmatprep.subr.mxu0 %v51
  %1418 = vmatpush1.msra.mxu0 %v50
  %1419 = vmatprep.subr.mxu0 %v55
  %1420 = vmatpush1.msra.mxu0 %v54
  %1421 = vmatprep.subr.mxu0 %v59
  %1422 = vmatpush1.msra.mxu0 %v58
  %1423 = vmatprep.subr.mxu0 %v63
  %1424 = vmatpush1.msra.mxu0 %v62
  %1425 = vmatprep.subr.mxu0 %v67
  %1426 = vmatpush1.msra.mxu0 %v66
  %1427 = vmatprep.subr.mxu0 %v71
  %1428 = vmatpush1.msra.mxu0 %v70
  %1429 = vmatprep.subr.mxu0 %v75
  %1430 = vmatpush1.msra.mxu0 %v74
  %1431 = vmatprep.subr.mxu0 %v79
  %1432 = vmatpush1.msra.mxu0 %v78
  %1433 = vmatprep.subr.mxu0 %v83
  %1434 = vmatpush1.msra.mxu0 %v82
  %1435 = vmatprep.subr.mxu0 %v87
  %1436 = vmatpush1.msra.mxu0 %v86
  %1437 = vmatprep.subr.mxu0 %v91
  %1438 = vmatpush1.msra.mxu0 %v90
  %1439 = vmatprep.subr.mxu0 0.0
  %1440 = vmatpush1.msra.mxu0 0.0
  %1441 = vmatprep.subr.mxu0 0.0
  %1442 = vmatpush1.msra.mxu0 0.0
  %1443 = vmatprep.subr.mxu0 0.0
  %1444 = vmatpush1.msra.mxu0 0.0
  %1445 = vmatprep.subr.mxu0 0.0
  %1446 = vmatpush1.msra.mxu0 0.0
  %1447 = vmatprep.subr.mxu0 0.0
  %1448 = vmatpush1.msra.mxu0 0.0
  %1449 = vmatprep.subr.mxu0 0.0
  %1450 = vmatpush1.msra.mxu0 0.0
  %1451 = vmatprep.subr.mxu0 0.0
  %1452 = vmatpush1.msra.mxu0 0.0
  %1453 = vmatprep.subr.mxu0 0.0
  %1454 = vmatpush1.msra.mxu0 0.0
  %1455 = vmatprep.subr.mxu0 0.0
  %1456 = vmatpush1.msra.mxu0 0.0
  %1457 = vmatprep.subr.mxu0 0.0
  %1458 = vmatpush1.msra.mxu0 0.0
  %1459 = vmatprep.subr.mxu0 0.0
  %1460 = vmatpush1.msra.mxu0 0.0
  %1461 = vmatprep.subr.mxu0 0.0
  %1462 = vmatpush1.msra.mxu0 0.0
  %1463 = vmatprep.subr.mxu0 0.0
  %1464 = vmatpush1.msra.mxu0 0.0
  %1465 = vmatprep.subr.mxu0 0.0
  %1466 = vmatpush1.msra.mxu0 0.0
  %1467 = vmatprep.subr.mxu0 0.0
  %1468 = vmatpush1.msra.mxu0 0.0
  %1469 = vmatprep.subr.mxu0 0.0
  %1470 = vmatpush1.msra.mxu0 0.0
  %1471 = vmatprep.mubr.f32.mxu0 0.0
  %1472 = vmatmul.mubr.f32.gmra.mrb[0].mxu0 %v1328
  %v1473 = vpop.f32.mrb[0].mxu0
  %v1474 = vadd.f32 0.0, %v1473
  %v1475 = vpop.f32.mrb[0].mxu0
  %v1476 = vadd.f32 0.0, %v1475
  %1477 = vdwg.mxu0
  %v1478 = vadd.f32 %v1332, %v1403
  %v1479 = vadd.f32 %v1333, %v1405
  %v1480 = vadd.f32 %v1334, %v1474
  %v1481 = vadd.f32 %v1335, %v1476
  %v1482 = vxor.u32 %v1478, 2147483648
  %v1483 = vmul.f32 %v1482, 1.442695
  %v1484 = vpow.pop %v1483
  %v1485 = vadd.f32 %v1484, 1.0
  %v1486 = vrcp.pop %v1485
  %v1487 = vmul.f32 1.0, %v1486
  %v1488 = vxor.u32 %v1479, 2147483648
  %v1489 = vmul.f32 %v1488, 1.442695
  %v1490 = vpow.pop %v1489
  %v1491 = vadd.f32 %v1490, 1.0
  %v1492 = vrcp.pop %v1491
  %v1493 = vmul.f32 1.0, %v1492
  %v1494 = vtanh.pop %v1480
  %v1495 = vxor.u32 %v1481, 2147483648
  %v1496 = vmul.f32 %v1495, 1.442695
  %v1497 = vpow.pop %v1496
  %v1498 = vadd.f32 %v1497, 1.0
  %v1499 = vrcp.pop %v1498
  %v1500 = vmul.f32 1.0, %v1499
  %v1501 = vmul.f32 %v1493, %v1326
  %v1502 = vmul.f32 %v1487, %v1494
  %v1503 = vadd.f32 %v1501, %v1502
  %v1504 = vtanh.pop %v1503
  %v1505 = vmul.f32 %v1500, %v1504
  %s1506 = scalar_lea.vmem %s4, 56
  %1507 = vst [vmem:[%s1506] sm:$0xff] %v1505
  %1508 = vst [vmem:[#allocation2] sm:$0xff] %v1505
  %1509 = vst [vmem:[#allocation3] sm:$0xff] %v1503
  // Predicated region
  $region22: #{rnn_model_forward.8} parent=0 // pred_check
    %p1510 = pneg %p20
  $region23: #{rnn_model_forward.8} parent=0 // pred_check_branch
    %1512 = sbr.rel (%p1510) target = $region25
  $region24: #{rnn_model_forward.8} parent=0 // pred_region
    %1513 = vst [vmem:[%s5] sm:$0xff] %v1505
    %1514 = vst [vmem:[%s6] sm:$0xff] %v1503
  $region25: #{rnn_model_forward.8} parent=0 // pred_fallthru
    _
  // Predicated region
  $region26: #{rnn_model_forward.8} parent=0 // pred_check
    _
  $region27: #{rnn_model_forward.8} parent=0 // pred_check_branch
    %1516 = sbr.rel (0) target = $region29
  $region28: #{rnn_model_forward.8} parent=0 // pred_region
    _
  $region29: #{rnn_model_forward.8} parent=0 // pred_fallthru
    _
  // Predicated region
  $region30: #{rnn_model_forward.8} parent=0 // pred_check
    _
  $region31: #{rnn_model_forward.8} parent=0 // pred_check_branch
    %1518 = sbr.rel (0) target = $region33
  $region32: #{rnn_model_forward.8} parent=0 // pred_region
    _
  $region33: #{rnn_model_forward.8} parent=0 // pred_fallthru
    _
  // Predicated region
  $region34: #{rnn_model_forward.8} parent=0 // pred_check
    _
  $region35: #{rnn_model_forward.8} parent=0 // pred_check_branch
    %1520 = sbr.rel (0) target = $region37
  $region36: #{rnn_model_forward.8} parent=0 // pred_region
    _
  $region37: #{rnn_model_forward.8} parent=0 // pred_fallthru
    _
  // Predicated region
  $region38: #{rnn_model_forward.8} parent=0 // pred_check
    _
  $region39: #{rnn_model_forward.8} parent=0 // pred_check_branch
    %1522 = sbr.rel (0) target = $region41
  $region40: #{rnn_model_forward.8} parent=0 // pred_region
    _
  $region41: #{rnn_model_forward.8} parent=0 // pred_fallthru
    _
  // Predicated region
  $region42: #{rnn_model_forward.8} parent=0 // pred_check
    _
  $region43: #{rnn_model_forward.8} parent=0 // pred_check_branch
    %1524 = sbr.rel (0) target = $region45
  $region44: #{rnn_model_forward.8} parent=0 // pred_region
    _
  $region45: #{rnn_model_forward.8} parent=0 // pred_fallthru
    _
  // Predicated region
  $region46: #{rnn_model_forward.8} parent=0 // pred_check
    _
  $region47: #{rnn_model_forward.8} parent=0 // pred_check_branch
    %1526 = sbr.rel (0) target = $region49
  $region48: #{rnn_model_forward.8} parent=0 // pred_region
    _
  $region49: #{rnn_model_forward.8} parent=0 // pred_fallthru
    _

</llo_original>
